<compile_context>
chip_gen: v5e
topology: v5e:2x2
jax: 0.10.0
libtpu: 0.0.40
codegen_flags: <defaults>
</compile_context>

<pallas_src>
import jax
import jax.numpy as jnp
from jax import lax
from jax.experimental import pallas as pl
from jax.experimental.pallas import tpu as pltpu

# ------------------------- scaled-down GMSVAE config -------------------------
DIM_EMB = 128
DIM_H = 128
VOCAB = 256
COMPONENTS = 8
B = 8
T = 8
MISC_W = 128          # lane-dense packing width for (pi, gauss) output


# --------------------------- fused GMSVAE kernel -----------------------------
def make_gmsvae_kernel(Tn, T1, Bn, H, C):
    def kernel(enc_x_ref, dec_x_ref, lens_ref,
               enc_wih_ref, enc_whh_ref, enc_bih_ref, enc_bhh_ref,
               dec_wih_ref, dec_whh_ref, dec_bih_ref, dec_bhh_ref,
               wms_ref, bms_ref, eps_ref, muc_ref, lsc_ref,
               wproj_ref, bproj_ref,
               z_ref, misc_ref, out_ref,
               enc_gi, dec_gi, hout):
        # ---- prologue: both hoisted input-gate matmuls.  The decoder one has no
        # dependence on z; issuing it here lets its MXU pushes hide inside the
        # encoder recurrence bubbles (everything below is one unrolled block). ----
        enc_gi[...] = (jnp.dot(enc_x_ref[...], enc_wih_ref[...],
                               preferred_element_type=jnp.float32)
                       + enc_bih_ref[...])
        dec_gi[...] = (jnp.dot(dec_x_ref[...], dec_wih_ref[...],
                               preferred_element_type=jnp.float32)
                       + dec_bih_ref[...])

        lens = lens_ref[...]                    # (B, 1) int32 sequence lengths
        enc_whh = enc_whh_ref[...]              # bf16, resident across recurrence
        dec_whh = dec_whh_ref[...]
        # hoist hidden-bias broadcasts out of the unrolled loops (no CSE otherwise)
        enc_bhh = jnp.broadcast_to(enc_bhh_ref[...], (Bn, 3 * H))
        dec_bhh = jnp.broadcast_to(dec_bhh_ref[...], (Bn, 3 * H))

        def gru_gates(gi, gh, h):
            # PyTorch GRU cell, gate order [r, z, n]; lane-aligned slices (0/128/256)
            r = jax.nn.sigmoid(gi[:, :H] + gh[:, :H])
            zg = jax.nn.sigmoid(gi[:, H:2 * H] + gh[:, H:2 * H])
            n = jnp.tanh(gi[:, 2 * H:] + r * gh[:, 2 * H:])
            return (1.0 - zg) * n + zg * h

        # ---------------------------- encoder recurrence -------------------------
        def enc_step(t, h):
            gh = jnp.dot(h.astype(enc_whh.dtype), enc_whh,
                         preferred_element_type=jnp.float32) + enc_bhh
            gi = enc_gi[pl.ds(pl.multiple_of(t * Bn, 8), Bn), :]
            h_new = gru_gates(gi, gh, h)
            # freeze h once the sequence has ended -> final valid hidden state
            return jnp.where(lens > t, h_new, h)

        # TODO(synk): at larger T switch unroll=True to a partial unroll (e.g. 4)
        # and reconsider gi-scratch residency (it grows as T*B*3H f32).
        h_final = lax.fori_loop(0, Tn, enc_step,
                                jnp.zeros((Bn, H), jnp.float32), unroll=True)

        # --------------------- latent Gaussian-mixture head ----------------------
        musig = jnp.dot(h_final.astype(wms_ref.dtype), wms_ref[...],
                        preferred_element_type=jnp.float32) + bms_ref[...]
        mu_z = musig[:, :H]
        lsz = musig[:, H:]
        z = mu_z + jnp.exp(0.5 * lsz) * eps_ref[...]
        z_ref[...] = z

        mu_c = muc_ref[...]                                   # (C, H)
        lsc = lsc_ref[...]                                    # (C, H)
        inv_var_c = jnp.exp(-lsc)[None, :, :]                 # (1, C, H)

        dz = z[:, None, :] - mu_c[None, :, :]                 # (B, C, H)
        logits = -jnp.sum(dz * dz * inv_var_c, axis=-1)       # (B, C)
        logits = logits - jnp.max(logits, axis=-1, keepdims=True)
        e = jnp.exp(logits)
        pi = e / jnp.sum(e, axis=-1, keepdims=True) + 1e-10   # softmax + 1e-10

        term = (lsc[None, :, :]
                + jnp.exp(lsz)[:, None, :] * inv_var_c
                + (mu_z[:, None, :] - mu_c[None, :, :]) ** 2 * inv_var_c)
        gauss = (0.5 * jnp.sum(pi * jnp.mean(term, axis=-1), axis=-1, keepdims=True)
                 - 0.5 * jnp.mean(1.0 + lsz, axis=-1, keepdims=True))      # (B, 1)

        # pack pi / gauss into one lane-dense (B, 128) output (single unmasked store)
        pad = jnp.zeros((Bn, MISC_W - C - 1), jnp.float32)
        misc_ref[...] = jnp.concatenate([pi, gauss, pad], axis=-1)

        # ---------------- decoder recurrence (initial state = z, VMEM-resident) --
        def dec_step(t, h):
            gh = jnp.dot(h.astype(dec_whh.dtype), dec_whh,
                         preferred_element_type=jnp.float32) + dec_bhh
            gi = dec_gi[pl.ds(pl.multiple_of(t * Bn, 8), Bn), :]
            h_new = gru_gates(gi, gh, h)
            valid = lens >= t            # decoder lengths are seq_lengths + 1
            # pad_packed_sequence zero-fills outputs beyond the sequence length
            hout[pl.ds(pl.multiple_of(t * Bn, 8), Bn), :] = jnp.where(valid, h_new, 0.0)
            return jnp.where(valid, h_new, h)

        lax.fori_loop(0, T1, dec_step, z, unroll=True)

        # ------------- single big output projection: (T1*B, H) @ (H, V) ----------
        out_ref[...] = (jnp.dot(hout[...].astype(wproj_ref.dtype), wproj_ref[...],
                                preferred_element_type=jnp.float32)
                        + bproj_ref[...])

    return kernel


def run_gmsvae_fused(enc_x, dec_x, lens,
                     enc_wih, enc_whh, enc_bih, enc_bhh,
                     dec_wih, dec_whh, dec_bih, dec_bhh,
                     w_musig, b_musig, eps, mu_c, lsc, proj_w, proj_b):
    TB_enc, E = enc_x.shape
    TB_dec = dec_x.shape[0]
    Bn = lens.shape[0]
    Tn = TB_enc // Bn
    T1 = TB_dec // Bn
    H = enc_whh.shape[0]
    C = mu_c.shape[0]
    V = proj_w.shape[1]

    full = lambda s: pl.BlockSpec(s, lambda i: (0, 0))

    return pl.pallas_call(
        make_gmsvae_kernel(Tn, T1, Bn, H, C),
        out_shape=(jax.ShapeDtypeStruct((Bn, H), jnp.float32),
                   jax.ShapeDtypeStruct((Bn, MISC_W), jnp.float32),
                   jax.ShapeDtypeStruct((TB_dec, V), jnp.float32)),
        grid_spec=pltpu.PrefetchScalarGridSpec(
            num_scalar_prefetch=0, grid=(1,),
            in_specs=[
                full((TB_enc, E)), full((TB_dec, E)), full((Bn, 1)),
                full((E, 3 * H)), full((H, 3 * H)), full((1, 3 * H)), full((1, 3 * H)),
                full((E, 3 * H)), full((H, 3 * H)), full((1, 3 * H)), full((1, 3 * H)),
                full((H, 2 * H)), full((1, 2 * H)), full((Bn, H)),
                full((C, H)), full((C, H)),
                full((H, V)), full((1, V)),
            ],
            out_specs=(full((Bn, H)), full((Bn, MISC_W)), full((TB_dec, V))),
            scratch_shapes=[pltpu.VMEM((TB_enc, 3 * H), jnp.float32),
                            pltpu.VMEM((TB_dec, 3 * H), jnp.float32),
                            pltpu.VMEM((TB_dec, H), jnp.float32)]),
        compiler_params=pltpu.CompilerParams(
            dimension_semantics=("arbitrary",)),
    )(enc_x, dec_x, lens,
      enc_wih, enc_whh, enc_bih, enc_bhh,
      dec_wih, dec_whh, dec_bih, dec_bhh,
      w_musig, b_musig, eps, mu_c, lsc, proj_w, proj_b)


# ------------------------------ parameter init -------------------------------
def init_params(key):
    ks = jax.random.split(key, 12)
    s = 0.1
    p = {}
    p["emb"] = jax.random.normal(ks[0], (VOCAB, DIM_EMB), jnp.float32) * s
    # encoder GRU (weights stored (in_dim, out_dim); gate order [r, z, n])
    p["enc_wih"] = jax.random.normal(ks[1], (DIM_EMB, 3 * DIM_H), jnp.float32) * s
    p["enc_whh"] = jax.random.normal(ks[2], (DIM_H, 3 * DIM_H), jnp.float32) * s
    p["enc_bih"] = jnp.zeros((1, 3 * DIM_H), jnp.float32)
    p["enc_bhh"] = jnp.zeros((1, 3 * DIM_H), jnp.float32)
    # decoder GRU
    p["dec_wih"] = jax.random.normal(ks[3], (DIM_EMB, 3 * DIM_H), jnp.float32) * s
    p["dec_whh"] = jax.random.normal(ks[4], (DIM_H, 3 * DIM_H), jnp.float32) * s
    p["dec_bih"] = jnp.zeros((1, 3 * DIM_H), jnp.float32)
    p["dec_bhh"] = jnp.zeros((1, 3 * DIM_H), jnp.float32)
    # latent Gaussian mixture
    p["mu_c"] = jax.random.normal(ks[5], (COMPONENTS, DIM_H), jnp.float32)
    p["log_sigma_sq_c"] = jnp.zeros((COMPONENTS, DIM_H), jnp.float32)
    p["w_mu"] = jax.random.normal(ks[6], (DIM_H, DIM_H), jnp.float32) * s
    p["b_mu"] = jnp.zeros((1, DIM_H), jnp.float32)
    p["w_sig"] = jax.random.normal(ks[7], (DIM_H, DIM_H), jnp.float32) * s
    p["b_sig"] = jnp.zeros((1, DIM_H), jnp.float32)
    # output projection
    p["proj_w"] = jax.random.normal(ks[8], (DIM_H, VOCAB), jnp.float32) * s
    p["proj_b"] = jnp.zeros((1, VOCAB), jnp.float32)
    return p


# -------------------------------- full forward -------------------------------
def gmsvae_forward(params, tokens, masks, eps):
    Bn, Tn = tokens.shape
    emb = params["emb"]
    bf = lambda w: w.astype(jnp.bfloat16)   # MXU operands in bf16, f32 accumulation

    seq_lengths = masks.sum(-1).astype(jnp.int32)                    # (B,)

    # TODO(synk): embedding gathers + time-major transposes stay in XLA; an
    # in-kernel gather from a VMEM-resident table needs dynamic sublane gather.
    x_emb = jnp.take(emb, tokens, axis=0)                            # (B, T, E)
    x_flat = (jnp.transpose(x_emb, (1, 0, 2))
              .reshape(Tn * Bn, DIM_EMB).astype(jnp.bfloat16))       # time-major

    zeros_col = jnp.zeros((Bn, 1), dtype=tokens.dtype)
    dec_tokens = jnp.concatenate([zeros_col, tokens], axis=1)        # (B, T+1)
    dec_emb = jnp.take(emb, dec_tokens, axis=0)
    dec_flat = (jnp.transpose(dec_emb, (1, 0, 2))
                .reshape((Tn + 1) * Bn, DIM_EMB).astype(jnp.bfloat16))

    # merged latent-head weight: one (H, 2H) matmul instead of two (H, H) passes
    w_musig = jnp.concatenate([params["w_mu"], params["w_sig"]], axis=1).astype(jnp.bfloat16)
    b_musig = jnp.concatenate([params["b_mu"], params["b_sig"]], axis=1)

    z, misc, logits_flat = run_gmsvae_fused(
        x_flat, dec_flat, seq_lengths[:, None],
        bf(params["enc_wih"]), bf(params["enc_whh"]),
        params["enc_bih"], params["enc_bhh"],
        bf(params["dec_wih"]), bf(params["dec_whh"]),
        params["dec_bih"], params["dec_bhh"],
        w_musig, b_musig, eps,
        params["mu_c"], params["log_sigma_sq_c"],
        bf(params["proj_w"]), params["proj_b"])

    pi_post = misc[:, :COMPONENTS]                                   # (B, C)
    gauss_loss = misc[:, COMPONENTS]                                 # (B,)
    pm = jnp.mean(pi_post, axis=0)
    uniform_loss = jnp.mean(pm * jnp.log(pm))                        # scalar

    # TODO(synk): final (T+1, B, V) -> (B, T+1, V) relayout stays in XLA; writing
    # batch-first in-kernel would need a dynamic sublane-offset scatter.
    logits = logits_flat.reshape(Tn + 1, Bn, VOCAB).transpose(1, 0, 2)

    zeros_f = jnp.zeros((Bn, 1), dtype=masks.dtype)
    targets = jnp.concatenate([tokens, zeros_col], axis=1)
    masks_out = jnp.concatenate([masks, zeros_f], axis=1)

    return logits, (gauss_loss, uniform_loss), targets, z, masks_out


# ----------------------------------- main ------------------------------------
if __name__ == "__main__":
    key = jax.random.PRNGKey(0)
    kp, kt, ke = jax.random.split(key, 3)

    params = init_params(kp)

    tokens = jax.random.randint(kt, (B, T), 2, VOCAB).astype(jnp.int32)
    lengths = jnp.array([8, 7, 6, 5, 4, 3, 2, 8], dtype=jnp.int32)
    masks = (jnp.arange(T)[None, :] < lengths[:, None]).astype(jnp.float32)
    # eps ~ randn_like(log_sigma_sq_z) from the reparameterization trick
    eps = jax.random.normal(ke, (B, DIM_H), jnp.float32)

    fwd = jax.jit(gmsvae_forward)
    logits, (gauss_loss, uniform_loss), targets, z, masks_out = fwd(
        params, tokens, masks, eps)

    jax.block_until_ready((logits, gauss_loss, uniform_loss, targets, z, masks_out))

    assert logits.shape == (B, T + 1, VOCAB)
    assert gauss_loss.shape == (B,)
    assert uniform_loss.shape == ()
    assert z.shape == (B, DIM_H)
    assert targets.shape == (B, T + 1)
    assert masks_out.shape == (B, T + 1)
    assert bool(jnp.all(jnp.isfinite(logits)))
    assert bool(jnp.all(jnp.isfinite(gauss_loss)))
    print("KERNEL_OK")
</pallas_src>

<mosaic_0001>
module attributes {stable_mosaic.version = 11 : i64} {
  func.func @kernel(%arg0: i32, %arg1: memref<64x128xbf16, #tpu.memory_space<vmem>>, %arg2: memref<72x128xbf16, #tpu.memory_space<vmem>>, %arg3: memref<8x1xi32, #tpu.memory_space<vmem>>, %arg4: memref<128x384xbf16, #tpu.memory_space<vmem>>, %arg5: memref<128x384xbf16, #tpu.memory_space<vmem>>, %arg6: memref<1x384xf32, #tpu.memory_space<vmem>>, %arg7: memref<1x384xf32, #tpu.memory_space<vmem>>, %arg8: memref<128x384xbf16, #tpu.memory_space<vmem>>, %arg9: memref<128x384xbf16, #tpu.memory_space<vmem>>, %arg10: memref<1x384xf32, #tpu.memory_space<vmem>>, %arg11: memref<1x384xf32, #tpu.memory_space<vmem>>, %arg12: memref<128x256xbf16, #tpu.memory_space<vmem>>, %arg13: memref<1x256xf32, #tpu.memory_space<vmem>>, %arg14: memref<8x128xf32, #tpu.memory_space<vmem>>, %arg15: memref<8x128xf32, #tpu.memory_space<vmem>>, %arg16: memref<8x128xf32, #tpu.memory_space<vmem>>, %arg17: memref<128x256xbf16, #tpu.memory_space<vmem>>, %arg18: memref<1x256xf32, #tpu.memory_space<vmem>>, %arg19: memref<8x128xf32, #tpu.memory_space<vmem>>, %arg20: memref<8x128xf32, #tpu.memory_space<vmem>>, %arg21: memref<72x256xf32, #tpu.memory_space<vmem>>, %arg22: memref<64x384xf32, #tpu.memory_space<vmem>>, %arg23: memref<72x384xf32, #tpu.memory_space<vmem>>, %arg24: memref<72x128xf32, #tpu.memory_space<vmem>>) attributes {dimension_semantics = [#tpu.dimension_semantics<arbitrary>], iteration_bounds = array<i64: 1>, scalar_prefetch = 0 : i64, scratch_operands = 3 : i64, tpu.core_type = #tpu.core_type<tc>, window_params = [{pipeline_mode = #tpu.pipeline_mode<synchronous>, transform_indices = @transform_0, window_bounds = array<i64: 64, 128>}, {pipeline_mode = #tpu.pipeline_mode<synchronous>, transform_indices = @transform_1, window_bounds = array<i64: 72, 128>}, {pipeline_mode = #tpu.pipeline_mode<synchronous>, transform_indices = @transform_2, window_bounds = array<i64: 8, 1>}, {pipeline_mode = #tpu.pipeline_mode<synchronous>, transform_indices = @transform_3, window_bounds = array<i64: 128, 384>}, {pipeline_mode = #tpu.pipeline_mode<synchronous>, transform_indices = @transform_4, window_bounds = array<i64: 128, 384>}, {pipeline_mode = #tpu.pipeline_mode<synchronous>, transform_indices = @transform_5, window_bounds = array<i64: 1, 384>}, {pipeline_mode = #tpu.pipeline_mode<synchronous>, transform_indices = @transform_6, window_bounds = array<i64: 1, 384>}, {pipeline_mode = #tpu.pipeline_mode<synchronous>, transform_indices = @transform_7, window_bounds = array<i64: 128, 384>}, {pipeline_mode = #tpu.pipeline_mode<synchronous>, transform_indices = @transform_8, window_bounds = array<i64: 128, 384>}, {pipeline_mode = #tpu.pipeline_mode<synchronous>, transform_indices = @transform_9, window_bounds = array<i64: 1, 384>}, {pipeline_mode = #tpu.pipeline_mode<synchronous>, transform_indices = @transform_10, window_bounds = array<i64: 1, 384>}, {pipeline_mode = #tpu.pipeline_mode<synchronous>, transform_indices = @transform_11, window_bounds = array<i64: 128, 256>}, {pipeline_mode = #tpu.pipeline_mode<synchronous>, transform_indices = @transform_12, window_bounds = array<i64: 1, 256>}, {pipeline_mode = #tpu.pipeline_mode<synchronous>, transform_indices = @transform_13, window_bounds = array<i64: 8, 128>}, {pipeline_mode = #tpu.pipeline_mode<synchronous>, transform_indices = @transform_14, window_bounds = array<i64: 8, 128>}, {pipeline_mode = #tpu.pipeline_mode<synchronous>, transform_indices = @transform_15, window_bounds = array<i64: 8, 128>}, {pipeline_mode = #tpu.pipeline_mode<synchronous>, transform_indices = @transform_16, window_bounds = array<i64: 128, 256>}, {pipeline_mode = #tpu.pipeline_mode<synchronous>, transform_indices = @transform_17, window_bounds = array<i64: 1, 256>}, {pipeline_mode = #tpu.pipeline_mode<synchronous>, transform_indices = @transform_18, window_bounds = array<i64: 8, 128>}, {pipeline_mode = #tpu.pipeline_mode<synchronous>, transform_indices = @transform_19, window_bounds = array<i64: 8, 128>}, {pipeline_mode = #tpu.pipeline_mode<synchronous>, transform_indices = @transform_20, window_bounds = array<i64: 72, 256>}]} {
    %c0 = arith.constant 0 : index
    %c0_0 = arith.constant 0 : index
    %0 = vector.load %arg1[%c0, %c0_0] : memref<64x128xbf16, #tpu.memory_space<vmem>>, vector<64x128xbf16>
    %c0_1 = arith.constant 0 : index
    %c0_2 = arith.constant 0 : index
    %1 = vector.load %arg4[%c0_1, %c0_2] : memref<128x384xbf16, #tpu.memory_space<vmem>>, vector<128x384xbf16>
    %cst = arith.constant dense<0.000000e+00> : vector<64x384xf32>
    %2 = tpu.matmul %0, %1, %cst {dimension_numbers = #tpu.dot_dimension_numbers<[1], [0], [0], [1], [0, 0, 1, 1], [], []>} : vector<64x128xbf16>, vector<128x384xbf16>, vector<64x384xf32> -> vector<64x384xf32>
    %c0_3 = arith.constant 0 : index
    %c0_4 = arith.constant 0 : index
    %3 = vector.load %arg6[%c0_3, %c0_4] : memref<1x384xf32, #tpu.memory_space<vmem>>, vector<1x384xf32>
    %4 = vector.broadcast %3 : vector<1x384xf32> to vector<64x384xf32>
    %5 = arith.addf %2, %4 : vector<64x384xf32>
    %c0_5 = arith.constant 0 : index
    %c0_6 = arith.constant 0 : index
    %6 = vector.load %arg22[%c0_5, %c0_6] : memref<64x384xf32, #tpu.memory_space<vmem>>, vector<64x384xf32>
    tpu.vector_store %arg22[%c0_5, %c0_6], %5 {strides = array<i32>} : memref<64x384xf32, #tpu.memory_space<vmem>>, vector<64x384xf32>,
    %c0_7 = arith.constant 0 : index
    %c0_8 = arith.constant 0 : index
    %7 = vector.load %arg2[%c0_7, %c0_8] : memref<72x128xbf16, #tpu.memory_space<vmem>>, vector<72x128xbf16>
    %c0_9 = arith.constant 0 : index
    %c0_10 = arith.constant 0 : index
    %8 = vector.load %arg8[%c0_9, %c0_10] : memref<128x384xbf16, #tpu.memory_space<vmem>>, vector<128x384xbf16>
    %cst_11 = arith.constant dense<0.000000e+00> : vector<72x384xf32>
    %9 = tpu.matmul %7, %8, %cst_11 {dimension_numbers = #tpu.dot_dimension_numbers<[1], [0], [0], [1], [0, 0, 1, 1], [], []>} : vector<72x128xbf16>, vector<128x384xbf16>, vector<72x384xf32> -> vector<72x384xf32>
    %c0_12 = arith.constant 0 : index
    %c0_13 = arith.constant 0 : index
    %10 = vector.load %arg10[%c0_12, %c0_13] : memref<1x384xf32, #tpu.memory_space<vmem>>, vector<1x384xf32>
    %11 = vector.broadcast %10 : vector<1x384xf32> to vector<72x384xf32>
    %12 = arith.addf %9, %11 : vector<72x384xf32>
    %c0_14 = arith.constant 0 : index
    %c0_15 = arith.constant 0 : index
    %13 = vector.load %arg23[%c0_14, %c0_15] : memref<72x384xf32, #tpu.memory_space<vmem>>, vector<72x384xf32>
    tpu.vector_store %arg23[%c0_14, %c0_15], %12 {strides = array<i32>} : memref<72x384xf32, #tpu.memory_space<vmem>>, vector<72x384xf32>,
    %c0_16 = arith.constant 0 : index
    %c0_17 = arith.constant 0 : index
    %14 = vector.load %arg3[%c0_16, %c0_17] : memref<8x1xi32, #tpu.memory_space<vmem>>, vector<8x1xi32>
    %c0_18 = arith.constant 0 : index
    %c0_19 = arith.constant 0 : index
    %15 = vector.load %arg5[%c0_18, %c0_19] : memref<128x384xbf16, #tpu.memory_space<vmem>>, vector<128x384xbf16>
    %c0_20 = arith.constant 0 : index
    %c0_21 = arith.constant 0 : index
    %16 = vector.load %arg9[%c0_20, %c0_21] : memref<128x384xbf16, #tpu.memory_space<vmem>>, vector<128x384xbf16>
    %c0_22 = arith.constant 0 : index
    %c0_23 = arith.constant 0 : index
    %17 = vector.load %arg7[%c0_22, %c0_23] : memref<1x384xf32, #tpu.memory_space<vmem>>, vector<1x384xf32>
    %18 = vector.shape_cast %17 : vector<1x384xf32> to vector<1x384xf32>
    %19 = vector.broadcast %18 : vector<1x384xf32> to vector<8x384xf32>
    %c0_24 = arith.constant 0 : index
    %c0_25 = arith.constant 0 : index
    %20 = vector.load %arg11[%c0_24, %c0_25] : memref<1x384xf32, #tpu.memory_space<vmem>>, vector<1x384xf32>
    %21 = vector.shape_cast %20 : vector<1x384xf32> to vector<1x384xf32>
    %22 = vector.broadcast %21 : vector<1x384xf32> to vector<8x384xf32>
    %cst_26 = arith.constant 0.000000e+00 : f32
    %23 = vector.broadcast %cst_26 : f32 to vector<8x128xf32>
    %c0_i32 = arith.constant 0 : i32
    %24 = arith.truncf %23 : vector<8x128xf32> to vector<8x128xbf16>
    %cst_27 = arith.constant dense<0.000000e+00> : vector<8x384xf32>
    %25 = tpu.matmul %24, %15, %cst_27 {dimension_numbers = #tpu.dot_dimension_numbers<[1], [0], [0], [1], [0, 0, 1, 1], [], []>} : vector<8x128xbf16>, vector<128x384xbf16>, vector<8x384xf32> -> vector<8x384xf32>
    %26 = arith.addf %25, %19 : vector<8x384xf32>
    %c8_i32 = arith.constant 8 : i32
    %27 = arith.muli %c0_i32, %c8_i32 : i32
    %28 = tpu.assume_multiple %27, 8 : i32
    %29 = arith.index_cast %28 : i32 to index
    %c0_28 = arith.constant 0 : index
    %30 = vector.load %arg22[%29, %c0_28] : memref<64x384xf32, #tpu.memory_space<vmem>>, vector<8x384xf32>
    %31 = vector.extract_strided_slice %30 {offsets = [0, 0], sizes = [8, 128], strides = [1, 1]} : vector<8x384xf32> to vector<8x128xf32>
    %32 = vector.extract_strided_slice %26 {offsets = [0, 0], sizes = [8, 128], strides = [1, 1]} : vector<8x384xf32> to vector<8x128xf32>
    %33 = arith.addf %31, %32 : vector<8x128xf32>
    %34 = arith.negf %33 : vector<8x128xf32>
    %35 = math.exp %34 : vector<8x128xf32>
    %cst_29 = arith.constant 1.000000e+00 : f32
    %36 = vector.broadcast %cst_29 : f32 to vector<8x128xf32>
    %37 = arith.addf %36, %35 : vector<8x128xf32>
    %38 = arith.divf %36, %37 : vector<8x128xf32>
    %39 = vector.extract_strided_slice %30 {offsets = [0, 128], sizes = [8, 128], strides = [1, 1]} : vector<8x384xf32> to vector<8x128xf32>
    %40 = vector.extract_strided_slice %26 {offsets = [0, 128], sizes = [8, 128], strides = [1, 1]} : vector<8x384xf32> to vector<8x128xf32>
    %41 = arith.addf %39, %40 : vector<8x128xf32>
    %42 = arith.negf %41 : vector<8x128xf32>
    %43 = math.exp %42 : vector<8x128xf32>
    %cst_30 = arith.constant 1.000000e+00 : f32
    %44 = vector.broadcast %cst_30 : f32 to vector<8x128xf32>
    %45 = arith.addf %44, %43 : vector<8x128xf32>
    %46 = arith.divf %44, %45 : vector<8x128xf32>
    %47 = vector.extract_strided_slice %30 {offsets = [0, 256], sizes = [8, 128], strides = [1, 1]} : vector<8x384xf32> to vector<8x128xf32>
    %48 = vector.extract_strided_slice %26 {offsets = [0, 256], sizes = [8, 128], strides = [1, 1]} : vector<8x384xf32> to vector<8x128xf32>
    %49 = arith.mulf %38, %48 : vector<8x128xf32>
    %50 = arith.addf %47, %49 : vector<8x128xf32>
    %51 = math.tanh %50 : vector<8x128xf32>
    %cst_31 = arith.constant 1.000000e+00 : f32
    %52 = vector.broadcast %cst_31 : f32 to vector<8x128xf32>
    %53 = arith.subf %52, %46 : vector<8x128xf32>
    %54 = arith.mulf %53, %51 : vector<8x128xf32>
    %55 = arith.mulf %46, %23 : vector<8x128xf32>
    %56 = arith.addf %54, %55 : vector<8x128xf32>
    %57 = vector.broadcast %c0_i32 : i32 to vector<8x1xi32>
    %58 = arith.cmpi sgt, %14, %57 : vector<8x1xi32>
    %59 = vector.shape_cast %58 : vector<8x1xi1> to vector<8x1xi1>
    %60 = vector.broadcast %59 : vector<8x1xi1> to vector<8x128xi1>
    %61 = arith.select %60, %56, %23 : vector<8x128xi1>, vector<8x128xf32>
    %c1_i32 = arith.constant 1 : i32
    %62 = arith.truncf %61 : vector<8x128xf32> to vector<8x128xbf16>
    %cst_32 = arith.constant dense<0.000000e+00> : vector<8x384xf32>
    %63 = tpu.matmul %62, %15, %cst_32 {dimension_numbers = #tpu.dot_dimension_numbers<[1], [0], [0], [1], [0, 0, 1, 1], [], []>} : vector<8x128xbf16>, vector<128x384xbf16>, vector<8x384xf32> -> vector<8x384xf32>
    %64 = arith.addf %63, %19 : vector<8x384xf32>
    %c8_i32_33 = arith.constant 8 : i32
    %65 = arith.muli %c1_i32, %c8_i32_33 : i32
    %66 = tpu.assume_multiple %65, 8 : i32
    %67 = arith.index_cast %66 : i32 to index
    %c0_34 = arith.constant 0 : index
    %68 = vector.load %arg22[%67, %c0_34] : memref<64x384xf32, #tpu.memory_space<vmem>>, vector<8x384xf32>
    %69 = vector.extract_strided_slice %68 {offsets = [0, 0], sizes = [8, 128], strides = [1, 1]} : vector<8x384xf32> to vector<8x128xf32>
    %70 = vector.extract_strided_slice %64 {offsets = [0, 0], sizes = [8, 128], strides = [1, 1]} : vector<8x384xf32> to vector<8x128xf32>
    %71 = arith.addf %69, %70 : vector<8x128xf32>
    %72 = arith.negf %71 : vector<8x128xf32>
    %73 = math.exp %72 : vector<8x128xf32>
    %cst_35 = arith.constant 1.000000e+00 : f32
    %74 = vector.broadcast %cst_35 : f32 to vector<8x128xf32>
    %75 = arith.addf %74, %73 : vector<8x128xf32>
    %76 = arith.divf %74, %75 : vector<8x128xf32>
    %77 = vector.extract_strided_slice %68 {offsets = [0, 128], sizes = [8, 128], strides = [1, 1]} : vector<8x384xf32> to vector<8x128xf32>
    %78 = vector.extract_strided_slice %64 {offsets = [0, 128], sizes = [8, 128], strides = [1, 1]} : vector<8x384xf32> to vector<8x128xf32>
    %79 = arith.addf %77, %78 : vector<8x128xf32>
    %80 = arith.negf %79 : vector<8x128xf32>
    %81 = math.exp %80 : vector<8x128xf32>
    %cst_36 = arith.constant 1.000000e+00 : f32
    %82 = vector.broadcast %cst_36 : f32 to vector<8x128xf32>
    %83 = arith.addf %82, %81 : vector<8x128xf32>
    %84 = arith.divf %82, %83 : vector<8x128xf32>
    %85 = vector.extract_strided_slice %68 {offsets = [0, 256], sizes = [8, 128], strides = [1, 1]} : vector<8x384xf32> to vector<8x128xf32>
    %86 = vector.extract_strided_slice %64 {offsets = [0, 256], sizes = [8, 128], strides = [1, 1]} : vector<8x384xf32> to vector<8x128xf32>
    %87 = arith.mulf %76, %86 : vector<8x128xf32>
    %88 = arith.addf %85, %87 : vector<8x128xf32>
    %89 = math.tanh %88 : vector<8x128xf32>
    %cst_37 = arith.constant 1.000000e+00 : f32
    %90 = vector.broadcast %cst_37 : f32 to vector<8x128xf32>
    %91 = arith.subf %90, %84 : vector<8x128xf32>
    %92 = arith.mulf %91, %89 : vector<8x128xf32>
    %93 = arith.mulf %84, %61 : vector<8x128xf32>
    %94 = arith.addf %92, %93 : vector<8x128xf32>
    %95 = vector.broadcast %c1_i32 : i32 to vector<8x1xi32>
    %96 = arith.cmpi sgt, %14, %95 : vector<8x1xi32>
    %97 = vector.shape_cast %96 : vector<8x1xi1> to vector<8x1xi1>
    %98 = vector.broadcast %97 : vector<8x1xi1> to vector<8x128xi1>
    %99 = arith.select %98, %94, %61 : vector<8x128xi1>, vector<8x128xf32>
    %c2_i32 = arith.constant 2 : i32
    %100 = arith.truncf %99 : vector<8x128xf32> to vector<8x128xbf16>
    %cst_38 = arith.constant dense<0.000000e+00> : vector<8x384xf32>
    %101 = tpu.matmul %100, %15, %cst_38 {dimension_numbers = #tpu.dot_dimension_numbers<[1], [0], [0], [1], [0, 0, 1, 1], [], []>} : vector<8x128xbf16>, vector<128x384xbf16>, vector<8x384xf32> -> vector<8x384xf32>
    %102 = arith.addf %101, %19 : vector<8x384xf32>
    %c8_i32_39 = arith.constant 8 : i32
    %103 = arith.muli %c2_i32, %c8_i32_39 : i32
    %104 = tpu.assume_multiple %103, 8 : i32
    %105 = arith.index_cast %104 : i32 to index
    %c0_40 = arith.constant 0 : index
    %106 = vector.load %arg22[%105, %c0_40] : memref<64x384xf32, #tpu.memory_space<vmem>>, vector<8x384xf32>
    %107 = vector.extract_strided_slice %106 {offsets = [0, 0], sizes = [8, 128], strides = [1, 1]} : vector<8x384xf32> to vector<8x128xf32>
    %108 = vector.extract_strided_slice %102 {offsets = [0, 0], sizes = [8, 128], strides = [1, 1]} : vector<8x384xf32> to vector<8x128xf32>
    %109 = arith.addf %107, %108 : vector<8x128xf32>
    %110 = arith.negf %109 : vector<8x128xf32>
    %111 = math.exp %110 : vector<8x128xf32>
    %cst_41 = arith.constant 1.000000e+00 : f32
    %112 = vector.broadcast %cst_41 : f32 to vector<8x128xf32>
    %113 = arith.addf %112, %111 : vector<8x128xf32>
    %114 = arith.divf %112, %113 : vector<8x128xf32>
    %115 = vector.extract_strided_slice %106 {offsets = [0, 128], sizes = [8, 128], strides = [1, 1]} : vector<8x384xf32> to vector<8x128xf32>
    %116 = vector.extract_strided_slice %102 {offsets = [0, 128], sizes = [8, 128], strides = [1, 1]} : vector<8x384xf32> to vector<8x128xf32>
    %117 = arith.addf %115, %116 : vector<8x128xf32>
    %118 = arith.negf %117 : vector<8x128xf32>
    %119 = math.exp %118 : vector<8x128xf32>
    %cst_42 = arith.constant 1.000000e+00 : f32
    %120 = vector.broadcast %cst_42 : f32 to vector<8x128xf32>
    %121 = arith.addf %120, %119 : vector<8x128xf32>
    %122 = arith.divf %120, %121 : vector<8x128xf32>
    %123 = vector.extract_strided_slice %106 {offsets = [0, 256], sizes = [8, 128], strides = [1, 1]} : vector<8x384xf32> to vector<8x128xf32>
    %124 = vector.extract_strided_slice %102 {offsets = [0, 256], sizes = [8, 128], strides = [1, 1]} : vector<8x384xf32> to vector<8x128xf32>
    %125 = arith.mulf %114, %124 : vector<8x128xf32>
    %126 = arith.addf %123, %125 : vector<8x128xf32>
    %127 = math.tanh %126 : vector<8x128xf32>
    %cst_43 = arith.constant 1.000000e+00 : f32
    %128 = vector.broadcast %cst_43 : f32 to vector<8x128xf32>
    %129 = arith.subf %128, %122 : vector<8x128xf32>
    %130 = arith.mulf %129, %127 : vector<8x128xf32>
    %131 = arith.mulf %122, %99 : vector<8x128xf32>
    %132 = arith.addf %130, %131 : vector<8x128xf32>
    %133 = vector.broadcast %c2_i32 : i32 to vector<8x1xi32>
    %134 = arith.cmpi sgt, %14, %133 : vector<8x1xi32>
    %135 = vector.shape_cast %134 : vector<8x1xi1> to vector<8x1xi1>
    %136 = vector.broadcast %135 : vector<8x1xi1> to vector<8x128xi1>
    %137 = arith.select %136, %132, %99 : vector<8x128xi1>, vector<8x128xf32>
    %c3_i32 = arith.constant 3 : i32
    %138 = arith.truncf %137 : vector<8x128xf32> to vector<8x128xbf16>
    %cst_44 = arith.constant dense<0.000000e+00> : vector<8x384xf32>
    %139 = tpu.matmul %138, %15, %cst_44 {dimension_numbers = #tpu.dot_dimension_numbers<[1], [0], [0], [1], [0, 0, 1, 1], [], []>} : vector<8x128xbf16>, vector<128x384xbf16>, vector<8x384xf32> -> vector<8x384xf32>
    %140 = arith.addf %139, %19 : vector<8x384xf32>
    %c8_i32_45 = arith.constant 8 : i32
    %141 = arith.muli %c3_i32, %c8_i32_45 : i32
    %142 = tpu.assume_multiple %141, 8 : i32
    %143 = arith.index_cast %142 : i32 to index
    %c0_46 = arith.constant 0 : index
    %144 = vector.load %arg22[%143, %c0_46] : memref<64x384xf32, #tpu.memory_space<vmem>>, vector<8x384xf32>
    %145 = vector.extract_strided_slice %144 {offsets = [0, 0], sizes = [8, 128], strides = [1, 1]} : vector<8x384xf32> to vector<8x128xf32>
    %146 = vector.extract_strided_slice %140 {offsets = [0, 0], sizes = [8, 128], strides = [1, 1]} : vector<8x384xf32> to vector<8x128xf32>
    %147 = arith.addf %145, %146 : vector<8x128xf32>
    %148 = arith.negf %147 : vector<8x128xf32>
    %149 = math.exp %148 : vector<8x128xf32>
    %cst_47 = arith.constant 1.000000e+00 : f32
    %150 = vector.broadcast %cst_47 : f32 to vector<8x128xf32>
    %151 = arith.addf %150, %149 : vector<8x128xf32>
    %152 = arith.divf %150, %151 : vector<8x128xf32>
    %153 = vector.extract_strided_slice %144 {offsets = [0, 128], sizes = [8, 128], strides = [1, 1]} : vector<8x384xf32> to vector<8x128xf32>
    %154 = vector.extract_strided_slice %140 {offsets = [0, 128], sizes = [8, 128], strides = [1, 1]} : vector<8x384xf32> to vector<8x128xf32>
    %155 = arith.addf %153, %154 : vector<8x128xf32>
    %156 = arith.negf %155 : vector<8x128xf32>
    %157 = math.exp %156 : vector<8x128xf32>
    %cst_48 = arith.constant 1.000000e+00 : f32
    %158 = vector.broadcast %cst_48 : f32 to vector<8x128xf32>
    %159 = arith.addf %158, %157 : vector<8x128xf32>
    %160 = arith.divf %158, %159 : vector<8x128xf32>
    %161 = vector.extract_strided_slice %144 {offsets = [0, 256], sizes = [8, 128], strides = [1, 1]} : vector<8x384xf32> to vector<8x128xf32>
    %162 = vector.extract_strided_slice %140 {offsets = [0, 256], sizes = [8, 128], strides = [1, 1]} : vector<8x384xf32> to vector<8x128xf32>
    %163 = arith.mulf %152, %162 : vector<8x128xf32>
    %164 = arith.addf %161, %163 : vector<8x128xf32>
    %165 = math.tanh %164 : vector<8x128xf32>
    %cst_49 = arith.constant 1.000000e+00 : f32
    %166 = vector.broadcast %cst_49 : f32 to vector<8x128xf32>
    %167 = arith.subf %166, %160 : vector<8x128xf32>
    %168 = arith.mulf %167, %165 : vector<8x128xf32>
    %169 = arith.mulf %160, %137 : vector<8x128xf32>
    %170 = arith.addf %168, %169 : vector<8x128xf32>
    %171 = vector.broadcast %c3_i32 : i32 to vector<8x1xi32>
    %172 = arith.cmpi sgt, %14, %171 : vector<8x1xi32>
    %173 = vector.shape_cast %172 : vector<8x1xi1> to vector<8x1xi1>
    %174 = vector.broadcast %173 : vector<8x1xi1> to vector<8x128xi1>
    %175 = arith.select %174, %170, %137 : vector<8x128xi1>, vector<8x128xf32>
    %c4_i32 = arith.constant 4 : i32
    %176 = arith.truncf %175 : vector<8x128xf32> to vector<8x128xbf16>
    %cst_50 = arith.constant dense<0.000000e+00> : vector<8x384xf32>
    %177 = tpu.matmul %176, %15, %cst_50 {dimension_numbers = #tpu.dot_dimension_numbers<[1], [0], [0], [1], [0, 0, 1, 1], [], []>} : vector<8x128xbf16>, vector<128x384xbf16>, vector<8x384xf32> -> vector<8x384xf32>
    %178 = arith.addf %177, %19 : vector<8x384xf32>
    %c8_i32_51 = arith.constant 8 : i32
    %179 = arith.muli %c4_i32, %c8_i32_51 : i32
    %180 = tpu.assume_multiple %179, 8 : i32
    %181 = arith.index_cast %180 : i32 to index
    %c0_52 = arith.constant 0 : index
    %182 = vector.load %arg22[%181, %c0_52] : memref<64x384xf32, #tpu.memory_space<vmem>>, vector<8x384xf32>
    %183 = vector.extract_strided_slice %182 {offsets = [0, 0], sizes = [8, 128], strides = [1, 1]} : vector<8x384xf32> to vector<8x128xf32>
    %184 = vector.extract_strided_slice %178 {offsets = [0, 0], sizes = [8, 128], strides = [1, 1]} : vector<8x384xf32> to vector<8x128xf32>
    %185 = arith.addf %183, %184 : vector<8x128xf32>
    %186 = arith.negf %185 : vector<8x128xf32>
    %187 = math.exp %186 : vector<8x128xf32>
    %cst_53 = arith.constant 1.000000e+00 : f32
    %188 = vector.broadcast %cst_53 : f32 to vector<8x128xf32>
    %189 = arith.addf %188, %187 : vector<8x128xf32>
    %190 = arith.divf %188, %189 : vector<8x128xf32>
    %191 = vector.extract_strided_slice %182 {offsets = [0, 128], sizes = [8, 128], strides = [1, 1]} : vector<8x384xf32> to vector<8x128xf32>
    %192 = vector.extract_strided_slice %178 {offsets = [0, 128], sizes = [8, 128], strides = [1, 1]} : vector<8x384xf32> to vector<8x128xf32>
    %193 = arith.addf %191, %192 : vector<8x128xf32>
    %194 = arith.negf %193 : vector<8x128xf32>
    %195 = math.exp %194 : vector<8x128xf32>
    %cst_54 = arith.constant 1.000000e+00 : f32
    %196 = vector.broadcast %cst_54 : f32 to vector<8x128xf32>
    %197 = arith.addf %196, %195 : vector<8x128xf32>
    %198 = arith.divf %196, %197 : vector<8x128xf32>
    %199 = vector.extract_strided_slice %182 {offsets = [0, 256], sizes = [8, 128], strides = [1, 1]} : vector<8x384xf32> to vector<8x128xf32>
    %200 = vector.extract_strided_slice %178 {offsets = [0, 256], sizes = [8, 128], strides = [1, 1]} : vector<8x384xf32> to vector<8x128xf32>
    %201 = arith.mulf %190, %200 : vector<8x128xf32>
    %202 = arith.addf %199, %201 : vector<8x128xf32>
    %203 = math.tanh %202 : vector<8x128xf32>
    %cst_55 = arith.constant 1.000000e+00 : f32
    %204 = vector.broadcast %cst_55 : f32 to vector<8x128xf32>
    %205 = arith.subf %204, %198 : vector<8x128xf32>
    %206 = arith.mulf %205, %203 : vector<8x128xf32>
    %207 = arith.mulf %198, %175 : vector<8x128xf32>
    %208 = arith.addf %206, %207 : vector<8x128xf32>
    %209 = vector.broadcast %c4_i32 : i32 to vector<8x1xi32>
    %210 = arith.cmpi sgt, %14, %209 : vector<8x1xi32>
    %211 = vector.shape_cast %210 : vector<8x1xi1> to vector<8x1xi1>
    %212 = vector.broadcast %211 : vector<8x1xi1> to vector<8x128xi1>
    %213 = arith.select %212, %208, %175 : vector<8x128xi1>, vector<8x128xf32>
    %c5_i32 = arith.constant 5 : i32
    %214 = arith.truncf %213 : vector<8x128xf32> to vector<8x128xbf16>
    %cst_56 = arith.constant dense<0.000000e+00> : vector<8x384xf32>
    %215 = tpu.matmul %214, %15, %cst_56 {dimension_numbers = #tpu.dot_dimension_numbers<[1], [0], [0], [1], [0, 0, 1, 1], [], []>} : vector<8x128xbf16>, vector<128x384xbf16>, vector<8x384xf32> -> vector<8x384xf32>
    %216 = arith.addf %215, %19 : vector<8x384xf32>
    %c8_i32_57 = arith.constant 8 : i32
    %217 = arith.muli %c5_i32, %c8_i32_57 : i32
    %218 = tpu.assume_multiple %217, 8 : i32
    %219 = arith.index_cast %218 : i32 to index
    %c0_58 = arith.constant 0 : index
    %220 = vector.load %arg22[%219, %c0_58] : memref<64x384xf32, #tpu.memory_space<vmem>>, vector<8x384xf32>
    %221 = vector.extract_strided_slice %220 {offsets = [0, 0], sizes = [8, 128], strides = [1, 1]} : vector<8x384xf32> to vector<8x128xf32>
    %222 = vector.extract_strided_slice %216 {offsets = [0, 0], sizes = [8, 128], strides = [1, 1]} : vector<8x384xf32> to vector<8x128xf32>
    %223 = arith.addf %221, %222 : vector<8x128xf32>
    %224 = arith.negf %223 : vector<8x128xf32>
    %225 = math.exp %224 : vector<8x128xf32>
    %cst_59 = arith.constant 1.000000e+00 : f32
    %226 = vector.broadcast %cst_59 : f32 to vector<8x128xf32>
    %227 = arith.addf %226, %225 : vector<8x128xf32>
    %228 = arith.divf %226, %227 : vector<8x128xf32>
    %229 = vector.extract_strided_slice %220 {offsets = [0, 128], sizes = [8, 128], strides = [1, 1]} : vector<8x384xf32> to vector<8x128xf32>
    %230 = vector.extract_strided_slice %216 {offsets = [0, 128], sizes = [8, 128], strides = [1, 1]} : vector<8x384xf32> to vector<8x128xf32>
    %231 = arith.addf %229, %230 : vector<8x128xf32>
    %232 = arith.negf %231 : vector<8x128xf32>
    %233 = math.exp %232 : vector<8x128xf32>
    %cst_60 = arith.constant 1.000000e+00 : f32
    %234 = vector.broadcast %cst_60 : f32 to vector<8x128xf32>
    %235 = arith.addf %234, %233 : vector<8x128xf32>
    %236 = arith.divf %234, %235 : vector<8x128xf32>
    %237 = vector.extract_strided_slice %220 {offsets = [0, 256], sizes = [8, 128], strides = [1, 1]} : vector<8x384xf32> to vector<8x128xf32>
    %238 = vector.extract_strided_slice %216 {offsets = [0, 256], sizes = [8, 128], strides = [1, 1]} : vector<8x384xf32> to vector<8x128xf32>
    %239 = arith.mulf %228, %238 : vector<8x128xf32>
    %240 = arith.addf %237, %239 : vector<8x128xf32>
    %241 = math.tanh %240 : vector<8x128xf32>
    %cst_61 = arith.constant 1.000000e+00 : f32
    %242 = vector.broadcast %cst_61 : f32 to vector<8x128xf32>
    %243 = arith.subf %242, %236 : vector<8x128xf32>
    %244 = arith.mulf %243, %241 : vector<8x128xf32>
    %245 = arith.mulf %236, %213 : vector<8x128xf32>
    %246 = arith.addf %244, %245 : vector<8x128xf32>
    %247 = vector.broadcast %c5_i32 : i32 to vector<8x1xi32>
    %248 = arith.cmpi sgt, %14, %247 : vector<8x1xi32>
    %249 = vector.shape_cast %248 : vector<8x1xi1> to vector<8x1xi1>
    %250 = vector.broadcast %249 : vector<8x1xi1> to vector<8x128xi1>
    %251 = arith.select %250, %246, %213 : vector<8x128xi1>, vector<8x128xf32>
    %c6_i32 = arith.constant 6 : i32
    %252 = arith.truncf %251 : vector<8x128xf32> to vector<8x128xbf16>
    %cst_62 = arith.constant dense<0.000000e+00> : vector<8x384xf32>
    %253 = tpu.matmul %252, %15, %cst_62 {dimension_numbers = #tpu.dot_dimension_numbers<[1], [0], [0], [1], [0, 0, 1, 1], [], []>} : vector<8x128xbf16>, vector<128x384xbf16>, vector<8x384xf32> -> vector<8x384xf32>
    %254 = arith.addf %253, %19 : vector<8x384xf32>
    %c8_i32_63 = arith.constant 8 : i32
    %255 = arith.muli %c6_i32, %c8_i32_63 : i32
    %256 = tpu.assume_multiple %255, 8 : i32
    %257 = arith.index_cast %256 : i32 to index
    %c0_64 = arith.constant 0 : index
    %258 = vector.load %arg22[%257, %c0_64] : memref<64x384xf32, #tpu.memory_space<vmem>>, vector<8x384xf32>
    %259 = vector.extract_strided_slice %258 {offsets = [0, 0], sizes = [8, 128], strides = [1, 1]} : vector<8x384xf32> to vector<8x128xf32>
    %260 = vector.extract_strided_slice %254 {offsets = [0, 0], sizes = [8, 128], strides = [1, 1]} : vector<8x384xf32> to vector<8x128xf32>
    %261 = arith.addf %259, %260 : vector<8x128xf32>
    %262 = arith.negf %261 : vector<8x128xf32>
    %263 = math.exp %262 : vector<8x128xf32>
    %cst_65 = arith.constant 1.000000e+00 : f32
    %264 = vector.broadcast %cst_65 : f32 to vector<8x128xf32>
    %265 = arith.addf %264, %263 : vector<8x128xf32>
    %266 = arith.divf %264, %265 : vector<8x128xf32>
    %267 = vector.extract_strided_slice %258 {offsets = [0, 128], sizes = [8, 128], strides = [1, 1]} : vector<8x384xf32> to vector<8x128xf32>
    %268 = vector.extract_strided_slice %254 {offsets = [0, 128], sizes = [8, 128], strides = [1, 1]} : vector<8x384xf32> to vector<8x128xf32>
    %269 = arith.addf %267, %268 : vector<8x128xf32>
    %270 = arith.negf %269 : vector<8x128xf32>
    %271 = math.exp %270 : vector<8x128xf32>
    %cst_66 = arith.constant 1.000000e+00 : f32
    %272 = vector.broadcast %cst_66 : f32 to vector<8x128xf32>
    %273 = arith.addf %272, %271 : vector<8x128xf32>
    %274 = arith.divf %272, %273 : vector<8x128xf32>
    %275 = vector.extract_strided_slice %258 {offsets = [0, 256], sizes = [8, 128], strides = [1, 1]} : vector<8x384xf32> to vector<8x128xf32>
    %276 = vector.extract_strided_slice %254 {offsets = [0, 256], sizes = [8, 128], strides = [1, 1]} : vector<8x384xf32> to vector<8x128xf32>
    %277 = arith.mulf %266, %276 : vector<8x128xf32>
    %278 = arith.addf %275, %277 : vector<8x128xf32>
    %279 = math.tanh %278 : vector<8x128xf32>
    %cst_67 = arith.constant 1.000000e+00 : f32
    %280 = vector.broadcast %cst_67 : f32 to vector<8x128xf32>
    %281 = arith.subf %280, %274 : vector<8x128xf32>
    %282 = arith.mulf %281, %279 : vector<8x128xf32>
    %283 = arith.mulf %274, %251 : vector<8x128xf32>
    %284 = arith.addf %282, %283 : vector<8x128xf32>
    %285 = vector.broadcast %c6_i32 : i32 to vector<8x1xi32>
    %286 = arith.cmpi sgt, %14, %285 : vector<8x1xi32>
    %287 = vector.shape_cast %286 : vector<8x1xi1> to vector<8x1xi1>
    %288 = vector.broadcast %287 : vector<8x1xi1> to vector<8x128xi1>
    %289 = arith.select %288, %284, %251 : vector<8x128xi1>, vector<8x128xf32>
    %c7_i32 = arith.constant 7 : i32
    %290 = arith.truncf %289 : vector<8x128xf32> to vector<8x128xbf16>
    %cst_68 = arith.constant dense<0.000000e+00> : vector<8x384xf32>
    %291 = tpu.matmul %290, %15, %cst_68 {dimension_numbers = #tpu.dot_dimension_numbers<[1], [0], [0], [1], [0, 0, 1, 1], [], []>} : vector<8x128xbf16>, vector<128x384xbf16>, vector<8x384xf32> -> vector<8x384xf32>
    %292 = arith.addf %291, %19 : vector<8x384xf32>
    %c8_i32_69 = arith.constant 8 : i32
    %293 = arith.muli %c7_i32, %c8_i32_69 : i32
    %294 = tpu.assume_multiple %293, 8 : i32
    %295 = arith.index_cast %294 : i32 to index
    %c0_70 = arith.constant 0 : index
    %296 = vector.load %arg22[%295, %c0_70] : memref<64x384xf32, #tpu.memory_space<vmem>>, vector<8x384xf32>
    %297 = vector.extract_strided_slice %296 {offsets = [0, 0], sizes = [8, 128], strides = [1, 1]} : vector<8x384xf32> to vector<8x128xf32>
    %298 = vector.extract_strided_slice %292 {offsets = [0, 0], sizes = [8, 128], strides = [1, 1]} : vector<8x384xf32> to vector<8x128xf32>
    %299 = arith.addf %297, %298 : vector<8x128xf32>
    %300 = arith.negf %299 : vector<8x128xf32>
    %301 = math.exp %300 : vector<8x128xf32>
    %cst_71 = arith.constant 1.000000e+00 : f32
    %302 = vector.broadcast %cst_71 : f32 to vector<8x128xf32>
    %303 = arith.addf %302, %301 : vector<8x128xf32>
    %304 = arith.divf %302, %303 : vector<8x128xf32>
    %305 = vector.extract_strided_slice %296 {offsets = [0, 128], sizes = [8, 128], strides = [1, 1]} : vector<8x384xf32> to vector<8x128xf32>
    %306 = vector.extract_strided_slice %292 {offsets = [0, 128], sizes = [8, 128], strides = [1, 1]} : vector<8x384xf32> to vector<8x128xf32>
    %307 = arith.addf %305, %306 : vector<8x128xf32>
    %308 = arith.negf %307 : vector<8x128xf32>
    %309 = math.exp %308 : vector<8x128xf32>
    %cst_72 = arith.constant 1.000000e+00 : f32
    %310 = vector.broadcast %cst_72 : f32 to vector<8x128xf32>
    %311 = arith.addf %310, %309 : vector<8x128xf32>
    %312 = arith.divf %310, %311 : vector<8x128xf32>
    %313 = vector.extract_strided_slice %296 {offsets = [0, 256], sizes = [8, 128], strides = [1, 1]} : vector<8x384xf32> to vector<8x128xf32>
    %314 = vector.extract_strided_slice %292 {offsets = [0, 256], sizes = [8, 128], strides = [1, 1]} : vector<8x384xf32> to vector<8x128xf32>
    %315 = arith.mulf %304, %314 : vector<8x128xf32>
    %316 = arith.addf %313, %315 : vector<8x128xf32>
    %317 = math.tanh %316 : vector<8x128xf32>
    %cst_73 = arith.constant 1.000000e+00 : f32
    %318 = vector.broadcast %cst_73 : f32 to vector<8x128xf32>
    %319 = arith.subf %318, %312 : vector<8x128xf32>
    %320 = arith.mulf %319, %317 : vector<8x128xf32>
    %321 = arith.mulf %312, %289 : vector<8x128xf32>
    %322 = arith.addf %320, %321 : vector<8x128xf32>
    %323 = vector.broadcast %c7_i32 : i32 to vector<8x1xi32>
    %324 = arith.cmpi sgt, %14, %323 : vector<8x1xi32>
    %325 = vector.shape_cast %324 : vector<8x1xi1> to vector<8x1xi1>
    %326 = vector.broadcast %325 : vector<8x1xi1> to vector<8x128xi1>
    %327 = arith.select %326, %322, %289 : vector<8x128xi1>, vector<8x128xf32>
    %c8_i32_74 = arith.constant 8 : i32
    %328 = arith.truncf %327 : vector<8x128xf32> to vector<8x128xbf16>
    %c0_75 = arith.constant 0 : index
    %c0_76 = arith.constant 0 : index
    %329 = vector.load %arg12[%c0_75, %c0_76] : memref<128x256xbf16, #tpu.memory_space<vmem>>, vector<128x256xbf16>
    %cst_77 = arith.constant dense<0.000000e+00> : vector<8x256xf32>
    %330 = tpu.matmul %328, %329, %cst_77 {dimension_numbers = #tpu.dot_dimension_numbers<[1], [0], [0], [1], [0, 0, 1, 1], [], []>} : vector<8x128xbf16>, vector<128x256xbf16>, vector<8x256xf32> -> vector<8x256xf32>
    %c0_78 = arith.constant 0 : index
    %c0_79 = arith.constant 0 : index
    %331 = vector.load %arg13[%c0_78, %c0_79] : memref<1x256xf32, #tpu.memory_space<vmem>>, vector<1x256xf32>
    %332 = vector.broadcast %331 : vector<1x256xf32> to vector<8x256xf32>
    %333 = arith.addf %330, %332 : vector<8x256xf32>
    %334 = vector.extract_strided_slice %333 {offsets = [0, 0], sizes = [8, 128], strides = [1, 1]} : vector<8x256xf32> to vector<8x128xf32>
    %335 = vector.extract_strided_slice %333 {offsets = [0, 128], sizes = [8, 128], strides = [1, 1]} : vector<8x256xf32> to vector<8x128xf32>
    %cst_80 = arith.constant 5.000000e-01 : f32
    %336 = vector.broadcast %cst_80 : f32 to vector<8x128xf32>
    %337 = arith.mulf %336, %335 : vector<8x128xf32>
    %338 = math.exp %337 : vector<8x128xf32>
    %c0_81 = arith.constant 0 : index
    %c0_82 = arith.constant 0 : index
    %339 = vector.load %arg14[%c0_81, %c0_82] : memref<8x128xf32, #tpu.memory_space<vmem>>, vector<8x128xf32>
    %340 = arith.mulf %338, %339 : vector<8x128xf32>
    %341 = arith.addf %334, %340 : vector<8x128xf32>
    %c0_83 = arith.constant 0 : index
    %c0_84 = arith.constant 0 : index
    %342 = vector.load %arg19[%c0_83, %c0_84] : memref<8x128xf32, #tpu.memory_space<vmem>>, vector<8x128xf32>
    tpu.vector_store %arg19[%c0_83, %c0_84], %341 {strides = array<i32>} : memref<8x128xf32, #tpu.memory_space<vmem>>, vector<8x128xf32>,
    %c0_85 = arith.constant 0 : index
    %c0_86 = arith.constant 0 : index
    %343 = vector.load %arg15[%c0_85, %c0_86] : memref<8x128xf32, #tpu.memory_space<vmem>>, vector<8x128xf32>
    %c0_87 = arith.constant 0 : index
    %c0_88 = arith.constant 0 : index
    %344 = vector.load %arg16[%c0_87, %c0_88] : memref<8x128xf32, #tpu.memory_space<vmem>>, vector<8x128xf32>
    %cst_89 = arith.constant 0.000000e+00 : f32
    %345 = vector.broadcast %cst_89 : f32 to vector<8x128xf32>
    %346 = arith.subf %345, %344 : vector<8x128xf32>
    %347 = math.exp %346 : vector<8x128xf32>
    %348 = vector.shape_cast %347 : vector<8x128xf32> to vector<1x8x128xf32>
    %349 = vector.shape_cast %341 : vector<8x128xf32> to vector<8x1x128xf32>
    %350 = vector.shape_cast %343 : vector<8x128xf32> to vector<1x8x128xf32>
    %351 = vector.broadcast %349 : vector<8x1x128xf32> to vector<8x8x128xf32>
    %352 = vector.broadcast %350 : vector<1x8x128xf32> to vector<8x8x128xf32>
    %353 = arith.subf %351, %352 : vector<8x8x128xf32>
    %354 = arith.mulf %353, %353 : vector<8x8x128xf32>
    %355 = vector.broadcast %348 : vector<1x8x128xf32> to vector<8x8x128xf32>
    %356 = arith.mulf %354, %355 : vector<8x8x128xf32>
    %cst_90 = arith.constant dense<0.000000e+00> : vector<8x8xf32>
    %357 = vector.multi_reduction <add>, %356, %cst_90 [2] : vector<8x8x128xf32> to vector<8x8xf32>
    %cst_91 = arith.constant 0.000000e+00 : f32
    %358 = vector.broadcast %cst_91 : f32 to vector<8x8xf32>
    %359 = arith.subf %358, %357 : vector<8x8xf32>
    %cst_92 = arith.constant dense<0xFF800000> : vector<8xf32>
    %360 = vector.multi_reduction <maximumf>, %359, %cst_92 [1] : vector<8x8xf32> to vector<8xf32>
    %361 = vector.shape_cast %360 : vector<8xf32> to vector<8x1xf32>
    %362 = vector.broadcast %361 : vector<8x1xf32> to vector<8x8xf32>
    %363 = arith.subf %359, %362 : vector<8x8xf32>
    %364 = math.exp %363 : vector<8x8xf32>
    %cst_93 = arith.constant dense<0.000000e+00> : vector<8xf32>
    %365 = vector.multi_reduction <add>, %364, %cst_93 [1] : vector<8x8xf32> to vector<8xf32>
    %366 = vector.shape_cast %365 : vector<8xf32> to vector<8x1xf32>
    %367 = vector.broadcast %366 : vector<8x1xf32> to vector<8x8xf32>
    %368 = arith.divf %364, %367 : vector<8x8xf32>
    %cst_94 = arith.constant 1.000000e-10 : f32
    %369 = vector.broadcast %cst_94 : f32 to vector<8x8xf32>
    %370 = arith.addf %368, %369 : vector<8x8xf32>
    %371 = vector.shape_cast %344 : vector<8x128xf32> to vector<1x8x128xf32>
    %372 = math.exp %335 : vector<8x128xf32>
    %373 = vector.shape_cast %372 : vector<8x128xf32> to vector<8x1x128xf32>
    %374 = vector.broadcast %373 : vector<8x1x128xf32> to vector<8x8x128xf32>
    %375 = vector.broadcast %348 : vector<1x8x128xf32> to vector<8x8x128xf32>
    %376 = arith.mulf %374, %375 : vector<8x8x128xf32>
    %377 = vector.broadcast %371 : vector<1x8x128xf32> to vector<8x8x128xf32>
    %378 = arith.addf %377, %376 : vector<8x8x128xf32>
    %379 = vector.shape_cast %334 : vector<8x128xf32> to vector<8x1x128xf32>
    %380 = vector.shape_cast %343 : vector<8x128xf32> to vector<1x8x128xf32>
    %381 = vector.broadcast %379 : vector<8x1x128xf32> to vector<8x8x128xf32>
    %382 = vector.broadcast %380 : vector<1x8x128xf32> to vector<8x8x128xf32>
    %383 = arith.subf %381, %382 : vector<8x8x128xf32>
    %384 = arith.mulf %383, %383 : vector<8x8x128xf32>
    %385 = vector.broadcast %348 : vector<1x8x128xf32> to vector<8x8x128xf32>
    %386 = arith.mulf %384, %385 : vector<8x8x128xf32>
    %387 = arith.addf %378, %386 : vector<8x8x128xf32>
    %cst_95 = arith.constant dense<0.000000e+00> : vector<8x8xf32>
    %388 = vector.multi_reduction <add>, %387, %cst_95 [2] : vector<8x8x128xf32> to vector<8x8xf32>
    %cst_96 = arith.constant 1.280000e+02 : f32
    %389 = vector.broadcast %cst_96 : f32 to vector<8x8xf32>
    %390 = arith.divf %388, %389 : vector<8x8xf32>
    %391 = arith.mulf %370, %390 : vector<8x8xf32>
    %cst_97 = arith.constant dense<0.000000e+00> : vector<8xf32>
    %392 = vector.multi_reduction <add>, %391, %cst_97 [1] : vector<8x8xf32> to vector<8xf32>
    %393 = vector.shape_cast %392 : vector<8xf32> to vector<8x1xf32>
    %cst_98 = arith.constant 5.000000e-01 : f32
    %394 = vector.broadcast %cst_98 : f32 to vector<8x1xf32>
    %395 = arith.mulf %394, %393 : vector<8x1xf32>
    %cst_99 = arith.constant 1.000000e+00 : f32
    %396 = vector.broadcast %cst_99 : f32 to vector<8x128xf32>
    %397 = arith.addf %396, %335 : vector<8x128xf32>
    %cst_100 = arith.constant dense<0.000000e+00> : vector<8xf32>
    %398 = vector.multi_reduction <add>, %397, %cst_100 [1] : vector<8x128xf32> to vector<8xf32>
    %399 = vector.shape_cast %398 : vector<8xf32> to vector<8x1xf32>
    %cst_101 = arith.constant 1.280000e+02 : f32
    %400 = vector.broadcast %cst_101 : f32 to vector<8x1xf32>
    %401 = arith.divf %399, %400 : vector<8x1xf32>
    %cst_102 = arith.constant 5.000000e-01 : f32
    %402 = vector.broadcast %cst_102 : f32 to vector<8x1xf32>
    %403 = arith.mulf %402, %401 : vector<8x1xf32>
    %404 = arith.subf %395, %403 : vector<8x1xf32>
    %cst_103 = arith.constant 0.000000e+00 : f32
    %405 = vector.broadcast %cst_103 : f32 to vector<8x119xf32>
    %406 = tpu.concatenate %370, %404, %405 in 1 : vector<8x8xf32>, vector<8x1xf32>, vector<8x119xf32> -> vector<8x128xf32>
    %c0_104 = arith.constant 0 : index
    %c0_105 = arith.constant 0 : index
    %407 = vector.load %arg20[%c0_104, %c0_105] : memref<8x128xf32, #tpu.memory_space<vmem>>, vector<8x128xf32>
    tpu.vector_store %arg20[%c0_104, %c0_105], %406 {strides = array<i32>} : memref<8x128xf32, #tpu.memory_space<vmem>>, vector<8x128xf32>,
    %c0_i32_106 = arith.constant 0 : i32
    %408 = arith.truncf %341 : vector<8x128xf32> to vector<8x128xbf16>
    %cst_107 = arith.constant dense<0.000000e+00> : vector<8x384xf32>
    %409 = tpu.matmul %408, %16, %cst_107 {dimension_numbers = #tpu.dot_dimension_numbers<[1], [0], [0], [1], [0, 0, 1, 1], [], []>} : vector<8x128xbf16>, vector<128x384xbf16>, vector<8x384xf32> -> vector<8x384xf32>
    %410 = arith.addf %409, %22 : vector<8x384xf32>
    %c8_i32_108 = arith.constant 8 : i32
    %411 = arith.muli %c0_i32_106, %c8_i32_108 : i32
    %412 = tpu.assume_multiple %411, 8 : i32
    %413 = arith.index_cast %412 : i32 to index
    %c0_109 = arith.constant 0 : index
    %414 = vector.load %arg23[%413, %c0_109] : memref<72x384xf32, #tpu.memory_space<vmem>>, vector<8x384xf32>
    %415 = vector.extract_strided_slice %414 {offsets = [0, 0], sizes = [8, 128], strides = [1, 1]} : vector<8x384xf32> to vector<8x128xf32>
    %416 = vector.extract_strided_slice %410 {offsets = [0, 0], sizes = [8, 128], strides = [1, 1]} : vector<8x384xf32> to vector<8x128xf32>
    %417 = arith.addf %415, %416 : vector<8x128xf32>
    %418 = arith.negf %417 : vector<8x128xf32>
    %419 = math.exp %418 : vector<8x128xf32>
    %cst_110 = arith.constant 1.000000e+00 : f32
    %420 = vector.broadcast %cst_110 : f32 to vector<8x128xf32>
    %421 = arith.addf %420, %419 : vector<8x128xf32>
    %422 = arith.divf %420, %421 : vector<8x128xf32>
    %423 = vector.extract_strided_slice %414 {offsets = [0, 128], sizes = [8, 128], strides = [1, 1]} : vector<8x384xf32> to vector<8x128xf32>
    %424 = vector.extract_strided_slice %410 {offsets = [0, 128], sizes = [8, 128], strides = [1, 1]} : vector<8x384xf32> to vector<8x128xf32>
    %425 = arith.addf %423, %424 : vector<8x128xf32>
    %426 = arith.negf %425 : vector<8x128xf32>
    %427 = math.exp %426 : vector<8x128xf32>
    %cst_111 = arith.constant 1.000000e+00 : f32
    %428 = vector.broadcast %cst_111 : f32 to vector<8x128xf32>
    %429 = arith.addf %428, %427 : vector<8x128xf32>
    %430 = arith.divf %428, %429 : vector<8x128xf32>
    %431 = vector.extract_strided_slice %414 {offsets = [0, 256], sizes = [8, 128], strides = [1, 1]} : vector<8x384xf32> to vector<8x128xf32>
    %432 = vector.extract_strided_slice %410 {offsets = [0, 256], sizes = [8, 128], strides = [1, 1]} : vector<8x384xf32> to vector<8x128xf32>
    %433 = arith.mulf %422, %432 : vector<8x128xf32>
    %434 = arith.addf %431, %433 : vector<8x128xf32>
    %435 = math.tanh %434 : vector<8x128xf32>
    %cst_112 = arith.constant 1.000000e+00 : f32
    %436 = vector.broadcast %cst_112 : f32 to vector<8x128xf32>
    %437 = arith.subf %436, %430 : vector<8x128xf32>
    %438 = arith.mulf %437, %435 : vector<8x128xf32>
    %439 = arith.mulf %430, %341 : vector<8x128xf32>
    %440 = arith.addf %438, %439 : vector<8x128xf32>
    %441 = vector.broadcast %c0_i32_106 : i32 to vector<8x1xi32>
    %442 = arith.cmpi sge, %14, %441 : vector<8x1xi32>
    %cst_113 = arith.constant 0.000000e+00 : f32
    %443 = vector.shape_cast %442 : vector<8x1xi1> to vector<8x1xi1>
    %444 = vector.broadcast %443 : vector<8x1xi1> to vector<8x128xi1>
    %445 = vector.broadcast %cst_113 : f32 to vector<8x128xf32>
    %446 = arith.select %444, %440, %445 : vector<8x128xi1>, vector<8x128xf32>
    %c8_i32_114 = arith.constant 8 : i32
    %447 = arith.muli %c0_i32_106, %c8_i32_114 : i32
    %448 = tpu.assume_multiple %447, 8 : i32
    %449 = arith.index_cast %448 : i32 to index
    %c0_115 = arith.constant 0 : index
    %450 = vector.load %arg24[%449, %c0_115] : memref<72x128xf32, #tpu.memory_space<vmem>>, vector<8x128xf32>
    tpu.vector_store %arg24[%449, %c0_115], %446 {strides = array<i32>} : memref<72x128xf32, #tpu.memory_space<vmem>>, vector<8x128xf32>,
    %451 = vector.shape_cast %442 : vector<8x1xi1> to vector<8x1xi1>
    %452 = vector.broadcast %451 : vector<8x1xi1> to vector<8x128xi1>
    %453 = arith.select %452, %440, %341 : vector<8x128xi1>, vector<8x128xf32>
    %c1_i32_116 = arith.constant 1 : i32
    %454 = arith.truncf %453 : vector<8x128xf32> to vector<8x128xbf16>
    %cst_117 = arith.constant dense<0.000000e+00> : vector<8x384xf32>
    %455 = tpu.matmul %454, %16, %cst_117 {dimension_numbers = #tpu.dot_dimension_numbers<[1], [0], [0], [1], [0, 0, 1, 1], [], []>} : vector<8x128xbf16>, vector<128x384xbf16>, vector<8x384xf32> -> vector<8x384xf32>
    %456 = arith.addf %455, %22 : vector<8x384xf32>
    %c8_i32_118 = arith.constant 8 : i32
    %457 = arith.muli %c1_i32_116, %c8_i32_118 : i32
    %458 = tpu.assume_multiple %457, 8 : i32
    %459 = arith.index_cast %458 : i32 to index
    %c0_119 = arith.constant 0 : index
    %460 = vector.load %arg23[%459, %c0_119] : memref<72x384xf32, #tpu.memory_space<vmem>>, vector<8x384xf32>
    %461 = vector.extract_strided_slice %460 {offsets = [0, 0], sizes = [8, 128], strides = [1, 1]} : vector<8x384xf32> to vector<8x128xf32>
    %462 = vector.extract_strided_slice %456 {offsets = [0, 0], sizes = [8, 128], strides = [1, 1]} : vector<8x384xf32> to vector<8x128xf32>
    %463 = arith.addf %461, %462 : vector<8x128xf32>
    %464 = arith.negf %463 : vector<8x128xf32>
    %465 = math.exp %464 : vector<8x128xf32>
    %cst_120 = arith.constant 1.000000e+00 : f32
    %466 = vector.broadcast %cst_120 : f32 to vector<8x128xf32>
    %467 = arith.addf %466, %465 : vector<8x128xf32>
    %468 = arith.divf %466, %467 : vector<8x128xf32>
    %469 = vector.extract_strided_slice %460 {offsets = [0, 128], sizes = [8, 128], strides = [1, 1]} : vector<8x384xf32> to vector<8x128xf32>
    %470 = vector.extract_strided_slice %456 {offsets = [0, 128], sizes = [8, 128], strides = [1, 1]} : vector<8x384xf32> to vector<8x128xf32>
    %471 = arith.addf %469, %470 : vector<8x128xf32>
    %472 = arith.negf %471 : vector<8x128xf32>
    %473 = math.exp %472 : vector<8x128xf32>
    %cst_121 = arith.constant 1.000000e+00 : f32
    %474 = vector.broadcast %cst_121 : f32 to vector<8x128xf32>
    %475 = arith.addf %474, %473 : vector<8x128xf32>
    %476 = arith.divf %474, %475 : vector<8x128xf32>
    %477 = vector.extract_strided_slice %460 {offsets = [0, 256], sizes = [8, 128], strides = [1, 1]} : vector<8x384xf32> to vector<8x128xf32>
    %478 = vector.extract_strided_slice %456 {offsets = [0, 256], sizes = [8, 128], strides = [1, 1]} : vector<8x384xf32> to vector<8x128xf32>
    %479 = arith.mulf %468, %478 : vector<8x128xf32>
    %480 = arith.addf %477, %479 : vector<8x128xf32>
    %481 = math.tanh %480 : vector<8x128xf32>
    %cst_122 = arith.constant 1.000000e+00 : f32
    %482 = vector.broadcast %cst_122 : f32 to vector<8x128xf32>
    %483 = arith.subf %482, %476 : vector<8x128xf32>
    %484 = arith.mulf %483, %481 : vector<8x128xf32>
    %485 = arith.mulf %476, %453 : vector<8x128xf32>
    %486 = arith.addf %484, %485 : vector<8x128xf32>
    %487 = vector.broadcast %c1_i32_116 : i32 to vector<8x1xi32>
    %488 = arith.cmpi sge, %14, %487 : vector<8x1xi32>
    %cst_123 = arith.constant 0.000000e+00 : f32
    %489 = vector.shape_cast %488 : vector<8x1xi1> to vector<8x1xi1>
    %490 = vector.broadcast %489 : vector<8x1xi1> to vector<8x128xi1>
    %491 = vector.broadcast %cst_123 : f32 to vector<8x128xf32>
    %492 = arith.select %490, %486, %491 : vector<8x128xi1>, vector<8x128xf32>
    %c8_i32_124 = arith.constant 8 : i32
    %493 = arith.muli %c1_i32_116, %c8_i32_124 : i32
    %494 = tpu.assume_multiple %493, 8 : i32
    %495 = arith.index_cast %494 : i32 to index
    %c0_125 = arith.constant 0 : index
    %496 = vector.load %arg24[%495, %c0_125] : memref<72x128xf32, #tpu.memory_space<vmem>>, vector<8x128xf32>
    tpu.vector_store %arg24[%495, %c0_125], %492 {strides = array<i32>} : memref<72x128xf32, #tpu.memory_space<vmem>>, vector<8x128xf32>,
    %497 = vector.shape_cast %488 : vector<8x1xi1> to vector<8x1xi1>
    %498 = vector.broadcast %497 : vector<8x1xi1> to vector<8x128xi1>
    %499 = arith.select %498, %486, %453 : vector<8x128xi1>, vector<8x128xf32>
    %c2_i32_126 = arith.constant 2 : i32
    %500 = arith.truncf %499 : vector<8x128xf32> to vector<8x128xbf16>
    %cst_127 = arith.constant dense<0.000000e+00> : vector<8x384xf32>
    %501 = tpu.matmul %500, %16, %cst_127 {dimension_numbers = #tpu.dot_dimension_numbers<[1], [0], [0], [1], [0, 0, 1, 1], [], []>} : vector<8x128xbf16>, vector<128x384xbf16>, vector<8x384xf32> -> vector<8x384xf32>
    %502 = arith.addf %501, %22 : vector<8x384xf32>
    %c8_i32_128 = arith.constant 8 : i32
    %503 = arith.muli %c2_i32_126, %c8_i32_128 : i32
    %504 = tpu.assume_multiple %503, 8 : i32
    %505 = arith.index_cast %504 : i32 to index
    %c0_129 = arith.constant 0 : index
    %506 = vector.load %arg23[%505, %c0_129] : memref<72x384xf32, #tpu.memory_space<vmem>>, vector<8x384xf32>
    %507 = vector.extract_strided_slice %506 {offsets = [0, 0], sizes = [8, 128], strides = [1, 1]} : vector<8x384xf32> to vector<8x128xf32>
    %508 = vector.extract_strided_slice %502 {offsets = [0, 0], sizes = [8, 128], strides = [1, 1]} : vector<8x384xf32> to vector<8x128xf32>
    %509 = arith.addf %507, %508 : vector<8x128xf32>
    %510 = arith.negf %509 : vector<8x128xf32>
    %511 = math.exp %510 : vector<8x128xf32>
    %cst_130 = arith.constant 1.000000e+00 : f32
    %512 = vector.broadcast %cst_130 : f32 to vector<8x128xf32>
    %513 = arith.addf %512, %511 : vector<8x128xf32>
    %514 = arith.divf %512, %513 : vector<8x128xf32>
    %515 = vector.extract_strided_slice %506 {offsets = [0, 128], sizes = [8, 128], strides = [1, 1]} : vector<8x384xf32> to vector<8x128xf32>
    %516 = vector.extract_strided_slice %502 {offsets = [0, 128], sizes = [8, 128], strides = [1, 1]} : vector<8x384xf32> to vector<8x128xf32>
    %517 = arith.addf %515, %516 : vector<8x128xf32>
    %518 = arith.negf %517 : vector<8x128xf32>
    %519 = math.exp %518 : vector<8x128xf32>
    %cst_131 = arith.constant 1.000000e+00 : f32
    %520 = vector.broadcast %cst_131 : f32 to vector<8x128xf32>
    %521 = arith.addf %520, %519 : vector<8x128xf32>
    %522 = arith.divf %520, %521 : vector<8x128xf32>
    %523 = vector.extract_strided_slice %506 {offsets = [0, 256], sizes = [8, 128], strides = [1, 1]} : vector<8x384xf32> to vector<8x128xf32>
    %524 = vector.extract_strided_slice %502 {offsets = [0, 256], sizes = [8, 128], strides = [1, 1]} : vector<8x384xf32> to vector<8x128xf32>
    %525 = arith.mulf %514, %524 : vector<8x128xf32>
    %526 = arith.addf %523, %525 : vector<8x128xf32>
    %527 = math.tanh %526 : vector<8x128xf32>
    %cst_132 = arith.constant 1.000000e+00 : f32
    %528 = vector.broadcast %cst_132 : f32 to vector<8x128xf32>
    %529 = arith.subf %528, %522 : vector<8x128xf32>
    %530 = arith.mulf %529, %527 : vector<8x128xf32>
    %531 = arith.mulf %522, %499 : vector<8x128xf32>
    %532 = arith.addf %530, %531 : vector<8x128xf32>
    %533 = vector.broadcast %c2_i32_126 : i32 to vector<8x1xi32>
    %534 = arith.cmpi sge, %14, %533 : vector<8x1xi32>
    %cst_133 = arith.constant 0.000000e+00 : f32
    %535 = vector.shape_cast %534 : vector<8x1xi1> to vector<8x1xi1>
    %536 = vector.broadcast %535 : vector<8x1xi1> to vector<8x128xi1>
    %537 = vector.broadcast %cst_133 : f32 to vector<8x128xf32>
    %538 = arith.select %536, %532, %537 : vector<8x128xi1>, vector<8x128xf32>
    %c8_i32_134 = arith.constant 8 : i32
    %539 = arith.muli %c2_i32_126, %c8_i32_134 : i32
    %540 = tpu.assume_multiple %539, 8 : i32
    %541 = arith.index_cast %540 : i32 to index
    %c0_135 = arith.constant 0 : index
    %542 = vector.load %arg24[%541, %c0_135] : memref<72x128xf32, #tpu.memory_space<vmem>>, vector<8x128xf32>
    tpu.vector_store %arg24[%541, %c0_135], %538 {strides = array<i32>} : memref<72x128xf32, #tpu.memory_space<vmem>>, vector<8x128xf32>,
    %543 = vector.shape_cast %534 : vector<8x1xi1> to vector<8x1xi1>
    %544 = vector.broadcast %543 : vector<8x1xi1> to vector<8x128xi1>
    %545 = arith.select %544, %532, %499 : vector<8x128xi1>, vector<8x128xf32>
    %c3_i32_136 = arith.constant 3 : i32
    %546 = arith.truncf %545 : vector<8x128xf32> to vector<8x128xbf16>
    %cst_137 = arith.constant dense<0.000000e+00> : vector<8x384xf32>
    %547 = tpu.matmul %546, %16, %cst_137 {dimension_numbers = #tpu.dot_dimension_numbers<[1], [0], [0], [1], [0, 0, 1, 1], [], []>} : vector<8x128xbf16>, vector<128x384xbf16>, vector<8x384xf32> -> vector<8x384xf32>
    %548 = arith.addf %547, %22 : vector<8x384xf32>
    %c8_i32_138 = arith.constant 8 : i32
    %549 = arith.muli %c3_i32_136, %c8_i32_138 : i32
    %550 = tpu.assume_multiple %549, 8 : i32
    %551 = arith.index_cast %550 : i32 to index
    %c0_139 = arith.constant 0 : index
    %552 = vector.load %arg23[%551, %c0_139] : memref<72x384xf32, #tpu.memory_space<vmem>>, vector<8x384xf32>
    %553 = vector.extract_strided_slice %552 {offsets = [0, 0], sizes = [8, 128], strides = [1, 1]} : vector<8x384xf32> to vector<8x128xf32>
    %554 = vector.extract_strided_slice %548 {offsets = [0, 0], sizes = [8, 128], strides = [1, 1]} : vector<8x384xf32> to vector<8x128xf32>
    %555 = arith.addf %553, %554 : vector<8x128xf32>
    %556 = arith.negf %555 : vector<8x128xf32>
    %557 = math.exp %556 : vector<8x128xf32>
    %cst_140 = arith.constant 1.000000e+00 : f32
    %558 = vector.broadcast %cst_140 : f32 to vector<8x128xf32>
    %559 = arith.addf %558, %557 : vector<8x128xf32>
    %560 = arith.divf %558, %559 : vector<8x128xf32>
    %561 = vector.extract_strided_slice %552 {offsets = [0, 128], sizes = [8, 128], strides = [1, 1]} : vector<8x384xf32> to vector<8x128xf32>
    %562 = vector.extract_strided_slice %548 {offsets = [0, 128], sizes = [8, 128], strides = [1, 1]} : vector<8x384xf32> to vector<8x128xf32>
    %563 = arith.addf %561, %562 : vector<8x128xf32>
    %564 = arith.negf %563 : vector<8x128xf32>
    %565 = math.exp %564 : vector<8x128xf32>
    %cst_141 = arith.constant 1.000000e+00 : f32
    %566 = vector.broadcast %cst_141 : f32 to vector<8x128xf32>
    %567 = arith.addf %566, %565 : vector<8x128xf32>
    %568 = arith.divf %566, %567 : vector<8x128xf32>
    %569 = vector.extract_strided_slice %552 {offsets = [0, 256], sizes = [8, 128], strides = [1, 1]} : vector<8x384xf32> to vector<8x128xf32>
    %570 = vector.extract_strided_slice %548 {offsets = [0, 256], sizes = [8, 128], strides = [1, 1]} : vector<8x384xf32> to vector<8x128xf32>
    %571 = arith.mulf %560, %570 : vector<8x128xf32>
    %572 = arith.addf %569, %571 : vector<8x128xf32>
    %573 = math.tanh %572 : vector<8x128xf32>
    %cst_142 = arith.constant 1.000000e+00 : f32
    %574 = vector.broadcast %cst_142 : f32 to vector<8x128xf32>
    %575 = arith.subf %574, %568 : vector<8x128xf32>
    %576 = arith.mulf %575, %573 : vector<8x128xf32>
    %577 = arith.mulf %568, %545 : vector<8x128xf32>
    %578 = arith.addf %576, %577 : vector<8x128xf32>
    %579 = vector.broadcast %c3_i32_136 : i32 to vector<8x1xi32>
    %580 = arith.cmpi sge, %14, %579 : vector<8x1xi32>
    %cst_143 = arith.constant 0.000000e+00 : f32
    %581 = vector.shape_cast %580 : vector<8x1xi1> to vector<8x1xi1>
    %582 = vector.broadcast %581 : vector<8x1xi1> to vector<8x128xi1>
    %583 = vector.broadcast %cst_143 : f32 to vector<8x128xf32>
    %584 = arith.select %582, %578, %583 : vector<8x128xi1>, vector<8x128xf32>
    %c8_i32_144 = arith.constant 8 : i32
    %585 = arith.muli %c3_i32_136, %c8_i32_144 : i32
    %586 = tpu.assume_multiple %585, 8 : i32
    %587 = arith.index_cast %586 : i32 to index
    %c0_145 = arith.constant 0 : index
    %588 = vector.load %arg24[%587, %c0_145] : memref<72x128xf32, #tpu.memory_space<vmem>>, vector<8x128xf32>
    tpu.vector_store %arg24[%587, %c0_145], %584 {strides = array<i32>} : memref<72x128xf32, #tpu.memory_space<vmem>>, vector<8x128xf32>,
    %589 = vector.shape_cast %580 : vector<8x1xi1> to vector<8x1xi1>
    %590 = vector.broadcast %589 : vector<8x1xi1> to vector<8x128xi1>
    %591 = arith.select %590, %578, %545 : vector<8x128xi1>, vector<8x128xf32>
    %c4_i32_146 = arith.constant 4 : i32
    %592 = arith.truncf %591 : vector<8x128xf32> to vector<8x128xbf16>
    %cst_147 = arith.constant dense<0.000000e+00> : vector<8x384xf32>
    %593 = tpu.matmul %592, %16, %cst_147 {dimension_numbers = #tpu.dot_dimension_numbers<[1], [0], [0], [1], [0, 0, 1, 1], [], []>} : vector<8x128xbf16>, vector<128x384xbf16>, vector<8x384xf32> -> vector<8x384xf32>
    %594 = arith.addf %593, %22 : vector<8x384xf32>
    %c8_i32_148 = arith.constant 8 : i32
    %595 = arith.muli %c4_i32_146, %c8_i32_148 : i32
    %596 = tpu.assume_multiple %595, 8 : i32
    %597 = arith.index_cast %596 : i32 to index
    %c0_149 = arith.constant 0 : index
    %598 = vector.load %arg23[%597, %c0_149] : memref<72x384xf32, #tpu.memory_space<vmem>>, vector<8x384xf32>
    %599 = vector.extract_strided_slice %598 {offsets = [0, 0], sizes = [8, 128], strides = [1, 1]} : vector<8x384xf32> to vector<8x128xf32>
    %600 = vector.extract_strided_slice %594 {offsets = [0, 0], sizes = [8, 128], strides = [1, 1]} : vector<8x384xf32> to vector<8x128xf32>
    %601 = arith.addf %599, %600 : vector<8x128xf32>
    %602 = arith.negf %601 : vector<8x128xf32>
    %603 = math.exp %602 : vector<8x128xf32>
    %cst_150 = arith.constant 1.000000e+00 : f32
    %604 = vector.broadcast %cst_150 : f32 to vector<8x128xf32>
    %605 = arith.addf %604, %603 : vector<8x128xf32>
    %606 = arith.divf %604, %605 : vector<8x128xf32>
    %607 = vector.extract_strided_slice %598 {offsets = [0, 128], sizes = [8, 128], strides = [1, 1]} : vector<8x384xf32> to vector<8x128xf32>
    %608 = vector.extract_strided_slice %594 {offsets = [0, 128], sizes = [8, 128], strides = [1, 1]} : vector<8x384xf32> to vector<8x128xf32>
    %609 = arith.addf %607, %608 : vector<8x128xf32>
    %610 = arith.negf %609 : vector<8x128xf32>
    %611 = math.exp %610 : vector<8x128xf32>
    %cst_151 = arith.constant 1.000000e+00 : f32
    %612 = vector.broadcast %cst_151 : f32 to vector<8x128xf32>
    %613 = arith.addf %612, %611 : vector<8x128xf32>
    %614 = arith.divf %612, %613 : vector<8x128xf32>
    %615 = vector.extract_strided_slice %598 {offsets = [0, 256], sizes = [8, 128], strides = [1, 1]} : vector<8x384xf32> to vector<8x128xf32>
    %616 = vector.extract_strided_slice %594 {offsets = [0, 256], sizes = [8, 128], strides = [1, 1]} : vector<8x384xf32> to vector<8x128xf32>
    %617 = arith.mulf %606, %616 : vector<8x128xf32>
    %618 = arith.addf %615, %617 : vector<8x128xf32>
    %619 = math.tanh %618 : vector<8x128xf32>
    %cst_152 = arith.constant 1.000000e+00 : f32
    %620 = vector.broadcast %cst_152 : f32 to vector<8x128xf32>
    %621 = arith.subf %620, %614 : vector<8x128xf32>
    %622 = arith.mulf %621, %619 : vector<8x128xf32>
    %623 = arith.mulf %614, %591 : vector<8x128xf32>
    %624 = arith.addf %622, %623 : vector<8x128xf32>
    %625 = vector.broadcast %c4_i32_146 : i32 to vector<8x1xi32>
    %626 = arith.cmpi sge, %14, %625 : vector<8x1xi32>
    %cst_153 = arith.constant 0.000000e+00 : f32
    %627 = vector.shape_cast %626 : vector<8x1xi1> to vector<8x1xi1>
    %628 = vector.broadcast %627 : vector<8x1xi1> to vector<8x128xi1>
    %629 = vector.broadcast %cst_153 : f32 to vector<8x128xf32>
    %630 = arith.select %628, %624, %629 : vector<8x128xi1>, vector<8x128xf32>
    %c8_i32_154 = arith.constant 8 : i32
    %631 = arith.muli %c4_i32_146, %c8_i32_154 : i32
    %632 = tpu.assume_multiple %631, 8 : i32
    %633 = arith.index_cast %632 : i32 to index
    %c0_155 = arith.constant 0 : index
    %634 = vector.load %arg24[%633, %c0_155] : memref<72x128xf32, #tpu.memory_space<vmem>>, vector<8x128xf32>
    tpu.vector_store %arg24[%633, %c0_155], %630 {strides = array<i32>} : memref<72x128xf32, #tpu.memory_space<vmem>>, vector<8x128xf32>,
    %635 = vector.shape_cast %626 : vector<8x1xi1> to vector<8x1xi1>
    %636 = vector.broadcast %635 : vector<8x1xi1> to vector<8x128xi1>
    %637 = arith.select %636, %624, %591 : vector<8x128xi1>, vector<8x128xf32>
    %c5_i32_156 = arith.constant 5 : i32
    %638 = arith.truncf %637 : vector<8x128xf32> to vector<8x128xbf16>
    %cst_157 = arith.constant dense<0.000000e+00> : vector<8x384xf32>
    %639 = tpu.matmul %638, %16, %cst_157 {dimension_numbers = #tpu.dot_dimension_numbers<[1], [0], [0], [1], [0, 0, 1, 1], [], []>} : vector<8x128xbf16>, vector<128x384xbf16>, vector<8x384xf32> -> vector<8x384xf32>
    %640 = arith.addf %639, %22 : vector<8x384xf32>
    %c8_i32_158 = arith.constant 8 : i32
    %641 = arith.muli %c5_i32_156, %c8_i32_158 : i32
    %642 = tpu.assume_multiple %641, 8 : i32
    %643 = arith.index_cast %642 : i32 to index
    %c0_159 = arith.constant 0 : index
    %644 = vector.load %arg23[%643, %c0_159] : memref<72x384xf32, #tpu.memory_space<vmem>>, vector<8x384xf32>
    %645 = vector.extract_strided_slice %644 {offsets = [0, 0], sizes = [8, 128], strides = [1, 1]} : vector<8x384xf32> to vector<8x128xf32>
    %646 = vector.extract_strided_slice %640 {offsets = [0, 0], sizes = [8, 128], strides = [1, 1]} : vector<8x384xf32> to vector<8x128xf32>
    %647 = arith.addf %645, %646 : vector<8x128xf32>
    %648 = arith.negf %647 : vector<8x128xf32>
    %649 = math.exp %648 : vector<8x128xf32>
    %cst_160 = arith.constant 1.000000e+00 : f32
    %650 = vector.broadcast %cst_160 : f32 to vector<8x128xf32>
    %651 = arith.addf %650, %649 : vector<8x128xf32>
    %652 = arith.divf %650, %651 : vector<8x128xf32>
    %653 = vector.extract_strided_slice %644 {offsets = [0, 128], sizes = [8, 128], strides = [1, 1]} : vector<8x384xf32> to vector<8x128xf32>
    %654 = vector.extract_strided_slice %640 {offsets = [0, 128], sizes = [8, 128], strides = [1, 1]} : vector<8x384xf32> to vector<8x128xf32>
    %655 = arith.addf %653, %654 : vector<8x128xf32>
    %656 = arith.negf %655 : vector<8x128xf32>
    %657 = math.exp %656 : vector<8x128xf32>
    %cst_161 = arith.constant 1.000000e+00 : f32
    %658 = vector.broadcast %cst_161 : f32 to vector<8x128xf32>
    %659 = arith.addf %658, %657 : vector<8x128xf32>
    %660 = arith.divf %658, %659 : vector<8x128xf32>
    %661 = vector.extract_strided_slice %644 {offsets = [0, 256], sizes = [8, 128], strides = [1, 1]} : vector<8x384xf32> to vector<8x128xf32>
    %662 = vector.extract_strided_slice %640 {offsets = [0, 256], sizes = [8, 128], strides = [1, 1]} : vector<8x384xf32> to vector<8x128xf32>
    %663 = arith.mulf %652, %662 : vector<8x128xf32>
    %664 = arith.addf %661, %663 : vector<8x128xf32>
    %665 = math.tanh %664 : vector<8x128xf32>
    %cst_162 = arith.constant 1.000000e+00 : f32
    %666 = vector.broadcast %cst_162 : f32 to vector<8x128xf32>
    %667 = arith.subf %666, %660 : vector<8x128xf32>
    %668 = arith.mulf %667, %665 : vector<8x128xf32>
    %669 = arith.mulf %660, %637 : vector<8x128xf32>
    %670 = arith.addf %668, %669 : vector<8x128xf32>
    %671 = vector.broadcast %c5_i32_156 : i32 to vector<8x1xi32>
    %672 = arith.cmpi sge, %14, %671 : vector<8x1xi32>
    %cst_163 = arith.constant 0.000000e+00 : f32
    %673 = vector.shape_cast %672 : vector<8x1xi1> to vector<8x1xi1>
    %674 = vector.broadcast %673 : vector<8x1xi1> to vector<8x128xi1>
    %675 = vector.broadcast %cst_163 : f32 to vector<8x128xf32>
    %676 = arith.select %674, %670, %675 : vector<8x128xi1>, vector<8x128xf32>
    %c8_i32_164 = arith.constant 8 : i32
    %677 = arith.muli %c5_i32_156, %c8_i32_164 : i32
    %678 = tpu.assume_multiple %677, 8 : i32
    %679 = arith.index_cast %678 : i32 to index
    %c0_165 = arith.constant 0 : index
    %680 = vector.load %arg24[%679, %c0_165] : memref<72x128xf32, #tpu.memory_space<vmem>>, vector<8x128xf32>
    tpu.vector_store %arg24[%679, %c0_165], %676 {strides = array<i32>} : memref<72x128xf32, #tpu.memory_space<vmem>>, vector<8x128xf32>,
    %681 = vector.shape_cast %672 : vector<8x1xi1> to vector<8x1xi1>
    %682 = vector.broadcast %681 : vector<8x1xi1> to vector<8x128xi1>
    %683 = arith.select %682, %670, %637 : vector<8x128xi1>, vector<8x128xf32>
    %c6_i32_166 = arith.constant 6 : i32
    %684 = arith.truncf %683 : vector<8x128xf32> to vector<8x128xbf16>
    %cst_167 = arith.constant dense<0.000000e+00> : vector<8x384xf32>
    %685 = tpu.matmul %684, %16, %cst_167 {dimension_numbers = #tpu.dot_dimension_numbers<[1], [0], [0], [1], [0, 0, 1, 1], [], []>} : vector<8x128xbf16>, vector<128x384xbf16>, vector<8x384xf32> -> vector<8x384xf32>
    %686 = arith.addf %685, %22 : vector<8x384xf32>
    %c8_i32_168 = arith.constant 8 : i32
    %687 = arith.muli %c6_i32_166, %c8_i32_168 : i32
    %688 = tpu.assume_multiple %687, 8 : i32
    %689 = arith.index_cast %688 : i32 to index
    %c0_169 = arith.constant 0 : index
    %690 = vector.load %arg23[%689, %c0_169] : memref<72x384xf32, #tpu.memory_space<vmem>>, vector<8x384xf32>
    %691 = vector.extract_strided_slice %690 {offsets = [0, 0], sizes = [8, 128], strides = [1, 1]} : vector<8x384xf32> to vector<8x128xf32>
    %692 = vector.extract_strided_slice %686 {offsets = [0, 0], sizes = [8, 128], strides = [1, 1]} : vector<8x384xf32> to vector<8x128xf32>
    %693 = arith.addf %691, %692 : vector<8x128xf32>
    %694 = arith.negf %693 : vector<8x128xf32>
    %695 = math.exp %694 : vector<8x128xf32>
    %cst_170 = arith.constant 1.000000e+00 : f32
    %696 = vector.broadcast %cst_170 : f32 to vector<8x128xf32>
    %697 = arith.addf %696, %695 : vector<8x128xf32>
    %698 = arith.divf %696, %697 : vector<8x128xf32>
    %699 = vector.extract_strided_slice %690 {offsets = [0, 128], sizes = [8, 128], strides = [1, 1]} : vector<8x384xf32> to vector<8x128xf32>
    %700 = vector.extract_strided_slice %686 {offsets = [0, 128], sizes = [8, 128], strides = [1, 1]} : vector<8x384xf32> to vector<8x128xf32>
    %701 = arith.addf %699, %700 : vector<8x128xf32>
    %702 = arith.negf %701 : vector<8x128xf32>
    %703 = math.exp %702 : vector<8x128xf32>
    %cst_171 = arith.constant 1.000000e+00 : f32
    %704 = vector.broadcast %cst_171 : f32 to vector<8x128xf32>
    %705 = arith.addf %704, %703 : vector<8x128xf32>
    %706 = arith.divf %704, %705 : vector<8x128xf32>
    %707 = vector.extract_strided_slice %690 {offsets = [0, 256], sizes = [8, 128], strides = [1, 1]} : vector<8x384xf32> to vector<8x128xf32>
    %708 = vector.extract_strided_slice %686 {offsets = [0, 256], sizes = [8, 128], strides = [1, 1]} : vector<8x384xf32> to vector<8x128xf32>
    %709 = arith.mulf %698, %708 : vector<8x128xf32>
    %710 = arith.addf %707, %709 : vector<8x128xf32>
    %711 = math.tanh %710 : vector<8x128xf32>
    %cst_172 = arith.constant 1.000000e+00 : f32
    %712 = vector.broadcast %cst_172 : f32 to vector<8x128xf32>
    %713 = arith.subf %712, %706 : vector<8x128xf32>
    %714 = arith.mulf %713, %711 : vector<8x128xf32>
    %715 = arith.mulf %706, %683 : vector<8x128xf32>
    %716 = arith.addf %714, %715 : vector<8x128xf32>
    %717 = vector.broadcast %c6_i32_166 : i32 to vector<8x1xi32>
    %718 = arith.cmpi sge, %14, %717 : vector<8x1xi32>
    %cst_173 = arith.constant 0.000000e+00 : f32
    %719 = vector.shape_cast %718 : vector<8x1xi1> to vector<8x1xi1>
    %720 = vector.broadcast %719 : vector<8x1xi1> to vector<8x128xi1>
    %721 = vector.broadcast %cst_173 : f32 to vector<8x128xf32>
    %722 = arith.select %720, %716, %721 : vector<8x128xi1>, vector<8x128xf32>
    %c8_i32_174 = arith.constant 8 : i32
    %723 = arith.muli %c6_i32_166, %c8_i32_174 : i32
    %724 = tpu.assume_multiple %723, 8 : i32
    %725 = arith.index_cast %724 : i32 to index
    %c0_175 = arith.constant 0 : index
    %726 = vector.load %arg24[%725, %c0_175] : memref<72x128xf32, #tpu.memory_space<vmem>>, vector<8x128xf32>
    tpu.vector_store %arg24[%725, %c0_175], %722 {strides = array<i32>} : memref<72x128xf32, #tpu.memory_space<vmem>>, vector<8x128xf32>,
    %727 = vector.shape_cast %718 : vector<8x1xi1> to vector<8x1xi1>
    %728 = vector.broadcast %727 : vector<8x1xi1> to vector<8x128xi1>
    %729 = arith.select %728, %716, %683 : vector<8x128xi1>, vector<8x128xf32>
    %c7_i32_176 = arith.constant 7 : i32
    %730 = arith.truncf %729 : vector<8x128xf32> to vector<8x128xbf16>
    %cst_177 = arith.constant dense<0.000000e+00> : vector<8x384xf32>
    %731 = tpu.matmul %730, %16, %cst_177 {dimension_numbers = #tpu.dot_dimension_numbers<[1], [0], [0], [1], [0, 0, 1, 1], [], []>} : vector<8x128xbf16>, vector<128x384xbf16>, vector<8x384xf32> -> vector<8x384xf32>
    %732 = arith.addf %731, %22 : vector<8x384xf32>
    %c8_i32_178 = arith.constant 8 : i32
    %733 = arith.muli %c7_i32_176, %c8_i32_178 : i32
    %734 = tpu.assume_multiple %733, 8 : i32
    %735 = arith.index_cast %734 : i32 to index
    %c0_179 = arith.constant 0 : index
    %736 = vector.load %arg23[%735, %c0_179] : memref<72x384xf32, #tpu.memory_space<vmem>>, vector<8x384xf32>
    %737 = vector.extract_strided_slice %736 {offsets = [0, 0], sizes = [8, 128], strides = [1, 1]} : vector<8x384xf32> to vector<8x128xf32>
    %738 = vector.extract_strided_slice %732 {offsets = [0, 0], sizes = [8, 128], strides = [1, 1]} : vector<8x384xf32> to vector<8x128xf32>
    %739 = arith.addf %737, %738 : vector<8x128xf32>
    %740 = arith.negf %739 : vector<8x128xf32>
    %741 = math.exp %740 : vector<8x128xf32>
    %cst_180 = arith.constant 1.000000e+00 : f32
    %742 = vector.broadcast %cst_180 : f32 to vector<8x128xf32>
    %743 = arith.addf %742, %741 : vector<8x128xf32>
    %744 = arith.divf %742, %743 : vector<8x128xf32>
    %745 = vector.extract_strided_slice %736 {offsets = [0, 128], sizes = [8, 128], strides = [1, 1]} : vector<8x384xf32> to vector<8x128xf32>
    %746 = vector.extract_strided_slice %732 {offsets = [0, 128], sizes = [8, 128], strides = [1, 1]} : vector<8x384xf32> to vector<8x128xf32>
    %747 = arith.addf %745, %746 : vector<8x128xf32>
    %748 = arith.negf %747 : vector<8x128xf32>
    %749 = math.exp %748 : vector<8x128xf32>
    %cst_181 = arith.constant 1.000000e+00 : f32
    %750 = vector.broadcast %cst_181 : f32 to vector<8x128xf32>
    %751 = arith.addf %750, %749 : vector<8x128xf32>
    %752 = arith.divf %750, %751 : vector<8x128xf32>
    %753 = vector.extract_strided_slice %736 {offsets = [0, 256], sizes = [8, 128], strides = [1, 1]} : vector<8x384xf32> to vector<8x128xf32>
    %754 = vector.extract_strided_slice %732 {offsets = [0, 256], sizes = [8, 128], strides = [1, 1]} : vector<8x384xf32> to vector<8x128xf32>
    %755 = arith.mulf %744, %754 : vector<8x128xf32>
    %756 = arith.addf %753, %755 : vector<8x128xf32>
    %757 = math.tanh %756 : vector<8x128xf32>
    %cst_182 = arith.constant 1.000000e+00 : f32
    %758 = vector.broadcast %cst_182 : f32 to vector<8x128xf32>
    %759 = arith.subf %758, %752 : vector<8x128xf32>
    %760 = arith.mulf %759, %757 : vector<8x128xf32>
    %761 = arith.mulf %752, %729 : vector<8x128xf32>
    %762 = arith.addf %760, %761 : vector<8x128xf32>
    %763 = vector.broadcast %c7_i32_176 : i32 to vector<8x1xi32>
    %764 = arith.cmpi sge, %14, %763 : vector<8x1xi32>
    %cst_183 = arith.constant 0.000000e+00 : f32
    %765 = vector.shape_cast %764 : vector<8x1xi1> to vector<8x1xi1>
    %766 = vector.broadcast %765 : vector<8x1xi1> to vector<8x128xi1>
    %767 = vector.broadcast %cst_183 : f32 to vector<8x128xf32>
    %768 = arith.select %766, %762, %767 : vector<8x128xi1>, vector<8x128xf32>
    %c8_i32_184 = arith.constant 8 : i32
    %769 = arith.muli %c7_i32_176, %c8_i32_184 : i32
    %770 = tpu.assume_multiple %769, 8 : i32
    %771 = arith.index_cast %770 : i32 to index
    %c0_185 = arith.constant 0 : index
    %772 = vector.load %arg24[%771, %c0_185] : memref<72x128xf32, #tpu.memory_space<vmem>>, vector<8x128xf32>
    tpu.vector_store %arg24[%771, %c0_185], %768 {strides = array<i32>} : memref<72x128xf32, #tpu.memory_space<vmem>>, vector<8x128xf32>,
    %773 = vector.shape_cast %764 : vector<8x1xi1> to vector<8x1xi1>
    %774 = vector.broadcast %773 : vector<8x1xi1> to vector<8x128xi1>
    %775 = arith.select %774, %762, %729 : vector<8x128xi1>, vector<8x128xf32>
    %c8_i32_186 = arith.constant 8 : i32
    %776 = arith.truncf %775 : vector<8x128xf32> to vector<8x128xbf16>
    %cst_187 = arith.constant dense<0.000000e+00> : vector<8x384xf32>
    %777 = tpu.matmul %776, %16, %cst_187 {dimension_numbers = #tpu.dot_dimension_numbers<[1], [0], [0], [1], [0, 0, 1, 1], [], []>} : vector<8x128xbf16>, vector<128x384xbf16>, vector<8x384xf32> -> vector<8x384xf32>
    %778 = arith.addf %777, %22 : vector<8x384xf32>
    %c8_i32_188 = arith.constant 8 : i32
    %779 = arith.muli %c8_i32_186, %c8_i32_188 : i32
    %780 = tpu.assume_multiple %779, 8 : i32
    %781 = arith.index_cast %780 : i32 to index
    %c0_189 = arith.constant 0 : index
    %782 = vector.load %arg23[%781, %c0_189] : memref<72x384xf32, #tpu.memory_space<vmem>>, vector<8x384xf32>
    %783 = vector.extract_strided_slice %782 {offsets = [0, 0], sizes = [8, 128], strides = [1, 1]} : vector<8x384xf32> to vector<8x128xf32>
    %784 = vector.extract_strided_slice %778 {offsets = [0, 0], sizes = [8, 128], strides = [1, 1]} : vector<8x384xf32> to vector<8x128xf32>
    %785 = arith.addf %783, %784 : vector<8x128xf32>
    %786 = arith.negf %785 : vector<8x128xf32>
    %787 = math.exp %786 : vector<8x128xf32>
    %cst_190 = arith.constant 1.000000e+00 : f32
    %788 = vector.broadcast %cst_190 : f32 to vector<8x128xf32>
    %789 = arith.addf %788, %787 : vector<8x128xf32>
    %790 = arith.divf %788, %789 : vector<8x128xf32>
    %791 = vector.extract_strided_slice %782 {offsets = [0, 128], sizes = [8, 128], strides = [1, 1]} : vector<8x384xf32> to vector<8x128xf32>
    %792 = vector.extract_strided_slice %778 {offsets = [0, 128], sizes = [8, 128], strides = [1, 1]} : vector<8x384xf32> to vector<8x128xf32>
    %793 = arith.addf %791, %792 : vector<8x128xf32>
    %794 = arith.negf %793 : vector<8x128xf32>
    %795 = math.exp %794 : vector<8x128xf32>
    %cst_191 = arith.constant 1.000000e+00 : f32
    %796 = vector.broadcast %cst_191 : f32 to vector<8x128xf32>
    %797 = arith.addf %796, %795 : vector<8x128xf32>
    %798 = arith.divf %796, %797 : vector<8x128xf32>
    %799 = vector.extract_strided_slice %782 {offsets = [0, 256], sizes = [8, 128], strides = [1, 1]} : vector<8x384xf32> to vector<8x128xf32>
    %800 = vector.extract_strided_slice %778 {offsets = [0, 256], sizes = [8, 128], strides = [1, 1]} : vector<8x384xf32> to vector<8x128xf32>
    %801 = arith.mulf %790, %800 : vector<8x128xf32>
    %802 = arith.addf %799, %801 : vector<8x128xf32>
    %803 = math.tanh %802 : vector<8x128xf32>
    %cst_192 = arith.constant 1.000000e+00 : f32
    %804 = vector.broadcast %cst_192 : f32 to vector<8x128xf32>
    %805 = arith.subf %804, %798 : vector<8x128xf32>
    %806 = arith.mulf %805, %803 : vector<8x128xf32>
    %807 = arith.mulf %798, %775 : vector<8x128xf32>
    %808 = arith.addf %806, %807 : vector<8x128xf32>
    %809 = vector.broadcast %c8_i32_186 : i32 to vector<8x1xi32>
    %810 = arith.cmpi sge, %14, %809 : vector<8x1xi32>
    %cst_193 = arith.constant 0.000000e+00 : f32
    %811 = vector.shape_cast %810 : vector<8x1xi1> to vector<8x1xi1>
    %812 = vector.broadcast %811 : vector<8x1xi1> to vector<8x128xi1>
    %813 = vector.broadcast %cst_193 : f32 to vector<8x128xf32>
    %814 = arith.select %812, %808, %813 : vector<8x128xi1>, vector<8x128xf32>
    %c8_i32_194 = arith.constant 8 : i32
    %815 = arith.muli %c8_i32_186, %c8_i32_194 : i32
    %816 = tpu.assume_multiple %815, 8 : i32
    %817 = arith.index_cast %816 : i32 to index
    %c0_195 = arith.constant 0 : index
    %818 = vector.load %arg24[%817, %c0_195] : memref<72x128xf32, #tpu.memory_space<vmem>>, vector<8x128xf32>
    tpu.vector_store %arg24[%817, %c0_195], %814 {strides = array<i32>} : memref<72x128xf32, #tpu.memory_space<vmem>>, vector<8x128xf32>,
    %819 = vector.shape_cast %810 : vector<8x1xi1> to vector<8x1xi1>
    %820 = vector.broadcast %819 : vector<8x1xi1> to vector<8x128xi1>
    %821 = arith.select %820, %808, %775 : vector<8x128xi1>, vector<8x128xf32>
    %c9_i32 = arith.constant 9 : i32
    %c0_196 = arith.constant 0 : index
    %c0_197 = arith.constant 0 : index
    %822 = vector.load %arg24[%c0_196, %c0_197] : memref<72x128xf32, #tpu.memory_space<vmem>>, vector<72x128xf32>
    %823 = arith.truncf %822 : vector<72x128xf32> to vector<72x128xbf16>
    %c0_198 = arith.constant 0 : index
    %c0_199 = arith.constant 0 : index
    %824 = vector.load %arg17[%c0_198, %c0_199] : memref<128x256xbf16, #tpu.memory_space<vmem>>, vector<128x256xbf16>
    %cst_200 = arith.constant dense<0.000000e+00> : vector<72x256xf32>
    %825 = tpu.matmul %823, %824, %cst_200 {dimension_numbers = #tpu.dot_dimension_numbers<[1], [0], [0], [1], [0, 0, 1, 1], [], []>} : vector<72x128xbf16>, vector<128x256xbf16>, vector<72x256xf32> -> vector<72x256xf32>
    %c0_201 = arith.constant 0 : index
    %c0_202 = arith.constant 0 : index
    %826 = vector.load %arg18[%c0_201, %c0_202] : memref<1x256xf32, #tpu.memory_space<vmem>>, vector<1x256xf32>
    %827 = vector.broadcast %826 : vector<1x256xf32> to vector<72x256xf32>
    %828 = arith.addf %825, %827 : vector<72x256xf32>
    %c0_203 = arith.constant 0 : index
    %c0_204 = arith.constant 0 : index
    %829 = vector.load %arg21[%c0_203, %c0_204] : memref<72x256xf32, #tpu.memory_space<vmem>>, vector<72x256xf32>
    tpu.vector_store %arg21[%c0_203, %c0_204], %828 {strides = array<i32>} : memref<72x256xf32, #tpu.memory_space<vmem>>, vector<72x256xf32>,
    return
  }
  func.func @transform_0(%arg0: i32) -> (i32, i32) {
    %c0_i32 = arith.constant 0 : i32
    %c0_i32_0 = arith.constant 0 : i32
    %c0_i32_1 = arith.constant 0 : i32
    return %c0_i32, %c0_i32_0 : i32, i32
  }
  func.func @transform_1(%arg0: i32) -> (i32, i32) {
    %c0_i32 = arith.constant 0 : i32
    %c0_i32_0 = arith.constant 0 : i32
    %c0_i32_1 = arith.constant 0 : i32
    return %c0_i32, %c0_i32_0 : i32, i32
  }
  func.func @transform_2(%arg0: i32) -> (i32, i32) {
    %c0_i32 = arith.constant 0 : i32
    %c0_i32_0 = arith.constant 0 : i32
    %c0_i32_1 = arith.constant 0 : i32
    return %c0_i32, %c0_i32_0 : i32, i32
  }
  func.func @transform_3(%arg0: i32) -> (i32, i32) {
    %c0_i32 = arith.constant 0 : i32
    %c0_i32_0 = arith.constant 0 : i32
    %c0_i32_1 = arith.constant 0 : i32
    return %c0_i32, %c0_i32_0 : i32, i32
  }
  func.func @transform_4(%arg0: i32) -> (i32, i32) {
    %c0_i32 = arith.constant 0 : i32
    %c0_i32_0 = arith.constant 0 : i32
    %c0_i32_1 = arith.constant 0 : i32
    return %c0_i32, %c0_i32_0 : i32, i32
  }
  func.func @transform_5(%arg0: i32) -> (i32, i32) {
    %c0_i32 = arith.constant 0 : i32
    %c0_i32_0 = arith.constant 0 : i32
    %c0_i32_1 = arith.constant 0 : i32
    return %c0_i32, %c0_i32_0 : i32, i32
  }
  func.func @transform_6(%arg0: i32) -> (i32, i32) {
    %c0_i32 = arith.constant 0 : i32
    %c0_i32_0 = arith.constant 0 : i32
    %c0_i32_1 = arith.constant 0 : i32
    return %c0_i32, %c0_i32_0 : i32, i32
  }
  func.func @transform_7(%arg0: i32) -> (i32, i32) {
    %c0_i32 = arith.constant 0 : i32
    %c0_i32_0 = arith.constant 0 : i32
    %c0_i32_1 = arith.constant 0 : i32
    return %c0_i32, %c0_i32_0 : i32, i32
  }
  func.func @transform_8(%arg0: i32) -> (i32, i32) {
    %c0_i32 = arith.constant 0 : i32
    %c0_i32_0 = arith.constant 0 : i32
    %c0_i32_1 = arith.constant 0 : i32
    return %c0_i32, %c0_i32_0 : i32, i32
  }
  func.func @transform_9(%arg0: i32) -> (i32, i32) {
    %c0_i32 = arith.constant 0 : i32
    %c0_i32_0 = arith.constant 0 : i32
    %c0_i32_1 = arith.constant 0 : i32
    return %c0_i32, %c0_i32_0 : i32, i32
  }
  func.func @transform_10(%arg0: i32) -> (i32, i32) {
    %c0_i32 = arith.constant 0 : i32
    %c0_i32_0 = arith.constant 0 : i32
    %c0_i32_1 = arith.constant 0 : i32
    return %c0_i32, %c0_i32_0 : i32, i32
  }
  func.func @transform_11(%arg0: i32) -> (i32, i32) {
    %c0_i32 = arith.constant 0 : i32
    %c0_i32_0 = arith.constant 0 : i32
    %c0_i32_1 = arith.constant 0 : i32
    return %c0_i32, %c0_i32_0 : i32, i32
  }
  func.func @transform_12(%arg0: i32) -> (i32, i32) {
    %c0_i32 = arith.constant 0 : i32
    %c0_i32_0 = arith.constant 0 : i32
    %c0_i32_1 = arith.constant 0 : i32
    return %c0_i32, %c0_i32_0 : i32, i32
  }
  func.func @transform_13(%arg0: i32) -> (i32, i32) {
    %c0_i32 = arith.constant 0 : i32
    %c0_i32_0 = arith.constant 0 : i32
    %c0_i32_1 = arith.constant 0 : i32
    return %c0_i32, %c0_i32_0 : i32, i32
  }
  func.func @transform_14(%arg0: i32) -> (i32, i32) {
    %c0_i32 = arith.constant 0 : i32
    %c0_i32_0 = arith.constant 0 : i32
    %c0_i32_1 = arith.constant 0 : i32
    return %c0_i32, %c0_i32_0 : i32, i32
  }
  func.func @transform_15(%arg0: i32) -> (i32, i32) {
    %c0_i32 = arith.constant 0 : i32
    %c0_i32_0 = arith.constant 0 : i32
    %c0_i32_1 = arith.constant 0 : i32
    return %c0_i32, %c0_i32_0 : i32, i32
  }
  func.func @transform_16(%arg0: i32) -> (i32, i32) {
    %c0_i32 = arith.constant 0 : i32
    %c0_i32_0 = arith.constant 0 : i32
    %c0_i32_1 = arith.constant 0 : i32
    return %c0_i32, %c0_i32_0 : i32, i32
  }
  func.func @transform_17(%arg0: i32) -> (i32, i32) {
    %c0_i32 = arith.constant 0 : i32
    %c0_i32_0 = arith.constant 0 : i32
    %c0_i32_1 = arith.constant 0 : i32
    return %c0_i32, %c0_i32_0 : i32, i32
  }
  func.func @transform_18(%arg0: i32) -> (i32, i32) {
    %c0_i32 = arith.constant 0 : i32
    %c0_i32_0 = arith.constant 0 : i32
    %c0_i32_1 = arith.constant 0 : i32
    return %c0_i32, %c0_i32_0 : i32, i32
  }
  func.func @transform_19(%arg0: i32) -> (i32, i32) {
    %c0_i32 = arith.constant 0 : i32
    %c0_i32_0 = arith.constant 0 : i32
    %c0_i32_1 = arith.constant 0 : i32
    return %c0_i32, %c0_i32_0 : i32, i32
  }
  func.func @transform_20(%arg0: i32) -> (i32, i32) {
    %c0_i32 = arith.constant 0 : i32
    %c0_i32_0 = arith.constant 0 : i32
    %c0_i32_1 = arith.constant 0 : i32
    return %c0_i32, %c0_i32_0 : i32, i32
  }
}

</mosaic_0001>

<llo_original>
// kernel: gmsvae_forward.1
$region0: #{gmsvae_forward.1}
  #allocation0 [shape = 'u32[]', space=smem, size = 0x4, offset = 0x4, fixed_abs, tag = 'smem constant byte address 0x4 - core index']
  #allocation1 [shape = 'u32[72,128]{1,0:T(1,128)}', space=vmem, size = 0x9000, scoped, tag = 'internal scratch']
  #allocation2 [shape = 'f32[64,384]{1,0:T(8,128)}', space=vmem, size = 0x18000, scoped, tag = 'scratch operand']
  #allocation3 [shape = 'f32[72,384]{1,0:T(8,128)}', space=vmem, size = 0x1b000, scoped, tag = 'scratch operand']
  #allocation4 [shape = 'f32[72,128]{1,0:T(8,128)}', space=vmem, size = 0x9000, scoped, tag = 'scratch operand']
  %s0 = inlined_call_operand.vmem [shape: bf16[64,128], index: 0, kind: input, shape index: {}]
  %s1 = inlined_call_operand.vmem [shape: bf16[72,128], index: 1, kind: input, shape index: {}]
  %s2 = inlined_call_operand.vmem [shape: s32[8,1], index: 2, kind: input, shape index: {}]
  %s3 = inlined_call_operand.vmem [shape: bf16[128,384], index: 3, kind: input, shape index: {}]
  %s4 = inlined_call_operand.vmem [shape: bf16[128,384], index: 4, kind: input, shape index: {}]
  %s5 = inlined_call_operand.vmem [shape: f32[1,384], index: 5, kind: input, shape index: {}]
  %s6 = inlined_call_operand.vmem [shape: f32[1,384], index: 6, kind: input, shape index: {}]
  %s7 = inlined_call_operand.vmem [shape: bf16[128,384], index: 7, kind: input, shape index: {}]
  %s8 = inlined_call_operand.vmem [shape: bf16[128,384], index: 8, kind: input, shape index: {}]
  %s9 = inlined_call_operand.vmem [shape: f32[1,384], index: 9, kind: input, shape index: {}]
  %s10 = inlined_call_operand.vmem [shape: f32[1,384], index: 10, kind: input, shape index: {}]
  %s11 = inlined_call_operand.vmem [shape: bf16[128,256], index: 11, kind: input, shape index: {}]
  %s12 = inlined_call_operand.vmem [shape: f32[1,256], index: 12, kind: input, shape index: {}]
  %s13 = inlined_call_operand.vmem [shape: f32[8,128], index: 13, kind: input, shape index: {}]
  %s14 = inlined_call_operand.vmem [shape: f32[8,128], index: 14, kind: input, shape index: {}]
  %s15 = inlined_call_operand.vmem [shape: f32[8,128], index: 15, kind: input, shape index: {}]
  %s16 = inlined_call_operand.vmem [shape: bf16[128,256], index: 16, kind: input, shape index: {}]
  %s17 = inlined_call_operand.vmem [shape: f32[1,256], index: 17, kind: input, shape index: {}]
  %s18 = inlined_call_operand.hbm [shape: f32[8,128], index: 18, kind: output, shape index: {0}]
  %s19 = inlined_call_operand.vmem [shape: f32[8,128], index: 19, kind: output, shape index: {1}]
  %s20 = inlined_call_operand.hbm [shape: f32[72,256], index: 20, kind: output, shape index: {2}]
  %21 = xla_tuple %s18, %s19, %s20
  %s22 = sld [smem:[#allocation0]]
  $region98: #{gmsvae_forward.1} parent=0
    _
  %s24 = ssub.s32 1, %s22
  %s25 = scalar_select 0, %s24, %s22
  $region1: #{gmsvae_forward.1} parent=0
    #allocation5 [shape = 'u8[4096]{0}', space=vmem, size = 0x1000, scoped, tag = 'output window, operand 0, single buffered']
    #allocation6 [shape = 's32[1]{0}', space=sflag, size = 0x4, scoped, tag = 'scoped memory for gmsvae_forward.1']
    #allocation7 [shape = 'u8[73728]{0}', space=vmem, size = 0x12000, scoped, tag = 'output window, operand 2, single buffered']
    #allocation8 [shape = 's32[1]{0}', space=sflag, size = 0x4, scoped, tag = 'scoped memory for gmsvae_forward.1']
    %26 = vsyncpa [#allocation6], 0
    %27 = vsyncpa [#allocation8], 0
    // Predicated region
    $region2: #{gmsvae_forward.1} parent=1 // pred_check
      _
    $region3: #{gmsvae_forward.1} parent=1 // pred_check_branch
      %29 = sbr.rel (0) target = $region5
    $region4: #{gmsvae_forward.1} parent=1 // pred_region
      _
    $region5: #{gmsvae_forward.1} parent=1 // pred_fallthru
      _
    // Predicated region
    $region6: #{gmsvae_forward.1} parent=1 // pred_check
      _
    $region7: #{gmsvae_forward.1} parent=1 // pred_check_branch
      %31 = sbr.rel (0) target = $region9
    $region8: #{gmsvae_forward.1} parent=1 // pred_region
      _
    $region9: #{gmsvae_forward.1} parent=1 // pred_fallthru
      _
    // Predicated region
    $region10: #{gmsvae_forward.1} parent=1 // pred_check
      _
    $region11: #{gmsvae_forward.1} parent=1 // pred_check_branch
      %33 = sbr.rel (0) target = $region13
    $region12: #{gmsvae_forward.1} parent=1 // pred_region
      _
    $region13: #{gmsvae_forward.1} parent=1 // pred_fallthru
      _
    // Predicated region
    $region14: #{gmsvae_forward.1} parent=1 // pred_check
      _
    $region15: #{gmsvae_forward.1} parent=1 // pred_check_branch
      %35 = sbr.rel (0) target = $region17
    $region16: #{gmsvae_forward.1} parent=1 // pred_region
      _
    $region17: #{gmsvae_forward.1} parent=1 // pred_fallthru
      _
    // Predicated region
    $region18: #{gmsvae_forward.1} parent=1 // pred_check
      _
    $region19: #{gmsvae_forward.1} parent=1 // pred_check_branch
      %37 = sbr.rel (0) target = $region21
    $region20: #{gmsvae_forward.1} parent=1 // pred_region
      _
    $region21: #{gmsvae_forward.1} parent=1 // pred_fallthru
      _
    // Predicated region
    $region22: #{gmsvae_forward.1} parent=1 // pred_check
      _
    $region23: #{gmsvae_forward.1} parent=1 // pred_check_branch
      %39 = sbr.rel (0) target = $region25
    $region24: #{gmsvae_forward.1} parent=1 // pred_region
      _
    $region25: #{gmsvae_forward.1} parent=1 // pred_fallthru
      _
    // Predicated region
    $region26: #{gmsvae_forward.1} parent=1 // pred_check
      _
    $region27: #{gmsvae_forward.1} parent=1 // pred_check_branch
      %41 = sbr.rel (0) target = $region29
    $region28: #{gmsvae_forward.1} parent=1 // pred_region
      _
    $region29: #{gmsvae_forward.1} parent=1 // pred_fallthru
      _
    // Predicated region
    $region30: #{gmsvae_forward.1} parent=1 // pred_check
      _
    $region31: #{gmsvae_forward.1} parent=1 // pred_check_branch
      %43 = sbr.rel (0) target = $region33
    $region32: #{gmsvae_forward.1} parent=1 // pred_region
      _
    $region33: #{gmsvae_forward.1} parent=1 // pred_fallthru
      _
    // Predicated region
    $region34: #{gmsvae_forward.1} parent=1 // pred_check
      _
    $region35: #{gmsvae_forward.1} parent=1 // pred_check_branch
      %45 = sbr.rel (0) target = $region37
    $region36: #{gmsvae_forward.1} parent=1 // pred_region
      _
    $region37: #{gmsvae_forward.1} parent=1 // pred_fallthru
      _
    // Predicated region
    $region38: #{gmsvae_forward.1} parent=1 // pred_check
      _
    $region39: #{gmsvae_forward.1} parent=1 // pred_check_branch
      %47 = sbr.rel (0) target = $region41
    $region40: #{gmsvae_forward.1} parent=1 // pred_region
      _
    $region41: #{gmsvae_forward.1} parent=1 // pred_fallthru
      _
    // Predicated region
    $region42: #{gmsvae_forward.1} parent=1 // pred_check
      _
    $region43: #{gmsvae_forward.1} parent=1 // pred_check_branch
      %49 = sbr.rel (0) target = $region45
    $region44: #{gmsvae_forward.1} parent=1 // pred_region
      _
    $region45: #{gmsvae_forward.1} parent=1 // pred_fallthru
      _
    // Predicated region
    $region46: #{gmsvae_forward.1} parent=1 // pred_check
      _
    $region47: #{gmsvae_forward.1} parent=1 // pred_check_branch
      %51 = sbr.rel (0) target = $region49
    $region48: #{gmsvae_forward.1} parent=1 // pred_region
      _
    $region49: #{gmsvae_forward.1} parent=1 // pred_fallthru
      _
    // Predicated region
    $region50: #{gmsvae_forward.1} parent=1 // pred_check
      _
    $region51: #{gmsvae_forward.1} parent=1 // pred_check_branch
      %53 = sbr.rel (0) target = $region53
    $region52: #{gmsvae_forward.1} parent=1 // pred_region
      _
    $region53: #{gmsvae_forward.1} parent=1 // pred_fallthru
      _
    // Predicated region
    $region54: #{gmsvae_forward.1} parent=1 // pred_check
      _
    $region55: #{gmsvae_forward.1} parent=1 // pred_check_branch
      %55 = sbr.rel (0) target = $region57
    $region56: #{gmsvae_forward.1} parent=1 // pred_region
      _
    $region57: #{gmsvae_forward.1} parent=1 // pred_fallthru
      _
    // Predicated region
    $region58: #{gmsvae_forward.1} parent=1 // pred_check
      _
    $region59: #{gmsvae_forward.1} parent=1 // pred_check_branch
      %57 = sbr.rel (0) target = $region61
    $region60: #{gmsvae_forward.1} parent=1 // pred_region
      _
    $region61: #{gmsvae_forward.1} parent=1 // pred_fallthru
      _
    // Predicated region
    $region62: #{gmsvae_forward.1} parent=1 // pred_check
      _
    $region63: #{gmsvae_forward.1} parent=1 // pred_check_branch
      %59 = sbr.rel (0) target = $region65
    $region64: #{gmsvae_forward.1} parent=1 // pred_region
      _
    $region65: #{gmsvae_forward.1} parent=1 // pred_fallthru
      _
    // Predicated region
    $region66: #{gmsvae_forward.1} parent=1 // pred_check
      _
    $region67: #{gmsvae_forward.1} parent=1 // pred_check_branch
      %61 = sbr.rel (0) target = $region69
    $region68: #{gmsvae_forward.1} parent=1 // pred_region
      _
    $region69: #{gmsvae_forward.1} parent=1 // pred_fallthru
      _
    // Predicated region
    $region70: #{gmsvae_forward.1} parent=1 // pred_check
      _
    $region71: #{gmsvae_forward.1} parent=1 // pred_check_branch
      %63 = sbr.rel (0) target = $region73
    $region72: #{gmsvae_forward.1} parent=1 // pred_region
      _
    $region73: #{gmsvae_forward.1} parent=1 // pred_fallthru
      _
    %v65 = vld [vmem:[%s0] sm:$0xf]
    %v66 = vld [vmem:[%s0 + $0x4] sm:$0xf]
    %v67 = vld [vmem:[%s0 + $0x8] sm:$0xf]
    %v68 = vld [vmem:[%s0 + $0xc] sm:$0xf]
    %v69 = vld [vmem:[%s0 + $0x10] sm:$0xf]
    %v70 = vld [vmem:[%s0 + $0x14] sm:$0xf]
    %v71 = vld [vmem:[%s0 + $0x18] sm:$0xf]
    %v72 = vld [vmem:[%s0 + $0x1c] sm:$0xf]
    %v73 = vld [vmem:[%s3] sm:$0xff]
    %v74 = vld [vmem:[%s3 + $0x8] sm:$0xf]
    %v75 = vld [vmem:[%s3 + $0xc] sm:$0xff]
    %v76 = vld [vmem:[%s3 + $0x14] sm:$0xf]
    %v77 = vld [vmem:[%s3 + $0x18] sm:$0xff]
    %v78 = vld [vmem:[%s3 + $0x20] sm:$0xf]
    %v79 = vld [vmem:[%s3 + $0x24] sm:$0xff]
    %v80 = vld [vmem:[%s3 + $0x2c] sm:$0xf]
    %v81 = vld [vmem:[%s3 + $0x30] sm:$0xff]
    %v82 = vld [vmem:[%s3 + $0x38] sm:$0xf]
    %v83 = vld [vmem:[%s3 + $0x3c] sm:$0xff]
    %v84 = vld [vmem:[%s3 + $0x44] sm:$0xf]
    %v85 = vld [vmem:[%s3 + $0x48] sm:$0xff]
    %v86 = vld [vmem:[%s3 + $0x50] sm:$0xf]
    %v87 = vld [vmem:[%s3 + $0x54] sm:$0xff]
    %v88 = vld [vmem:[%s3 + $0x5c] sm:$0xf]
    %v89 = vld [vmem:[%s3 + $0x60] sm:$0xff]
    %v90 = vld [vmem:[%s3 + $0x68] sm:$0xf]
    %v91 = vld [vmem:[%s3 + $0x6c] sm:$0xff]
    %v92 = vld [vmem:[%s3 + $0x74] sm:$0xf]
    %v93 = vld [vmem:[%s3 + $0x78] sm:$0xff]
    %v94 = vld [vmem:[%s3 + $0x80] sm:$0xf]
    %v95 = vld [vmem:[%s3 + $0x84] sm:$0xff]
    %v96 = vld [vmem:[%s3 + $0x8c] sm:$0xf]
    %v97 = vld [vmem:[%s3 + $0x90] sm:$0xff]
    %v98 = vld [vmem:[%s3 + $0x98] sm:$0xf]
    %v99 = vld [vmem:[%s3 + $0x9c] sm:$0xff]
    %v100 = vld [vmem:[%s3 + $0xa4] sm:$0xf]
    %v101 = vld [vmem:[%s3 + $0xa8] sm:$0xff]
    %v102 = vld [vmem:[%s3 + $0xb0] sm:$0xf]
    %v103 = vld [vmem:[%s3 + $0xb4] sm:$0xff]
    %v104 = vld [vmem:[%s3 + $0xbc] sm:$0xf]
    %v105 = vld [vmem:[%s5] sm:$0x7]
    %v107 = vperm.slane %v105, 0
    %v108 = vperm.slane %v105, 1
    %v109 = vperm.slane %v105, 2
    %v121 = vunpack.c.l.b16 %v65
    %v122 = vunpack.c.l.b16 %v66
    %v123 = vunpack.c.l.b16 %v67
    %v124 = vunpack.c.l.b16 %v68
    %v125 = vunpack.c.l.b16 %v69
    %v126 = vunpack.c.l.b16 %v70
    %v127 = vunpack.c.l.b16 %v71
    %v128 = vunpack.c.l.b16 %v72
    %v129 = vpack.c.b16 %v122, %v121
    %v130 = vpack.c.b16 %v124, %v123
    %v131 = vpack.c.b16 %v126, %v125
    %v132 = vpack.c.b16 %v128, %v127
    %v169 = vunpack.c.l.b16 %v73
    %v170 = vunpack.c.h.b16 %v73
    %v171 = vunpack.c.l.b16 %v74
    %v172 = vunpack.c.l.b16 %v75
    %v173 = vunpack.c.h.b16 %v75
    %v174 = vunpack.c.l.b16 %v76
    %v175 = vunpack.c.l.b16 %v77
    %v176 = vunpack.c.h.b16 %v77
    %v177 = vunpack.c.l.b16 %v78
    %v178 = vunpack.c.l.b16 %v79
    %v179 = vunpack.c.h.b16 %v79
    %v180 = vunpack.c.l.b16 %v80
    %v181 = vunpack.c.l.b16 %v81
    %v182 = vunpack.c.h.b16 %v81
    %v183 = vunpack.c.l.b16 %v82
    %v184 = vunpack.c.l.b16 %v83
    %v185 = vunpack.c.h.b16 %v83
    %v186 = vunpack.c.l.b16 %v84
    %v187 = vunpack.c.l.b16 %v85
    %v188 = vunpack.c.h.b16 %v85
    %v189 = vunpack.c.l.b16 %v86
    %v190 = vunpack.c.l.b16 %v87
    %v191 = vunpack.c.h.b16 %v87
    %v192 = vunpack.c.l.b16 %v88
    %v193 = vunpack.c.l.b16 %v89
    %v194 = vunpack.c.h.b16 %v89
    %v195 = vunpack.c.l.b16 %v90
    %v196 = vunpack.c.l.b16 %v91
    %v197 = vunpack.c.h.b16 %v91
    %v198 = vunpack.c.l.b16 %v92
    %v199 = vunpack.c.l.b16 %v93
    %v200 = vunpack.c.h.b16 %v93
    %v201 = vunpack.c.l.b16 %v94
    %v202 = vunpack.c.l.b16 %v95
    %v203 = vunpack.c.h.b16 %v95
    %v204 = vunpack.c.l.b16 %v96
    %v205 = vunpack.c.l.b16 %v97
    %v206 = vunpack.c.h.b16 %v97
    %v207 = vunpack.c.l.b16 %v98
    %v208 = vunpack.c.l.b16 %v99
    %v209 = vunpack.c.h.b16 %v99
    %v210 = vunpack.c.l.b16 %v100
    %v211 = vunpack.c.l.b16 %v101
    %v212 = vunpack.c.h.b16 %v101
    %v213 = vunpack.c.l.b16 %v102
    %v214 = vunpack.c.l.b16 %v103
    %v215 = vunpack.c.h.b16 %v103
    %v216 = vunpack.c.l.b16 %v104
    %v217 = vpack.c.b16 %v172, %v169
    %v218 = vpack.c.b16 %v173, %v170
    %v219 = vpack.c.b16 %v174, %v171
    %v220 = vpack.c.b16 %v178, %v175
    %v221 = vpack.c.b16 %v179, %v176
    %v222 = vpack.c.b16 %v180, %v177
    %v223 = vpack.c.b16 %v184, %v181
    %v224 = vpack.c.b16 %v185, %v182
    %v225 = vpack.c.b16 %v186, %v183
    %v226 = vpack.c.b16 %v190, %v187
    %v227 = vpack.c.b16 %v191, %v188
    %v228 = vpack.c.b16 %v192, %v189
    %v229 = vpack.c.b16 %v196, %v193
    %v230 = vpack.c.b16 %v197, %v194
    %v231 = vpack.c.b16 %v198, %v195
    %v232 = vpack.c.b16 %v202, %v199
    %v233 = vpack.c.b16 %v203, %v200
    %v234 = vpack.c.b16 %v204, %v201
    %v235 = vpack.c.b16 %v208, %v205
    %v236 = vpack.c.b16 %v209, %v206
    %v237 = vpack.c.b16 %v210, %v207
    %v238 = vpack.c.b16 %v214, %v211
    %v239 = vpack.c.b16 %v215, %v212
    %v240 = vpack.c.b16 %v216, %v213
    %265 = vmatpush.bf16.msra.mxu0 %v238
    %266 = vmatpush.bf16.msra.mxu0 %v235
    %267 = vmatpush.bf16.msra.mxu0 %v232
    %268 = vmatpush.bf16.msra.mxu0 %v229
    %269 = vmatpush.bf16.msra.mxu0 %v226
    %270 = vmatpush.bf16.msra.mxu0 %v223
    %271 = vmatpush.bf16.msra.mxu0 %v220
    %272 = vmatpush.bf16.msra.mxu0 %v217
    %273 = vmatmul.bf16.gmra.mxu0 %v129
    %v274 = vpop.f32.mrf.mxu0
    %v275 = vadd.f32 %v107, %v274
    %v276 = vpop.f32.mrf.mxu0
    %v277 = vadd.f32 %v107, %v276
    %278 = vmatmul.bf16.gmra.mxu0 %v130
    %v279 = vpop.f32.mrf.mxu0
    %v280 = vadd.f32 %v107, %v279
    %v281 = vpop.f32.mrf.mxu0
    %v282 = vadd.f32 %v107, %v281
    %283 = vmatmul.bf16.gmra.mxu0 %v131
    %v284 = vpop.f32.mrf.mxu0
    %v285 = vadd.f32 %v107, %v284
    %v286 = vpop.f32.mrf.mxu0
    %v287 = vadd.f32 %v107, %v286
    %288 = vmatmul.bf16.gmra.mxu0 %v132
    %v289 = vpop.f32.mrf.mxu0
    %v290 = vadd.f32 %v107, %v289
    %v291 = vpop.f32.mrf.mxu0
    %v292 = vadd.f32 %v107, %v291
    %293 = vdwg.mxu0
    %294 = vmatpush.bf16.msra.mxu0 %v239
    %295 = vmatpush.bf16.msra.mxu0 %v236
    %296 = vmatpush.bf16.msra.mxu0 %v233
    %297 = vmatpush.bf16.msra.mxu0 %v230
    %298 = vmatpush.bf16.msra.mxu0 %v227
    %299 = vmatpush.bf16.msra.mxu0 %v224
    %300 = vmatpush.bf16.msra.mxu0 %v221
    %301 = vmatpush.bf16.msra.mxu0 %v218
    %302 = vmatmul.bf16.gmra.mxu0 %v129
    %v303 = vpop.f32.mrf.mxu0
    %v304 = vadd.f32 %v108, %v303
    %v305 = vpop.f32.mrf.mxu0
    %v306 = vadd.f32 %v108, %v305
    %307 = vmatmul.bf16.gmra.mxu0 %v130
    %v308 = vpop.f32.mrf.mxu0
    %v309 = vadd.f32 %v108, %v308
    %v310 = vpop.f32.mrf.mxu0
    %v311 = vadd.f32 %v108, %v310
    %312 = vmatmul.bf16.gmra.mxu0 %v131
    %v313 = vpop.f32.mrf.mxu0
    %v314 = vadd.f32 %v108, %v313
    %v315 = vpop.f32.mrf.mxu0
    %v316 = vadd.f32 %v108, %v315
    %317 = vmatmul.bf16.gmra.mxu0 %v132
    %v318 = vpop.f32.mrf.mxu0
    %v319 = vadd.f32 %v108, %v318
    %v320 = vpop.f32.mrf.mxu0
    %v321 = vadd.f32 %v108, %v320
    %322 = vdwg.mxu0
    %323 = vmatpush.bf16.msra.mxu0 %v240
    %324 = vmatpush.bf16.msra.mxu0 %v237
    %325 = vmatpush.bf16.msra.mxu0 %v234
    %326 = vmatpush.bf16.msra.mxu0 %v231
    %327 = vmatpush.bf16.msra.mxu0 %v228
    %328 = vmatpush.bf16.msra.mxu0 %v225
    %329 = vmatpush.bf16.msra.mxu0 %v222
    %330 = vmatpush.bf16.msra.mxu0 %v219
    %331 = vmatmul.bf16.gmra.mxu0 %v129
    %v332 = vpop.f32.mrf.mxu0
    %v333 = vadd.f32 %v109, %v332
    %v334 = vpop.f32.mrf.mxu0
    %v335 = vadd.f32 %v109, %v334
    %336 = vmatmul.bf16.gmra.mxu0 %v130
    %v337 = vpop.f32.mrf.mxu0
    %v338 = vadd.f32 %v109, %v337
    %v339 = vpop.f32.mrf.mxu0
    %v340 = vadd.f32 %v109, %v339
    %341 = vmatmul.bf16.gmra.mxu0 %v131
    %v342 = vpop.f32.mrf.mxu0
    %v343 = vadd.f32 %v109, %v342
    %v344 = vpop.f32.mrf.mxu0
    %v345 = vadd.f32 %v109, %v344
    %346 = vmatmul.bf16.gmra.mxu0 %v132
    %v347 = vpop.f32.mrf.mxu0
    %v348 = vadd.f32 %v109, %v347
    %v349 = vpop.f32.mrf.mxu0
    %v350 = vadd.f32 %v109, %v349
    %351 = vdwg.mxu0
    %352 = vst [vmem:[#allocation2] sm:$0xff] %v275
    %353 = vst [vmem:[#allocation2 + $0x8] sm:$0xff] %v304
    %354 = vst [vmem:[#allocation2 + $0x10] sm:$0xff] %v333
    %355 = vst [vmem:[#allocation2 + $0x18] sm:$0xff] %v277
    %356 = vst [vmem:[#allocation2 + $0x20] sm:$0xff] %v306
    %357 = vst [vmem:[#allocation2 + $0x28] sm:$0xff] %v335
    %358 = vst [vmem:[#allocation2 + $0x30] sm:$0xff] %v280
    %359 = vst [vmem:[#allocation2 + $0x38] sm:$0xff] %v309
    %360 = vst [vmem:[#allocation2 + $0x40] sm:$0xff] %v338
    %361 = vst [vmem:[#allocation2 + $0x48] sm:$0xff] %v282
    %362 = vst [vmem:[#allocation2 + $0x50] sm:$0xff] %v311
    %363 = vst [vmem:[#allocation2 + $0x58] sm:$0xff] %v340
    %364 = vst [vmem:[#allocation2 + $0x60] sm:$0xff] %v285
    %365 = vst [vmem:[#allocation2 + $0x68] sm:$0xff] %v314
    %366 = vst [vmem:[#allocation2 + $0x70] sm:$0xff] %v343
    %367 = vst [vmem:[#allocation2 + $0x78] sm:$0xff] %v287
    %368 = vst [vmem:[#allocation2 + $0x80] sm:$0xff] %v316
    %369 = vst [vmem:[#allocation2 + $0x88] sm:$0xff] %v345
    %370 = vst [vmem:[#allocation2 + $0x90] sm:$0xff] %v290
    %371 = vst [vmem:[#allocation2 + $0x98] sm:$0xff] %v319
    %372 = vst [vmem:[#allocation2 + $0xa0] sm:$0xff] %v348
    %373 = vst [vmem:[#allocation2 + $0xa8] sm:$0xff] %v292
    %374 = vst [vmem:[#allocation2 + $0xb0] sm:$0xff] %v321
    %375 = vst [vmem:[#allocation2 + $0xb8] sm:$0xff] %v350
    %v376 = vld [vmem:[%s1] sm:$0xf]
    %v377 = vld [vmem:[%s1 + $0x4] sm:$0xf]
    %v378 = vld [vmem:[%s1 + $0x8] sm:$0xf]
    %v379 = vld [vmem:[%s1 + $0xc] sm:$0xf]
    %v380 = vld [vmem:[%s1 + $0x10] sm:$0xf]
    %v381 = vld [vmem:[%s1 + $0x14] sm:$0xf]
    %v382 = vld [vmem:[%s1 + $0x18] sm:$0xf]
    %v383 = vld [vmem:[%s1 + $0x1c] sm:$0xf]
    %v384 = vld [vmem:[%s1 + $0x20] sm:$0xf]
    %v385 = vld [vmem:[%s7] sm:$0xff]
    %v386 = vld [vmem:[%s7 + $0x8] sm:$0xf]
    %v387 = vld [vmem:[%s7 + $0xc] sm:$0xff]
    %v388 = vld [vmem:[%s7 + $0x14] sm:$0xf]
    %v389 = vld [vmem:[%s7 + $0x18] sm:$0xff]
    %v390 = vld [vmem:[%s7 + $0x20] sm:$0xf]
    %v391 = vld [vmem:[%s7 + $0x24] sm:$0xff]
    %v392 = vld [vmem:[%s7 + $0x2c] sm:$0xf]
    %v393 = vld [vmem:[%s7 + $0x30] sm:$0xff]
    %v394 = vld [vmem:[%s7 + $0x38] sm:$0xf]
    %v395 = vld [vmem:[%s7 + $0x3c] sm:$0xff]
    %v396 = vld [vmem:[%s7 + $0x44] sm:$0xf]
    %v397 = vld [vmem:[%s7 + $0x48] sm:$0xff]
    %v398 = vld [vmem:[%s7 + $0x50] sm:$0xf]
    %v399 = vld [vmem:[%s7 + $0x54] sm:$0xff]
    %v400 = vld [vmem:[%s7 + $0x5c] sm:$0xf]
    %v401 = vld [vmem:[%s7 + $0x60] sm:$0xff]
    %v402 = vld [vmem:[%s7 + $0x68] sm:$0xf]
    %v403 = vld [vmem:[%s7 + $0x6c] sm:$0xff]
    %v404 = vld [vmem:[%s7 + $0x74] sm:$0xf]
    %v405 = vld [vmem:[%s7 + $0x78] sm:$0xff]
    %v406 = vld [vmem:[%s7 + $0x80] sm:$0xf]
    %v407 = vld [vmem:[%s7 + $0x84] sm:$0xff]
    %v408 = vld [vmem:[%s7 + $0x8c] sm:$0xf]
    %v409 = vld [vmem:[%s7 + $0x90] sm:$0xff]
    %v410 = vld [vmem:[%s7 + $0x98] sm:$0xf]
    %v411 = vld [vmem:[%s7 + $0x9c] sm:$0xff]
    %v412 = vld [vmem:[%s7 + $0xa4] sm:$0xf]
    %v413 = vld [vmem:[%s7 + $0xa8] sm:$0xff]
    %v414 = vld [vmem:[%s7 + $0xb0] sm:$0xf]
    %v415 = vld [vmem:[%s7 + $0xb4] sm:$0xff]
    %v416 = vld [vmem:[%s7 + $0xbc] sm:$0xf]
    %v417 = vld [vmem:[%s9] sm:$0x7]
    %v419 = vperm.slane %v417, 0
    %v420 = vperm.slane %v417, 1
    %v421 = vperm.slane %v417, 2
    %v434 = vunpack.c.l.b16 %v376
    %v435 = vunpack.c.l.b16 %v377
    %v436 = vunpack.c.l.b16 %v378
    %v437 = vunpack.c.l.b16 %v379
    %v438 = vunpack.c.l.b16 %v380
    %v439 = vunpack.c.l.b16 %v381
    %v440 = vunpack.c.l.b16 %v382
    %v441 = vunpack.c.l.b16 %v383
    %v442 = vunpack.c.l.b16 %v384
    %v443 = vpack.c.b16 %v435, %v434
    %v444 = vpack.c.b16 %v437, %v436
    %v445 = vpack.c.b16 %v439, %v438
    %v446 = vpack.c.b16 %v441, %v440
    %v447 = vpack.c.b16 %v442, %v442
    %v485 = vunpack.c.l.b16 %v385
    %v486 = vunpack.c.h.b16 %v385
    %v487 = vunpack.c.l.b16 %v386
    %v488 = vunpack.c.l.b16 %v387
    %v489 = vunpack.c.h.b16 %v387
    %v490 = vunpack.c.l.b16 %v388
    %v491 = vunpack.c.l.b16 %v389
    %v492 = vunpack.c.h.b16 %v389
    %v493 = vunpack.c.l.b16 %v390
    %v494 = vunpack.c.l.b16 %v391
    %v495 = vunpack.c.h.b16 %v391
    %v496 = vunpack.c.l.b16 %v392
    %v497 = vunpack.c.l.b16 %v393
    %v498 = vunpack.c.h.b16 %v393
    %v499 = vunpack.c.l.b16 %v394
    %v500 = vunpack.c.l.b16 %v395
    %v501 = vunpack.c.h.b16 %v395
    %v502 = vunpack.c.l.b16 %v396
    %v503 = vunpack.c.l.b16 %v397
    %v504 = vunpack.c.h.b16 %v397
    %v505 = vunpack.c.l.b16 %v398
    %v506 = vunpack.c.l.b16 %v399
    %v507 = vunpack.c.h.b16 %v399
    %v508 = vunpack.c.l.b16 %v400
    %v509 = vunpack.c.l.b16 %v401
    %v510 = vunpack.c.h.b16 %v401
    %v511 = vunpack.c.l.b16 %v402
    %v512 = vunpack.c.l.b16 %v403
    %v513 = vunpack.c.h.b16 %v403
    %v514 = vunpack.c.l.b16 %v404
    %v515 = vunpack.c.l.b16 %v405
    %v516 = vunpack.c.h.b16 %v405
    %v517 = vunpack.c.l.b16 %v406
    %v518 = vunpack.c.l.b16 %v407
    %v519 = vunpack.c.h.b16 %v407
    %v520 = vunpack.c.l.b16 %v408
    %v521 = vunpack.c.l.b16 %v409
    %v522 = vunpack.c.h.b16 %v409
    %v523 = vunpack.c.l.b16 %v410
    %v524 = vunpack.c.l.b16 %v411
    %v525 = vunpack.c.h.b16 %v411
    %v526 = vunpack.c.l.b16 %v412
    %v527 = vunpack.c.l.b16 %v413
    %v528 = vunpack.c.h.b16 %v413
    %v529 = vunpack.c.l.b16 %v414
    %v530 = vunpack.c.l.b16 %v415
    %v531 = vunpack.c.h.b16 %v415
    %v532 = vunpack.c.l.b16 %v416
    %v533 = vpack.c.b16 %v488, %v485
    %v534 = vpack.c.b16 %v489, %v486
    %v535 = vpack.c.b16 %v490, %v487
    %v536 = vpack.c.b16 %v494, %v491
    %v537 = vpack.c.b16 %v495, %v492
    %v538 = vpack.c.b16 %v496, %v493
    %v539 = vpack.c.b16 %v500, %v497
    %v540 = vpack.c.b16 %v501, %v498
    %v541 = vpack.c.b16 %v502, %v499
    %v542 = vpack.c.b16 %v506, %v503
    %v543 = vpack.c.b16 %v507, %v504
    %v544 = vpack.c.b16 %v508, %v505
    %v545 = vpack.c.b16 %v512, %v509
    %v546 = vpack.c.b16 %v513, %v510
    %v547 = vpack.c.b16 %v514, %v511
    %v548 = vpack.c.b16 %v518, %v515
    %v549 = vpack.c.b16 %v519, %v516
    %v550 = vpack.c.b16 %v520, %v517
    %v551 = vpack.c.b16 %v524, %v521
    %v552 = vpack.c.b16 %v525, %v522
    %v553 = vpack.c.b16 %v526, %v523
    %v554 = vpack.c.b16 %v530, %v527
    %v555 = vpack.c.b16 %v531, %v528
    %v556 = vpack.c.b16 %v532, %v529
    %581 = vmatpush.bf16.msra.mxu0 %v554
    %582 = vmatpush.bf16.msra.mxu0 %v551
    %583 = vmatpush.bf16.msra.mxu0 %v548
    %584 = vmatpush.bf16.msra.mxu0 %v545
    %585 = vmatpush.bf16.msra.mxu0 %v542
    %586 = vmatpush.bf16.msra.mxu0 %v539
    %587 = vmatpush.bf16.msra.mxu0 %v536
    %588 = vmatpush.bf16.msra.mxu0 %v533
    %589 = vmatmul.bf16.gmra.mxu0 %v443
    %v590 = vpop.f32.mrf.mxu0
    %v591 = vadd.f32 %v419, %v590
    %v592 = vpop.f32.mrf.mxu0
    %v593 = vadd.f32 %v419, %v592
    %594 = vmatmul.bf16.gmra.mxu0 %v444
    %v595 = vpop.f32.mrf.mxu0
    %v596 = vadd.f32 %v419, %v595
    %v597 = vpop.f32.mrf.mxu0
    %v598 = vadd.f32 %v419, %v597
    %599 = vmatmul.bf16.gmra.mxu0 %v445
    %v600 = vpop.f32.mrf.mxu0
    %v601 = vadd.f32 %v419, %v600
    %v602 = vpop.f32.mrf.mxu0
    %v603 = vadd.f32 %v419, %v602
    %604 = vmatmul.bf16.gmra.mxu0 %v446
    %v605 = vpop.f32.mrf.mxu0
    %v606 = vadd.f32 %v419, %v605
    %v607 = vpop.f32.mrf.mxu0
    %v608 = vadd.f32 %v419, %v607
    %609 = vmatmul.bf16.gmra.mxu0 %v447
    %v610 = vpop.f32.mrf.mxu0
    %v611 = vadd.f32 %v419, %v610
    %v612 = vpop.f32.mrf.mxu0
    %613 = vdwg.mxu0
    %614 = vmatpush.bf16.msra.mxu0 %v555
    %615 = vmatpush.bf16.msra.mxu0 %v552
    %616 = vmatpush.bf16.msra.mxu0 %v549
    %617 = vmatpush.bf16.msra.mxu0 %v546
    %618 = vmatpush.bf16.msra.mxu0 %v543
    %619 = vmatpush.bf16.msra.mxu0 %v540
    %620 = vmatpush.bf16.msra.mxu0 %v537
    %621 = vmatpush.bf16.msra.mxu0 %v534
    %622 = vmatmul.bf16.gmra.mxu0 %v443
    %v623 = vpop.f32.mrf.mxu0
    %v624 = vadd.f32 %v420, %v623
    %v625 = vpop.f32.mrf.mxu0
    %v626 = vadd.f32 %v420, %v625
    %627 = vmatmul.bf16.gmra.mxu0 %v444
    %v628 = vpop.f32.mrf.mxu0
    %v629 = vadd.f32 %v420, %v628
    %v630 = vpop.f32.mrf.mxu0
    %v631 = vadd.f32 %v420, %v630
    %632 = vmatmul.bf16.gmra.mxu0 %v445
    %v633 = vpop.f32.mrf.mxu0
    %v634 = vadd.f32 %v420, %v633
    %v635 = vpop.f32.mrf.mxu0
    %v636 = vadd.f32 %v420, %v635
    %637 = vmatmul.bf16.gmra.mxu0 %v446
    %v638 = vpop.f32.mrf.mxu0
    %v639 = vadd.f32 %v420, %v638
    %v640 = vpop.f32.mrf.mxu0
    %v641 = vadd.f32 %v420, %v640
    %642 = vmatmul.bf16.gmra.mxu0 %v447
    %v643 = vpop.f32.mrf.mxu0
    %v644 = vadd.f32 %v420, %v643
    %v645 = vpop.f32.mrf.mxu0
    %646 = vdwg.mxu0
    %647 = vmatpush.bf16.msra.mxu0 %v556
    %648 = vmatpush.bf16.msra.mxu0 %v553
    %649 = vmatpush.bf16.msra.mxu0 %v550
    %650 = vmatpush.bf16.msra.mxu0 %v547
    %651 = vmatpush.bf16.msra.mxu0 %v544
    %652 = vmatpush.bf16.msra.mxu0 %v541
    %653 = vmatpush.bf16.msra.mxu0 %v538
    %654 = vmatpush.bf16.msra.mxu0 %v535
    %655 = vmatmul.bf16.gmra.mxu0 %v443
    %v656 = vpop.f32.mrf.mxu0
    %v657 = vadd.f32 %v421, %v656
    %v658 = vpop.f32.mrf.mxu0
    %v659 = vadd.f32 %v421, %v658
    %660 = vmatmul.bf16.gmra.mxu0 %v444
    %v661 = vpop.f32.mrf.mxu0
    %v662 = vadd.f32 %v421, %v661
    %v663 = vpop.f32.mrf.mxu0
    %v664 = vadd.f32 %v421, %v663
    %665 = vmatmul.bf16.gmra.mxu0 %v445
    %v666 = vpop.f32.mrf.mxu0
    %v667 = vadd.f32 %v421, %v666
    %v668 = vpop.f32.mrf.mxu0
    %v669 = vadd.f32 %v421, %v668
    %670 = vmatmul.bf16.gmra.mxu0 %v446
    %v671 = vpop.f32.mrf.mxu0
    %v672 = vadd.f32 %v421, %v671
    %v673 = vpop.f32.mrf.mxu0
    %v674 = vadd.f32 %v421, %v673
    %675 = vmatmul.bf16.gmra.mxu0 %v447
    %v676 = vpop.f32.mrf.mxu0
    %v677 = vadd.f32 %v421, %v676
    %v678 = vpop.f32.mrf.mxu0
    %679 = vdwg.mxu0
    %680 = vst [vmem:[#allocation3] sm:$0xff] %v591
    %681 = vst [vmem:[#allocation3 + $0x8] sm:$0xff] %v624
    %682 = vst [vmem:[#allocation3 + $0x10] sm:$0xff] %v657
    %683 = vst [vmem:[#allocation3 + $0x18] sm:$0xff] %v593
    %684 = vst [vmem:[#allocation3 + $0x20] sm:$0xff] %v626
    %685 = vst [vmem:[#allocation3 + $0x28] sm:$0xff] %v659
    %686 = vst [vmem:[#allocation3 + $0x30] sm:$0xff] %v596
    %687 = vst [vmem:[#allocation3 + $0x38] sm:$0xff] %v629
    %688 = vst [vmem:[#allocation3 + $0x40] sm:$0xff] %v662
    %689 = vst [vmem:[#allocation3 + $0x48] sm:$0xff] %v598
    %690 = vst [vmem:[#allocation3 + $0x50] sm:$0xff] %v631
    %691 = vst [vmem:[#allocation3 + $0x58] sm:$0xff] %v664
    %692 = vst [vmem:[#allocation3 + $0x60] sm:$0xff] %v601
    %693 = vst [vmem:[#allocation3 + $0x68] sm:$0xff] %v634
    %694 = vst [vmem:[#allocation3 + $0x70] sm:$0xff] %v667
    %695 = vst [vmem:[#allocation3 + $0x78] sm:$0xff] %v603
    %696 = vst [vmem:[#allocation3 + $0x80] sm:$0xff] %v636
    %697 = vst [vmem:[#allocation3 + $0x88] sm:$0xff] %v669
    %698 = vst [vmem:[#allocation3 + $0x90] sm:$0xff] %v606
    %699 = vst [vmem:[#allocation3 + $0x98] sm:$0xff] %v639
    %700 = vst [vmem:[#allocation3 + $0xa0] sm:$0xff] %v672
    %701 = vst [vmem:[#allocation3 + $0xa8] sm:$0xff] %v608
    %702 = vst [vmem:[#allocation3 + $0xb0] sm:$0xff] %v641
    %703 = vst [vmem:[#allocation3 + $0xb8] sm:$0xff] %v674
    %704 = vst [vmem:[#allocation3 + $0xc0] sm:$0xff] %v611
    %705 = vst [vmem:[#allocation3 + $0xc8] sm:$0xff] %v644
    %706 = vst [vmem:[#allocation3 + $0xd0] sm:$0xff] %v677
    %v707 = vld [vmem:[%s2] sm:$0xff]
    %v708 = vld [vmem:[%s4] sm:$0xff]
    %v709 = vld [vmem:[%s4 + $0x8] sm:$0xf]
    %v710 = vld [vmem:[%s4 + $0xc] sm:$0xff]
    %v711 = vld [vmem:[%s4 + $0x14] sm:$0xf]
    %v712 = vld [vmem:[%s4 + $0x18] sm:$0xff]
    %v713 = vld [vmem:[%s4 + $0x20] sm:$0xf]
    %v714 = vld [vmem:[%s4 + $0x24] sm:$0xff]
    %v715 = vld [vmem:[%s4 + $0x2c] sm:$0xf]
    %v716 = vld [vmem:[%s4 + $0x30] sm:$0xff]
    %v717 = vld [vmem:[%s4 + $0x38] sm:$0xf]
    %v718 = vld [vmem:[%s4 + $0x3c] sm:$0xff]
    %v719 = vld [vmem:[%s4 + $0x44] sm:$0xf]
    %v720 = vld [vmem:[%s4 + $0x48] sm:$0xff]
    %v721 = vld [vmem:[%s4 + $0x50] sm:$0xf]
    %v722 = vld [vmem:[%s4 + $0x54] sm:$0xff]
    %v723 = vld [vmem:[%s4 + $0x5c] sm:$0xf]
    %v724 = vld [vmem:[%s4 + $0x60] sm:$0xff]
    %v725 = vld [vmem:[%s4 + $0x68] sm:$0xf]
    %v726 = vld [vmem:[%s4 + $0x6c] sm:$0xff]
    %v727 = vld [vmem:[%s4 + $0x74] sm:$0xf]
    %v728 = vld [vmem:[%s4 + $0x78] sm:$0xff]
    %v729 = vld [vmem:[%s4 + $0x80] sm:$0xf]
    %v730 = vld [vmem:[%s4 + $0x84] sm:$0xff]
    %v731 = vld [vmem:[%s4 + $0x8c] sm:$0xf]
    %v732 = vld [vmem:[%s4 + $0x90] sm:$0xff]
    %v733 = vld [vmem:[%s4 + $0x98] sm:$0xf]
    %v734 = vld [vmem:[%s4 + $0x9c] sm:$0xff]
    %v735 = vld [vmem:[%s4 + $0xa4] sm:$0xf]
    %v736 = vld [vmem:[%s4 + $0xa8] sm:$0xff]
    %v737 = vld [vmem:[%s4 + $0xb0] sm:$0xf]
    %v738 = vld [vmem:[%s4 + $0xb4] sm:$0xff]
    %v739 = vld [vmem:[%s4 + $0xbc] sm:$0xf]
    %v740 = vld [vmem:[%s8] sm:$0xff]
    %v741 = vld [vmem:[%s8 + $0x8] sm:$0xf]
    %v742 = vld [vmem:[%s8 + $0xc] sm:$0xff]
    %v743 = vld [vmem:[%s8 + $0x14] sm:$0xf]
    %v744 = vld [vmem:[%s8 + $0x18] sm:$0xff]
    %v745 = vld [vmem:[%s8 + $0x20] sm:$0xf]
    %v746 = vld [vmem:[%s8 + $0x24] sm:$0xff]
    %v747 = vld [vmem:[%s8 + $0x2c] sm:$0xf]
    %v748 = vld [vmem:[%s8 + $0x30] sm:$0xff]
    %v749 = vld [vmem:[%s8 + $0x38] sm:$0xf]
    %v750 = vld [vmem:[%s8 + $0x3c] sm:$0xff]
    %v751 = vld [vmem:[%s8 + $0x44] sm:$0xf]
    %v752 = vld [vmem:[%s8 + $0x48] sm:$0xff]
    %v753 = vld [vmem:[%s8 + $0x50] sm:$0xf]
    %v754 = vld [vmem:[%s8 + $0x54] sm:$0xff]
    %v755 = vld [vmem:[%s8 + $0x5c] sm:$0xf]
    %v756 = vld [vmem:[%s8 + $0x60] sm:$0xff]
    %v757 = vld [vmem:[%s8 + $0x68] sm:$0xf]
    %v758 = vld [vmem:[%s8 + $0x6c] sm:$0xff]
    %v759 = vld [vmem:[%s8 + $0x74] sm:$0xf]
    %v760 = vld [vmem:[%s8 + $0x78] sm:$0xff]
    %v761 = vld [vmem:[%s8 + $0x80] sm:$0xf]
    %v762 = vld [vmem:[%s8 + $0x84] sm:$0xff]
    %v763 = vld [vmem:[%s8 + $0x8c] sm:$0xf]
    %v764 = vld [vmem:[%s8 + $0x90] sm:$0xff]
    %v765 = vld [vmem:[%s8 + $0x98] sm:$0xf]
    %v766 = vld [vmem:[%s8 + $0x9c] sm:$0xff]
    %v767 = vld [vmem:[%s8 + $0xa4] sm:$0xf]
    %v768 = vld [vmem:[%s8 + $0xa8] sm:$0xff]
    %v769 = vld [vmem:[%s8 + $0xb0] sm:$0xf]
    %v770 = vld [vmem:[%s8 + $0xb4] sm:$0xff]
    %v771 = vld [vmem:[%s8 + $0xbc] sm:$0xf]
    %v772 = vld [vmem:[%s6] sm:$0x7]
    %v774 = vperm.slane %v772, 0
    %v775 = vperm.slane %v772, 1
    %v776 = vperm.slane %v772, 2
    %v780 = vld [vmem:[%s10] sm:$0x7]
    %v782 = vperm.slane %v780, 0
    %v783 = vperm.slane %v780, 1
    %v784 = vperm.slane %v780, 2
    %v820 = vunpack.c.l.b16 %v708
    %v821 = vunpack.c.h.b16 %v708
    %v822 = vunpack.c.l.b16 %v709
    %v823 = vunpack.c.l.b16 %v710
    %v824 = vunpack.c.h.b16 %v710
    %v825 = vunpack.c.l.b16 %v711
    %v826 = vunpack.c.l.b16 %v712
    %v827 = vunpack.c.h.b16 %v712
    %v828 = vunpack.c.l.b16 %v713
    %v829 = vunpack.c.l.b16 %v714
    %v830 = vunpack.c.h.b16 %v714
    %v831 = vunpack.c.l.b16 %v715
    %v832 = vunpack.c.l.b16 %v716
    %v833 = vunpack.c.h.b16 %v716
    %v834 = vunpack.c.l.b16 %v717
    %v835 = vunpack.c.l.b16 %v718
    %v836 = vunpack.c.h.b16 %v718
    %v837 = vunpack.c.l.b16 %v719
    %v838 = vunpack.c.l.b16 %v720
    %v839 = vunpack.c.h.b16 %v720
    %v840 = vunpack.c.l.b16 %v721
    %v841 = vunpack.c.l.b16 %v722
    %v842 = vunpack.c.h.b16 %v722
    %v843 = vunpack.c.l.b16 %v723
    %v844 = vunpack.c.l.b16 %v724
    %v845 = vunpack.c.h.b16 %v724
    %v846 = vunpack.c.l.b16 %v725
    %v847 = vunpack.c.l.b16 %v726
    %v848 = vunpack.c.h.b16 %v726
    %v849 = vunpack.c.l.b16 %v727
    %v850 = vunpack.c.l.b16 %v728
    %v851 = vunpack.c.h.b16 %v728
    %v852 = vunpack.c.l.b16 %v729
    %v853 = vunpack.c.l.b16 %v730
    %v854 = vunpack.c.h.b16 %v730
    %v855 = vunpack.c.l.b16 %v731
    %v856 = vunpack.c.l.b16 %v732
    %v857 = vunpack.c.h.b16 %v732
    %v858 = vunpack.c.l.b16 %v733
    %v859 = vunpack.c.l.b16 %v734
    %v860 = vunpack.c.h.b16 %v734
    %v861 = vunpack.c.l.b16 %v735
    %v862 = vunpack.c.l.b16 %v736
    %v863 = vunpack.c.h.b16 %v736
    %v864 = vunpack.c.l.b16 %v737
    %v865 = vunpack.c.l.b16 %v738
    %v866 = vunpack.c.h.b16 %v738
    %v867 = vunpack.c.l.b16 %v739
    %v868 = vpack.c.b16 %v823, %v820
    %v869 = vpack.c.b16 %v824, %v821
    %v870 = vpack.c.b16 %v825, %v822
    %v871 = vpack.c.b16 %v829, %v826
    %v872 = vpack.c.b16 %v830, %v827
    %v873 = vpack.c.b16 %v831, %v828
    %v874 = vpack.c.b16 %v835, %v832
    %v875 = vpack.c.b16 %v836, %v833
    %v876 = vpack.c.b16 %v837, %v834
    %v877 = vpack.c.b16 %v841, %v838
    %v878 = vpack.c.b16 %v842, %v839
    %v879 = vpack.c.b16 %v843, %v840
    %v880 = vpack.c.b16 %v847, %v844
    %v881 = vpack.c.b16 %v848, %v845
    %v882 = vpack.c.b16 %v849, %v846
    %v883 = vpack.c.b16 %v853, %v850
    %v884 = vpack.c.b16 %v854, %v851
    %v885 = vpack.c.b16 %v855, %v852
    %v886 = vpack.c.b16 %v859, %v856
    %v887 = vpack.c.b16 %v860, %v857
    %v888 = vpack.c.b16 %v861, %v858
    %v889 = vpack.c.b16 %v865, %v862
    %v890 = vpack.c.b16 %v866, %v863
    %v891 = vpack.c.b16 %v867, %v864
    %916 = vmatpush.bf16.msra.mxu0 %v889
    %917 = vmatpush.bf16.msra.mxu0 %v886
    %918 = vmatpush.bf16.msra.mxu0 %v883
    %919 = vmatpush.bf16.msra.mxu0 %v880
    %920 = vmatpush.bf16.msra.mxu0 %v877
    %921 = vmatpush.bf16.msra.mxu0 %v874
    %922 = vmatpush.bf16.msra.mxu0 %v871
    %923 = vmatpush.bf16.msra.mxu0 %v868
    %924 = vmatmul.bf16.gmra.mxu0 0
    %v925 = vpop.f32.mrf.mxu0
    %v926 = vadd.f32 %v774, %v925
    %v927 = vpop.f32.mrf.mxu0
    %928 = vdwg.mxu0
    %929 = vmatpush.bf16.msra.mxu0 %v890
    %930 = vmatpush.bf16.msra.mxu0 %v887
    %931 = vmatpush.bf16.msra.mxu0 %v884
    %932 = vmatpush.bf16.msra.mxu0 %v881
    %933 = vmatpush.bf16.msra.mxu0 %v878
    %934 = vmatpush.bf16.msra.mxu0 %v875
    %935 = vmatpush.bf16.msra.mxu0 %v872
    %936 = vmatpush.bf16.msra.mxu0 %v869
    %937 = vmatmul.bf16.gmra.mxu0 0
    %v938 = vpop.f32.mrf.mxu0
    %v939 = vadd.f32 %v775, %v938
    %v940 = vpop.f32.mrf.mxu0
    %941 = vdwg.mxu0
    %942 = vmatpush.bf16.msra.mxu0 %v891
    %943 = vmatpush.bf16.msra.mxu0 %v888
    %944 = vmatpush.bf16.msra.mxu0 %v885
    %945 = vmatpush.bf16.msra.mxu0 %v882
    %946 = vmatpush.bf16.msra.mxu0 %v879
    %947 = vmatpush.bf16.msra.mxu0 %v876
    %948 = vmatpush.bf16.msra.mxu0 %v873
    %949 = vmatpush.bf16.msra.mxu0 %v870
    %950 = vmatmul.bf16.gmra.mxu0 0
    %v951 = vpop.f32.mrf.mxu0
    %v952 = vadd.f32 %v776, %v951
    %v953 = vpop.f32.mrf.mxu0
    %954 = vdwg.mxu0
    %s955 = smul.u32 0, 3
    %s956 = smul.addr %s955, 8
    %s957 = scalar_lea.vmem [#allocation2], %s956
    %v958 = vld [vmem:[%s957] sm:$0xff]
    %v959 = vld [vmem:[%s957 + $0x8] sm:$0xff]
    %v960 = vld [vmem:[%s957 + $0x10] sm:$0xff]
    %v961 = vadd.f32 %v958, %v926
    %v962 = vxor.u32 %v961, 2147483648
    %v963 = vmul.f32 %v962, 1.442695
    %v964 = vpow.pop %v963
    %v965 = vadd.f32 %v964, 1.0
    %v966 = vrcp.pop %v965
    %v967 = vmul.f32 %v965, %v966
    %v968 = vsub.f32 1.0, %v967
    %v969 = vmul.f32 %v966, %v968
    %v970 = vadd.f32 %v966, %v969
    %vm971 = vweird.f32 %v965
    %vm972 = vweird.f32 %v966
    %vm973 = vmor %vm971, %vm972
    %v974 = vsel %vm973, %v966, %v970
    %v975 = vand.u32 2147483647, %v965
    %vm976 = vcmp.eq.f32.partialorder %v975, 8.507059e+37
    %v977 = vand.u32 %v965, 2147483648
    %v978 = vor.u32 1.1754944e-38, %v977
    %v979 = vsel %vm976, %v978, %v974
    %v980 = vmul.f32 1.0, %v979
    %v981 = vadd.f32 %v959, %v939
    %v982 = vxor.u32 %v981, 2147483648
    %v983 = vmul.f32 %v982, 1.442695
    %v984 = vpow.pop %v983
    %v985 = vadd.f32 %v984, 1.0
    %v986 = vrcp.pop %v985
    %v987 = vmul.f32 %v985, %v986
    %v988 = vsub.f32 1.0, %v987
    %v989 = vmul.f32 %v986, %v988
    %v990 = vadd.f32 %v986, %v989
    %vm991 = vweird.f32 %v985
    %vm992 = vweird.f32 %v986
    %vm993 = vmor %vm991, %vm992
    %v994 = vsel %vm993, %v986, %v990
    %v995 = vand.u32 2147483647, %v985
    %vm996 = vcmp.eq.f32.partialorder %v995, 8.507059e+37
    %v997 = vand.u32 %v985, 2147483648
    %v998 = vor.u32 1.1754944e-38, %v997
    %v999 = vsel %vm996, %v998, %v994
    %v1000 = vmul.f32 1.0, %v999
    %v1001 = vmul.f32 %v980, %v952
    %v1002 = vadd.f32 %v960, %v1001
    %v1003 = vtanh.pop %v1002
    %v1004 = vsub.f32 1.0, %v1000
    %v1005 = vmul.f32 %v1004, %v1003
    %v1006 = vmul.f32 %v1000, 0.0
    %v1007 = vadd.f32 %v1005, %v1006
    %vm1008 = vcmp.gt.s32.totalorder %v707, 0
    %v1009 = vsel %vm1008, 1, 0
    %1010 = vset.pattern.permute.xlu0 0
    %1011 = vperm.xlu0 %1010, %v1009
    %v1012 = vpop.permute.xlu0 %1011
    %vm1013 = vcmp.eq.s32.totalorder %v1012, 1
    %v1014 = vsel %vm1013, %v1007, 0.0
    %v1015 = vpack.c.bf16 %v1014, %v1014
    %1016 = vmatpush.bf16.msra.mxu0 %v889
    %1017 = vmatpush.bf16.msra.mxu0 %v886
    %1018 = vmatpush.bf16.msra.mxu0 %v883
    %1019 = vmatpush.bf16.msra.mxu0 %v880
    %1020 = vmatpush.bf16.msra.mxu0 %v877
    %1021 = vmatpush.bf16.msra.mxu0 %v874
    %1022 = vmatpush.bf16.msra.mxu0 %v871
    %1023 = vmatpush.bf16.msra.mxu0 %v868
    %1024 = vmatmul.bf16.gmra.mxu0 %v1015
    %v1025 = vpop.f32.mrf.mxu0
    %v1026 = vadd.f32 %v774, %v1025
    %v1027 = vpop.f32.mrf.mxu0
    %1028 = vdwg.mxu0
    %1029 = vmatpush.bf16.msra.mxu0 %v890
    %1030 = vmatpush.bf16.msra.mxu0 %v887
    %1031 = vmatpush.bf16.msra.mxu0 %v884
    %1032 = vmatpush.bf16.msra.mxu0 %v881
    %1033 = vmatpush.bf16.msra.mxu0 %v878
    %1034 = vmatpush.bf16.msra.mxu0 %v875
    %1035 = vmatpush.bf16.msra.mxu0 %v872
    %1036 = vmatpush.bf16.msra.mxu0 %v869
    %1037 = vmatmul.bf16.gmra.mxu0 %v1015
    %v1038 = vpop.f32.mrf.mxu0
    %v1039 = vadd.f32 %v775, %v1038
    %v1040 = vpop.f32.mrf.mxu0
    %1041 = vdwg.mxu0
    %1042 = vmatpush.bf16.msra.mxu0 %v891
    %1043 = vmatpush.bf16.msra.mxu0 %v888
    %1044 = vmatpush.bf16.msra.mxu0 %v885
    %1045 = vmatpush.bf16.msra.mxu0 %v882
    %1046 = vmatpush.bf16.msra.mxu0 %v879
    %1047 = vmatpush.bf16.msra.mxu0 %v876
    %1048 = vmatpush.bf16.msra.mxu0 %v873
    %1049 = vmatpush.bf16.msra.mxu0 %v870
    %1050 = vmatmul.bf16.gmra.mxu0 %v1015
    %v1051 = vpop.f32.mrf.mxu0
    %v1052 = vadd.f32 %v776, %v1051
    %v1053 = vpop.f32.mrf.mxu0
    %1054 = vdwg.mxu0
    %s1055 = smul.u32 1, 3
    %s1056 = smul.addr %s1055, 8
    %s1057 = scalar_lea.vmem [#allocation2], %s1056
    %v1058 = vld [vmem:[%s1057] sm:$0xff]
    %v1059 = vld [vmem:[%s1057 + $0x8] sm:$0xff]
    %v1060 = vld [vmem:[%s1057 + $0x10] sm:$0xff]
    %v1061 = vadd.f32 %v1058, %v1026
    %v1062 = vxor.u32 %v1061, 2147483648
    %v1063 = vmul.f32 %v1062, 1.442695
    %v1064 = vpow.pop %v1063
    %v1065 = vadd.f32 %v1064, 1.0
    %v1066 = vrcp.pop %v1065
    %v1067 = vmul.f32 %v1065, %v1066
    %v1068 = vsub.f32 1.0, %v1067
    %v1069 = vmul.f32 %v1066, %v1068
    %v1070 = vadd.f32 %v1066, %v1069
    %vm1071 = vweird.f32 %v1065
    %vm1072 = vweird.f32 %v1066
    %vm1073 = vmor %vm1071, %vm1072
    %v1074 = vsel %vm1073, %v1066, %v1070
    %v1075 = vand.u32 2147483647, %v1065
    %vm1076 = vcmp.eq.f32.partialorder %v1075, 8.507059e+37
    %v1077 = vand.u32 %v1065, 2147483648
    %v1078 = vor.u32 1.1754944e-38, %v1077
    %v1079 = vsel %vm1076, %v1078, %v1074
    %v1080 = vmul.f32 1.0, %v1079
    %v1081 = vadd.f32 %v1059, %v1039
    %v1082 = vxor.u32 %v1081, 2147483648
    %v1083 = vmul.f32 %v1082, 1.442695
    %v1084 = vpow.pop %v1083
    %v1085 = vadd.f32 %v1084, 1.0
    %v1086 = vrcp.pop %v1085
    %v1087 = vmul.f32 %v1085, %v1086
    %v1088 = vsub.f32 1.0, %v1087
    %v1089 = vmul.f32 %v1086, %v1088
    %v1090 = vadd.f32 %v1086, %v1089
    %vm1091 = vweird.f32 %v1085
    %vm1092 = vweird.f32 %v1086
    %vm1093 = vmor %vm1091, %vm1092
    %v1094 = vsel %vm1093, %v1086, %v1090
    %v1095 = vand.u32 2147483647, %v1085
    %vm1096 = vcmp.eq.f32.partialorder %v1095, 8.507059e+37
    %v1097 = vand.u32 %v1085, 2147483648
    %v1098 = vor.u32 1.1754944e-38, %v1097
    %v1099 = vsel %vm1096, %v1098, %v1094
    %v1100 = vmul.f32 1.0, %v1099
    %v1101 = vmul.f32 %v1080, %v1052
    %v1102 = vadd.f32 %v1060, %v1101
    %v1103 = vtanh.pop %v1102
    %v1104 = vsub.f32 1.0, %v1100
    %v1105 = vmul.f32 %v1104, %v1103
    %v1106 = vmul.f32 %v1100, %v1014
    %v1107 = vadd.f32 %v1105, %v1106
    %vm1108 = vcmp.gt.s32.totalorder %v707, 1
    %v1109 = vsel %vm1108, 1, 0
    %1110 = vset.pattern.permute.xlu0 0
    %1111 = vperm.xlu0 %1110, %v1109
    %v1112 = vpop.permute.xlu0 %1111
    %vm1113 = vcmp.eq.s32.totalorder %v1112, 1
    %v1114 = vsel %vm1113, %v1107, %v1014
    %v1115 = vpack.c.bf16 %v1114, %v1114
    %1116 = vmatpush.bf16.msra.mxu0 %v889
    %1117 = vmatpush.bf16.msra.mxu0 %v886
    %1118 = vmatpush.bf16.msra.mxu0 %v883
    %1119 = vmatpush.bf16.msra.mxu0 %v880
    %1120 = vmatpush.bf16.msra.mxu0 %v877
    %1121 = vmatpush.bf16.msra.mxu0 %v874
    %1122 = vmatpush.bf16.msra.mxu0 %v871
    %1123 = vmatpush.bf16.msra.mxu0 %v868
    %1124 = vmatmul.bf16.gmra.mxu0 %v1115
    %v1125 = vpop.f32.mrf.mxu0
    %v1126 = vadd.f32 %v774, %v1125
    %v1127 = vpop.f32.mrf.mxu0
    %1128 = vdwg.mxu0
    %1129 = vmatpush.bf16.msra.mxu0 %v890
    %1130 = vmatpush.bf16.msra.mxu0 %v887
    %1131 = vmatpush.bf16.msra.mxu0 %v884
    %1132 = vmatpush.bf16.msra.mxu0 %v881
    %1133 = vmatpush.bf16.msra.mxu0 %v878
    %1134 = vmatpush.bf16.msra.mxu0 %v875
    %1135 = vmatpush.bf16.msra.mxu0 %v872
    %1136 = vmatpush.bf16.msra.mxu0 %v869
    %1137 = vmatmul.bf16.gmra.mxu0 %v1115
    %v1138 = vpop.f32.mrf.mxu0
    %v1139 = vadd.f32 %v775, %v1138
    %v1140 = vpop.f32.mrf.mxu0
    %1141 = vdwg.mxu0
    %1142 = vmatpush.bf16.msra.mxu0 %v891
    %1143 = vmatpush.bf16.msra.mxu0 %v888
    %1144 = vmatpush.bf16.msra.mxu0 %v885
    %1145 = vmatpush.bf16.msra.mxu0 %v882
    %1146 = vmatpush.bf16.msra.mxu0 %v879
    %1147 = vmatpush.bf16.msra.mxu0 %v876
    %1148 = vmatpush.bf16.msra.mxu0 %v873
    %1149 = vmatpush.bf16.msra.mxu0 %v870
    %1150 = vmatmul.bf16.gmra.mxu0 %v1115
    %v1151 = vpop.f32.mrf.mxu0
    %v1152 = vadd.f32 %v776, %v1151
    %v1153 = vpop.f32.mrf.mxu0
    %1154 = vdwg.mxu0
    %s1155 = smul.u32 2, 3
    %s1156 = smul.addr %s1155, 8
    %s1157 = scalar_lea.vmem [#allocation2], %s1156
    %v1158 = vld [vmem:[%s1157] sm:$0xff]
    %v1159 = vld [vmem:[%s1157 + $0x8] sm:$0xff]
    %v1160 = vld [vmem:[%s1157 + $0x10] sm:$0xff]
    %v1161 = vadd.f32 %v1158, %v1126
    %v1162 = vxor.u32 %v1161, 2147483648
    %v1163 = vmul.f32 %v1162, 1.442695
    %v1164 = vpow.pop %v1163
    %v1165 = vadd.f32 %v1164, 1.0
    %v1166 = vrcp.pop %v1165
    %v1167 = vmul.f32 %v1165, %v1166
    %v1168 = vsub.f32 1.0, %v1167
    %v1169 = vmul.f32 %v1166, %v1168
    %v1170 = vadd.f32 %v1166, %v1169
    %vm1171 = vweird.f32 %v1165
    %vm1172 = vweird.f32 %v1166
    %vm1173 = vmor %vm1171, %vm1172
    %v1174 = vsel %vm1173, %v1166, %v1170
    %v1175 = vand.u32 2147483647, %v1165
    %vm1176 = vcmp.eq.f32.partialorder %v1175, 8.507059e+37
    %v1177 = vand.u32 %v1165, 2147483648
    %v1178 = vor.u32 1.1754944e-38, %v1177
    %v1179 = vsel %vm1176, %v1178, %v1174
    %v1180 = vmul.f32 1.0, %v1179
    %v1181 = vadd.f32 %v1159, %v1139
    %v1182 = vxor.u32 %v1181, 2147483648
    %v1183 = vmul.f32 %v1182, 1.442695
    %v1184 = vpow.pop %v1183
    %v1185 = vadd.f32 %v1184, 1.0
    %v1186 = vrcp.pop %v1185
    %v1187 = vmul.f32 %v1185, %v1186
    %v1188 = vsub.f32 1.0, %v1187
    %v1189 = vmul.f32 %v1186, %v1188
    %v1190 = vadd.f32 %v1186, %v1189
    %vm1191 = vweird.f32 %v1185
    %vm1192 = vweird.f32 %v1186
    %vm1193 = vmor %vm1191, %vm1192
    %v1194 = vsel %vm1193, %v1186, %v1190
    %v1195 = vand.u32 2147483647, %v1185
    %vm1196 = vcmp.eq.f32.partialorder %v1195, 8.507059e+37
    %v1197 = vand.u32 %v1185, 2147483648
    %v1198 = vor.u32 1.1754944e-38, %v1197
    %v1199 = vsel %vm1196, %v1198, %v1194
    %v1200 = vmul.f32 1.0, %v1199
    %v1201 = vmul.f32 %v1180, %v1152
    %v1202 = vadd.f32 %v1160, %v1201
    %v1203 = vtanh.pop %v1202
    %v1204 = vsub.f32 1.0, %v1200
    %v1205 = vmul.f32 %v1204, %v1203
    %v1206 = vmul.f32 %v1200, %v1114
    %v1207 = vadd.f32 %v1205, %v1206
    %vm1208 = vcmp.gt.s32.totalorder %v707, 2
    %v1209 = vsel %vm1208, 1, 0
    %1210 = vset.pattern.permute.xlu0 0
    %1211 = vperm.xlu0 %1210, %v1209
    %v1212 = vpop.permute.xlu0 %1211
    %vm1213 = vcmp.eq.s32.totalorder %v1212, 1
    %v1214 = vsel %vm1213, %v1207, %v1114
    %v1215 = vpack.c.bf16 %v1214, %v1214
    %1216 = vmatpush.bf16.msra.mxu0 %v889
    %1217 = vmatpush.bf16.msra.mxu0 %v886
    %1218 = vmatpush.bf16.msra.mxu0 %v883
    %1219 = vmatpush.bf16.msra.mxu0 %v880
    %1220 = vmatpush.bf16.msra.mxu0 %v877
    %1221 = vmatpush.bf16.msra.mxu0 %v874
    %1222 = vmatpush.bf16.msra.mxu0 %v871
    %1223 = vmatpush.bf16.msra.mxu0 %v868
    %1224 = vmatmul.bf16.gmra.mxu0 %v1215
    %v1225 = vpop.f32.mrf.mxu0
    %v1226 = vadd.f32 %v774, %v1225
    %v1227 = vpop.f32.mrf.mxu0
    %1228 = vdwg.mxu0
    %1229 = vmatpush.bf16.msra.mxu0 %v890
    %1230 = vmatpush.bf16.msra.mxu0 %v887
    %1231 = vmatpush.bf16.msra.mxu0 %v884
    %1232 = vmatpush.bf16.msra.mxu0 %v881
    %1233 = vmatpush.bf16.msra.mxu0 %v878
    %1234 = vmatpush.bf16.msra.mxu0 %v875
    %1235 = vmatpush.bf16.msra.mxu0 %v872
    %1236 = vmatpush.bf16.msra.mxu0 %v869
    %1237 = vmatmul.bf16.gmra.mxu0 %v1215
    %v1238 = vpop.f32.mrf.mxu0
    %v1239 = vadd.f32 %v775, %v1238
    %v1240 = vpop.f32.mrf.mxu0
    %1241 = vdwg.mxu0
    %1242 = vmatpush.bf16.msra.mxu0 %v891
    %1243 = vmatpush.bf16.msra.mxu0 %v888
    %1244 = vmatpush.bf16.msra.mxu0 %v885
    %1245 = vmatpush.bf16.msra.mxu0 %v882
    %1246 = vmatpush.bf16.msra.mxu0 %v879
    %1247 = vmatpush.bf16.msra.mxu0 %v876
    %1248 = vmatpush.bf16.msra.mxu0 %v873
    %1249 = vmatpush.bf16.msra.mxu0 %v870
    %1250 = vmatmul.bf16.gmra.mxu0 %v1215
    %v1251 = vpop.f32.mrf.mxu0
    %v1252 = vadd.f32 %v776, %v1251
    %v1253 = vpop.f32.mrf.mxu0
    %1254 = vdwg.mxu0
    %s1255 = smul.u32 3, 3
    %s1256 = smul.addr %s1255, 8
    %s1257 = scalar_lea.vmem [#allocation2], %s1256
    %v1258 = vld [vmem:[%s1257] sm:$0xff]
    %v1259 = vld [vmem:[%s1257 + $0x8] sm:$0xff]
    %v1260 = vld [vmem:[%s1257 + $0x10] sm:$0xff]
    %v1261 = vadd.f32 %v1258, %v1226
    %v1262 = vxor.u32 %v1261, 2147483648
    %v1263 = vmul.f32 %v1262, 1.442695
    %v1264 = vpow.pop %v1263
    %v1265 = vadd.f32 %v1264, 1.0
    %v1266 = vrcp.pop %v1265
    %v1267 = vmul.f32 %v1265, %v1266
    %v1268 = vsub.f32 1.0, %v1267
    %v1269 = vmul.f32 %v1266, %v1268
    %v1270 = vadd.f32 %v1266, %v1269
    %vm1271 = vweird.f32 %v1265
    %vm1272 = vweird.f32 %v1266
    %vm1273 = vmor %vm1271, %vm1272
    %v1274 = vsel %vm1273, %v1266, %v1270
    %v1275 = vand.u32 2147483647, %v1265
    %vm1276 = vcmp.eq.f32.partialorder %v1275, 8.507059e+37
    %v1277 = vand.u32 %v1265, 2147483648
    %v1278 = vor.u32 1.1754944e-38, %v1277
    %v1279 = vsel %vm1276, %v1278, %v1274
    %v1280 = vmul.f32 1.0, %v1279
    %v1281 = vadd.f32 %v1259, %v1239
    %v1282 = vxor.u32 %v1281, 2147483648
    %v1283 = vmul.f32 %v1282, 1.442695
    %v1284 = vpow.pop %v1283
    %v1285 = vadd.f32 %v1284, 1.0
    %v1286 = vrcp.pop %v1285
    %v1287 = vmul.f32 %v1285, %v1286
    %v1288 = vsub.f32 1.0, %v1287
    %v1289 = vmul.f32 %v1286, %v1288
    %v1290 = vadd.f32 %v1286, %v1289
    %vm1291 = vweird.f32 %v1285
    %vm1292 = vweird.f32 %v1286
    %vm1293 = vmor %vm1291, %vm1292
    %v1294 = vsel %vm1293, %v1286, %v1290
    %v1295 = vand.u32 2147483647, %v1285
    %vm1296 = vcmp.eq.f32.partialorder %v1295, 8.507059e+37
    %v1297 = vand.u32 %v1285, 2147483648
    %v1298 = vor.u32 1.1754944e-38, %v1297
    %v1299 = vsel %vm1296, %v1298, %v1294
    %v1300 = vmul.f32 1.0, %v1299
    %v1301 = vmul.f32 %v1280, %v1252
    %v1302 = vadd.f32 %v1260, %v1301
    %v1303 = vtanh.pop %v1302
    %v1304 = vsub.f32 1.0, %v1300
    %v1305 = vmul.f32 %v1304, %v1303
    %v1306 = vmul.f32 %v1300, %v1214
    %v1307 = vadd.f32 %v1305, %v1306
    %vm1308 = vcmp.gt.s32.totalorder %v707, 3
    %v1309 = vsel %vm1308, 1, 0
    %1310 = vset.pattern.permute.xlu0 0
    %1311 = vperm.xlu0 %1310, %v1309
    %v1312 = vpop.permute.xlu0 %1311
    %vm1313 = vcmp.eq.s32.totalorder %v1312, 1
    %v1314 = vsel %vm1313, %v1307, %v1214
    %v1315 = vpack.c.bf16 %v1314, %v1314
    %1316 = vmatpush.bf16.msra.mxu0 %v889
    %1317 = vmatpush.bf16.msra.mxu0 %v886
    %1318 = vmatpush.bf16.msra.mxu0 %v883
    %1319 = vmatpush.bf16.msra.mxu0 %v880
    %1320 = vmatpush.bf16.msra.mxu0 %v877
    %1321 = vmatpush.bf16.msra.mxu0 %v874
    %1322 = vmatpush.bf16.msra.mxu0 %v871
    %1323 = vmatpush.bf16.msra.mxu0 %v868
    %1324 = vmatmul.bf16.gmra.mxu0 %v1315
    %v1325 = vpop.f32.mrf.mxu0
    %v1326 = vadd.f32 %v774, %v1325
    %v1327 = vpop.f32.mrf.mxu0
    %1328 = vdwg.mxu0
    %1329 = vmatpush.bf16.msra.mxu0 %v890
    %1330 = vmatpush.bf16.msra.mxu0 %v887
    %1331 = vmatpush.bf16.msra.mxu0 %v884
    %1332 = vmatpush.bf16.msra.mxu0 %v881
    %1333 = vmatpush.bf16.msra.mxu0 %v878
    %1334 = vmatpush.bf16.msra.mxu0 %v875
    %1335 = vmatpush.bf16.msra.mxu0 %v872
    %1336 = vmatpush.bf16.msra.mxu0 %v869
    %1337 = vmatmul.bf16.gmra.mxu0 %v1315
    %v1338 = vpop.f32.mrf.mxu0
    %v1339 = vadd.f32 %v775, %v1338
    %v1340 = vpop.f32.mrf.mxu0
    %1341 = vdwg.mxu0
    %1342 = vmatpush.bf16.msra.mxu0 %v891
    %1343 = vmatpush.bf16.msra.mxu0 %v888
    %1344 = vmatpush.bf16.msra.mxu0 %v885
    %1345 = vmatpush.bf16.msra.mxu0 %v882
    %1346 = vmatpush.bf16.msra.mxu0 %v879
    %1347 = vmatpush.bf16.msra.mxu0 %v876
    %1348 = vmatpush.bf16.msra.mxu0 %v873
    %1349 = vmatpush.bf16.msra.mxu0 %v870
    %1350 = vmatmul.bf16.gmra.mxu0 %v1315
    %v1351 = vpop.f32.mrf.mxu0
    %v1352 = vadd.f32 %v776, %v1351
    %v1353 = vpop.f32.mrf.mxu0
    %1354 = vdwg.mxu0
    %s1355 = smul.u32 4, 3
    %s1356 = smul.addr %s1355, 8
    %s1357 = scalar_lea.vmem [#allocation2], %s1356
    %v1358 = vld [vmem:[%s1357] sm:$0xff]
    %v1359 = vld [vmem:[%s1357 + $0x8] sm:$0xff]
    %v1360 = vld [vmem:[%s1357 + $0x10] sm:$0xff]
    %v1361 = vadd.f32 %v1358, %v1326
    %v1362 = vxor.u32 %v1361, 2147483648
    %v1363 = vmul.f32 %v1362, 1.442695
    %v1364 = vpow.pop %v1363
    %v1365 = vadd.f32 %v1364, 1.0
    %v1366 = vrcp.pop %v1365
    %v1367 = vmul.f32 %v1365, %v1366
    %v1368 = vsub.f32 1.0, %v1367
    %v1369 = vmul.f32 %v1366, %v1368
    %v1370 = vadd.f32 %v1366, %v1369
    %vm1371 = vweird.f32 %v1365
    %vm1372 = vweird.f32 %v1366
    %vm1373 = vmor %vm1371, %vm1372
    %v1374 = vsel %vm1373, %v1366, %v1370
    %v1375 = vand.u32 2147483647, %v1365
    %vm1376 = vcmp.eq.f32.partialorder %v1375, 8.507059e+37
    %v1377 = vand.u32 %v1365, 2147483648
    %v1378 = vor.u32 1.1754944e-38, %v1377
    %v1379 = vsel %vm1376, %v1378, %v1374
    %v1380 = vmul.f32 1.0, %v1379
    %v1381 = vadd.f32 %v1359, %v1339
    %v1382 = vxor.u32 %v1381, 2147483648
    %v1383 = vmul.f32 %v1382, 1.442695
    %v1384 = vpow.pop %v1383
    %v1385 = vadd.f32 %v1384, 1.0
    %v1386 = vrcp.pop %v1385
    %v1387 = vmul.f32 %v1385, %v1386
    %v1388 = vsub.f32 1.0, %v1387
    %v1389 = vmul.f32 %v1386, %v1388
    %v1390 = vadd.f32 %v1386, %v1389
    %vm1391 = vweird.f32 %v1385
    %vm1392 = vweird.f32 %v1386
    %vm1393 = vmor %vm1391, %vm1392
    %v1394 = vsel %vm1393, %v1386, %v1390
    %v1395 = vand.u32 2147483647, %v1385
    %vm1396 = vcmp.eq.f32.partialorder %v1395, 8.507059e+37
    %v1397 = vand.u32 %v1385, 2147483648
    %v1398 = vor.u32 1.1754944e-38, %v1397
    %v1399 = vsel %vm1396, %v1398, %v1394
    %v1400 = vmul.f32 1.0, %v1399
    %v1401 = vmul.f32 %v1380, %v1352
    %v1402 = vadd.f32 %v1360, %v1401
    %v1403 = vtanh.pop %v1402
    %v1404 = vsub.f32 1.0, %v1400
    %v1405 = vmul.f32 %v1404, %v1403
    %v1406 = vmul.f32 %v1400, %v1314
    %v1407 = vadd.f32 %v1405, %v1406
    %vm1408 = vcmp.gt.s32.totalorder %v707, 4
    %v1409 = vsel %vm1408, 1, 0
    %1410 = vset.pattern.permute.xlu0 0
    %1411 = vperm.xlu0 %1410, %v1409
    %v1412 = vpop.permute.xlu0 %1411
    %vm1413 = vcmp.eq.s32.totalorder %v1412, 1
    %v1414 = vsel %vm1413, %v1407, %v1314
    %v1415 = vpack.c.bf16 %v1414, %v1414
    %1416 = vmatpush.bf16.msra.mxu0 %v889
    %1417 = vmatpush.bf16.msra.mxu0 %v886
    %1418 = vmatpush.bf16.msra.mxu0 %v883
    %1419 = vmatpush.bf16.msra.mxu0 %v880
    %1420 = vmatpush.bf16.msra.mxu0 %v877
    %1421 = vmatpush.bf16.msra.mxu0 %v874
    %1422 = vmatpush.bf16.msra.mxu0 %v871
    %1423 = vmatpush.bf16.msra.mxu0 %v868
    %1424 = vmatmul.bf16.gmra.mxu0 %v1415
    %v1425 = vpop.f32.mrf.mxu0
    %v1426 = vadd.f32 %v774, %v1425
    %v1427 = vpop.f32.mrf.mxu0
    %1428 = vdwg.mxu0
    %1429 = vmatpush.bf16.msra.mxu0 %v890
    %1430 = vmatpush.bf16.msra.mxu0 %v887
    %1431 = vmatpush.bf16.msra.mxu0 %v884
    %1432 = vmatpush.bf16.msra.mxu0 %v881
    %1433 = vmatpush.bf16.msra.mxu0 %v878
    %1434 = vmatpush.bf16.msra.mxu0 %v875
    %1435 = vmatpush.bf16.msra.mxu0 %v872
    %1436 = vmatpush.bf16.msra.mxu0 %v869
    %1437 = vmatmul.bf16.gmra.mxu0 %v1415
    %v1438 = vpop.f32.mrf.mxu0
    %v1439 = vadd.f32 %v775, %v1438
    %v1440 = vpop.f32.mrf.mxu0
    %1441 = vdwg.mxu0
    %1442 = vmatpush.bf16.msra.mxu0 %v891
    %1443 = vmatpush.bf16.msra.mxu0 %v888
    %1444 = vmatpush.bf16.msra.mxu0 %v885
    %1445 = vmatpush.bf16.msra.mxu0 %v882
    %1446 = vmatpush.bf16.msra.mxu0 %v879
    %1447 = vmatpush.bf16.msra.mxu0 %v876
    %1448 = vmatpush.bf16.msra.mxu0 %v873
    %1449 = vmatpush.bf16.msra.mxu0 %v870
    %1450 = vmatmul.bf16.gmra.mxu0 %v1415
    %v1451 = vpop.f32.mrf.mxu0
    %v1452 = vadd.f32 %v776, %v1451
    %v1453 = vpop.f32.mrf.mxu0
    %1454 = vdwg.mxu0
    %s1455 = smul.u32 5, 3
    %s1456 = smul.addr %s1455, 8
    %s1457 = scalar_lea.vmem [#allocation2], %s1456
    %v1458 = vld [vmem:[%s1457] sm:$0xff]
    %v1459 = vld [vmem:[%s1457 + $0x8] sm:$0xff]
    %v1460 = vld [vmem:[%s1457 + $0x10] sm:$0xff]
    %v1461 = vadd.f32 %v1458, %v1426
    %v1462 = vxor.u32 %v1461, 2147483648
    %v1463 = vmul.f32 %v1462, 1.442695
    %v1464 = vpow.pop %v1463
    %v1465 = vadd.f32 %v1464, 1.0
    %v1466 = vrcp.pop %v1465
    %v1467 = vmul.f32 %v1465, %v1466
    %v1468 = vsub.f32 1.0, %v1467
    %v1469 = vmul.f32 %v1466, %v1468
    %v1470 = vadd.f32 %v1466, %v1469
    %vm1471 = vweird.f32 %v1465
    %vm1472 = vweird.f32 %v1466
    %vm1473 = vmor %vm1471, %vm1472
    %v1474 = vsel %vm1473, %v1466, %v1470
    %v1475 = vand.u32 2147483647, %v1465
    %vm1476 = vcmp.eq.f32.partialorder %v1475, 8.507059e+37
    %v1477 = vand.u32 %v1465, 2147483648
    %v1478 = vor.u32 1.1754944e-38, %v1477
    %v1479 = vsel %vm1476, %v1478, %v1474
    %v1480 = vmul.f32 1.0, %v1479
    %v1481 = vadd.f32 %v1459, %v1439
    %v1482 = vxor.u32 %v1481, 2147483648
    %v1483 = vmul.f32 %v1482, 1.442695
    %v1484 = vpow.pop %v1483
    %v1485 = vadd.f32 %v1484, 1.0
    %v1486 = vrcp.pop %v1485
    %v1487 = vmul.f32 %v1485, %v1486
    %v1488 = vsub.f32 1.0, %v1487
    %v1489 = vmul.f32 %v1486, %v1488
    %v1490 = vadd.f32 %v1486, %v1489
    %vm1491 = vweird.f32 %v1485
    %vm1492 = vweird.f32 %v1486
    %vm1493 = vmor %vm1491, %vm1492
    %v1494 = vsel %vm1493, %v1486, %v1490
    %v1495 = vand.u32 2147483647, %v1485
    %vm1496 = vcmp.eq.f32.partialorder %v1495, 8.507059e+37
    %v1497 = vand.u32 %v1485, 2147483648
    %v1498 = vor.u32 1.1754944e-38, %v1497
    %v1499 = vsel %vm1496, %v1498, %v1494
    %v1500 = vmul.f32 1.0, %v1499
    %v1501 = vmul.f32 %v1480, %v1452
    %v1502 = vadd.f32 %v1460, %v1501
    %v1503 = vtanh.pop %v1502
    %v1504 = vsub.f32 1.0, %v1500
    %v1505 = vmul.f32 %v1504, %v1503
    %v1506 = vmul.f32 %v1500, %v1414
    %v1507 = vadd.f32 %v1505, %v1506
    %vm1508 = vcmp.gt.s32.totalorder %v707, 5
    %v1509 = vsel %vm1508, 1, 0
    %1510 = vset.pattern.permute.xlu0 0
    %1511 = vperm.xlu0 %1510, %v1509
    %v1512 = vpop.permute.xlu0 %1511
    %vm1513 = vcmp.eq.s32.totalorder %v1512, 1
    %v1514 = vsel %vm1513, %v1507, %v1414
    %v1515 = vpack.c.bf16 %v1514, %v1514
    %1516 = vmatpush.bf16.msra.mxu0 %v889
    %1517 = vmatpush.bf16.msra.mxu0 %v886
    %1518 = vmatpush.bf16.msra.mxu0 %v883
    %1519 = vmatpush.bf16.msra.mxu0 %v880
    %1520 = vmatpush.bf16.msra.mxu0 %v877
    %1521 = vmatpush.bf16.msra.mxu0 %v874
    %1522 = vmatpush.bf16.msra.mxu0 %v871
    %1523 = vmatpush.bf16.msra.mxu0 %v868
    %1524 = vmatmul.bf16.gmra.mxu0 %v1515
    %v1525 = vpop.f32.mrf.mxu0
    %v1526 = vadd.f32 %v774, %v1525
    %v1527 = vpop.f32.mrf.mxu0
    %1528 = vdwg.mxu0
    %1529 = vmatpush.bf16.msra.mxu0 %v890
    %1530 = vmatpush.bf16.msra.mxu0 %v887
    %1531 = vmatpush.bf16.msra.mxu0 %v884
    %1532 = vmatpush.bf16.msra.mxu0 %v881
    %1533 = vmatpush.bf16.msra.mxu0 %v878
    %1534 = vmatpush.bf16.msra.mxu0 %v875
    %1535 = vmatpush.bf16.msra.mxu0 %v872
    %1536 = vmatpush.bf16.msra.mxu0 %v869
    %1537 = vmatmul.bf16.gmra.mxu0 %v1515
    %v1538 = vpop.f32.mrf.mxu0
    %v1539 = vadd.f32 %v775, %v1538
    %v1540 = vpop.f32.mrf.mxu0
    %1541 = vdwg.mxu0
    %1542 = vmatpush.bf16.msra.mxu0 %v891
    %1543 = vmatpush.bf16.msra.mxu0 %v888
    %1544 = vmatpush.bf16.msra.mxu0 %v885
    %1545 = vmatpush.bf16.msra.mxu0 %v882
    %1546 = vmatpush.bf16.msra.mxu0 %v879
    %1547 = vmatpush.bf16.msra.mxu0 %v876
    %1548 = vmatpush.bf16.msra.mxu0 %v873
    %1549 = vmatpush.bf16.msra.mxu0 %v870
    %1550 = vmatmul.bf16.gmra.mxu0 %v1515
    %v1551 = vpop.f32.mrf.mxu0
    %v1552 = vadd.f32 %v776, %v1551
    %v1553 = vpop.f32.mrf.mxu0
    %1554 = vdwg.mxu0
    %s1555 = smul.u32 6, 3
    %s1556 = smul.addr %s1555, 8
    %s1557 = scalar_lea.vmem [#allocation2], %s1556
    %v1558 = vld [vmem:[%s1557] sm:$0xff]
    %v1559 = vld [vmem:[%s1557 + $0x8] sm:$0xff]
    %v1560 = vld [vmem:[%s1557 + $0x10] sm:$0xff]
    %v1561 = vadd.f32 %v1558, %v1526
    %v1562 = vxor.u32 %v1561, 2147483648
    %v1563 = vmul.f32 %v1562, 1.442695
    %v1564 = vpow.pop %v1563
    %v1565 = vadd.f32 %v1564, 1.0
    %v1566 = vrcp.pop %v1565
    %v1567 = vmul.f32 %v1565, %v1566
    %v1568 = vsub.f32 1.0, %v1567
    %v1569 = vmul.f32 %v1566, %v1568
    %v1570 = vadd.f32 %v1566, %v1569
    %vm1571 = vweird.f32 %v1565
    %vm1572 = vweird.f32 %v1566
    %vm1573 = vmor %vm1571, %vm1572
    %v1574 = vsel %vm1573, %v1566, %v1570
    %v1575 = vand.u32 2147483647, %v1565
    %vm1576 = vcmp.eq.f32.partialorder %v1575, 8.507059e+37
    %v1577 = vand.u32 %v1565, 2147483648
    %v1578 = vor.u32 1.1754944e-38, %v1577
    %v1579 = vsel %vm1576, %v1578, %v1574
    %v1580 = vmul.f32 1.0, %v1579
    %v1581 = vadd.f32 %v1559, %v1539
    %v1582 = vxor.u32 %v1581, 2147483648
    %v1583 = vmul.f32 %v1582, 1.442695
    %v1584 = vpow.pop %v1583
    %v1585 = vadd.f32 %v1584, 1.0
    %v1586 = vrcp.pop %v1585
    %v1587 = vmul.f32 %v1585, %v1586
    %v1588 = vsub.f32 1.0, %v1587
    %v1589 = vmul.f32 %v1586, %v1588
    %v1590 = vadd.f32 %v1586, %v1589
    %vm1591 = vweird.f32 %v1585
    %vm1592 = vweird.f32 %v1586
    %vm1593 = vmor %vm1591, %vm1592
    %v1594 = vsel %vm1593, %v1586, %v1590
    %v1595 = vand.u32 2147483647, %v1585
    %vm1596 = vcmp.eq.f32.partialorder %v1595, 8.507059e+37
    %v1597 = vand.u32 %v1585, 2147483648
    %v1598 = vor.u32 1.1754944e-38, %v1597
    %v1599 = vsel %vm1596, %v1598, %v1594
    %v1600 = vmul.f32 1.0, %v1599
    %v1601 = vmul.f32 %v1580, %v1552
    %v1602 = vadd.f32 %v1560, %v1601
    %v1603 = vtanh.pop %v1602
    %v1604 = vsub.f32 1.0, %v1600
    %v1605 = vmul.f32 %v1604, %v1603
    %v1606 = vmul.f32 %v1600, %v1514
    %v1607 = vadd.f32 %v1605, %v1606
    %vm1608 = vcmp.gt.s32.totalorder %v707, 6
    %v1609 = vsel %vm1608, 1, 0
    %1610 = vset.pattern.permute.xlu0 0
    %1611 = vperm.xlu0 %1610, %v1609
    %v1612 = vpop.permute.xlu0 %1611
    %vm1613 = vcmp.eq.s32.totalorder %v1612, 1
    %v1614 = vsel %vm1613, %v1607, %v1514
    %v1615 = vpack.c.bf16 %v1614, %v1614
    %1616 = vmatpush.bf16.msra.mxu0 %v889
    %1617 = vmatpush.bf16.msra.mxu0 %v886
    %1618 = vmatpush.bf16.msra.mxu0 %v883
    %1619 = vmatpush.bf16.msra.mxu0 %v880
    %1620 = vmatpush.bf16.msra.mxu0 %v877
    %1621 = vmatpush.bf16.msra.mxu0 %v874
    %1622 = vmatpush.bf16.msra.mxu0 %v871
    %1623 = vmatpush.bf16.msra.mxu0 %v868
    %1624 = vmatmul.bf16.gmra.mxu0 %v1615
    %v1625 = vpop.f32.mrf.mxu0
    %v1626 = vadd.f32 %v774, %v1625
    %v1627 = vpop.f32.mrf.mxu0
    %1628 = vdwg.mxu0
    %1629 = vmatpush.bf16.msra.mxu0 %v890
    %1630 = vmatpush.bf16.msra.mxu0 %v887
    %1631 = vmatpush.bf16.msra.mxu0 %v884
    %1632 = vmatpush.bf16.msra.mxu0 %v881
    %1633 = vmatpush.bf16.msra.mxu0 %v878
    %1634 = vmatpush.bf16.msra.mxu0 %v875
    %1635 = vmatpush.bf16.msra.mxu0 %v872
    %1636 = vmatpush.bf16.msra.mxu0 %v869
    %1637 = vmatmul.bf16.gmra.mxu0 %v1615
    %v1638 = vpop.f32.mrf.mxu0
    %v1639 = vadd.f32 %v775, %v1638
    %v1640 = vpop.f32.mrf.mxu0
    %1641 = vdwg.mxu0
    %1642 = vmatpush.bf16.msra.mxu0 %v891
    %1643 = vmatpush.bf16.msra.mxu0 %v888
    %1644 = vmatpush.bf16.msra.mxu0 %v885
    %1645 = vmatpush.bf16.msra.mxu0 %v882
    %1646 = vmatpush.bf16.msra.mxu0 %v879
    %1647 = vmatpush.bf16.msra.mxu0 %v876
    %1648 = vmatpush.bf16.msra.mxu0 %v873
    %1649 = vmatpush.bf16.msra.mxu0 %v870
    %1650 = vmatmul.bf16.gmra.mxu0 %v1615
    %v1651 = vpop.f32.mrf.mxu0
    %v1652 = vadd.f32 %v776, %v1651
    %v1653 = vpop.f32.mrf.mxu0
    %1654 = vdwg.mxu0
    %s1655 = smul.u32 7, 3
    %s1656 = smul.addr %s1655, 8
    %s1657 = scalar_lea.vmem [#allocation2], %s1656
    %v1658 = vld [vmem:[%s1657] sm:$0xff]
    %v1659 = vld [vmem:[%s1657 + $0x8] sm:$0xff]
    %v1660 = vld [vmem:[%s1657 + $0x10] sm:$0xff]
    %v1661 = vadd.f32 %v1658, %v1626
    %v1662 = vxor.u32 %v1661, 2147483648
    %v1663 = vmul.f32 %v1662, 1.442695
    %v1664 = vpow.pop %v1663
    %v1665 = vadd.f32 %v1664, 1.0
    %v1666 = vrcp.pop %v1665
    %v1667 = vmul.f32 %v1665, %v1666
    %v1668 = vsub.f32 1.0, %v1667
    %v1669 = vmul.f32 %v1666, %v1668
    %v1670 = vadd.f32 %v1666, %v1669
    %vm1671 = vweird.f32 %v1665
    %vm1672 = vweird.f32 %v1666
    %vm1673 = vmor %vm1671, %vm1672
    %v1674 = vsel %vm1673, %v1666, %v1670
    %v1675 = vand.u32 2147483647, %v1665
    %vm1676 = vcmp.eq.f32.partialorder %v1675, 8.507059e+37
    %v1677 = vand.u32 %v1665, 2147483648
    %v1678 = vor.u32 1.1754944e-38, %v1677
    %v1679 = vsel %vm1676, %v1678, %v1674
    %v1680 = vmul.f32 1.0, %v1679
    %v1681 = vadd.f32 %v1659, %v1639
    %v1682 = vxor.u32 %v1681, 2147483648
    %v1683 = vmul.f32 %v1682, 1.442695
    %v1684 = vpow.pop %v1683
    %v1685 = vadd.f32 %v1684, 1.0
    %v1686 = vrcp.pop %v1685
    %v1687 = vmul.f32 %v1685, %v1686
    %v1688 = vsub.f32 1.0, %v1687
    %v1689 = vmul.f32 %v1686, %v1688
    %v1690 = vadd.f32 %v1686, %v1689
    %vm1691 = vweird.f32 %v1685
    %vm1692 = vweird.f32 %v1686
    %vm1693 = vmor %vm1691, %vm1692
    %v1694 = vsel %vm1693, %v1686, %v1690
    %v1695 = vand.u32 2147483647, %v1685
    %vm1696 = vcmp.eq.f32.partialorder %v1695, 8.507059e+37
    %v1697 = vand.u32 %v1685, 2147483648
    %v1698 = vor.u32 1.1754944e-38, %v1697
    %v1699 = vsel %vm1696, %v1698, %v1694
    %v1700 = vmul.f32 1.0, %v1699
    %v1701 = vmul.f32 %v1680, %v1652
    %v1702 = vadd.f32 %v1660, %v1701
    %v1703 = vtanh.pop %v1702
    %v1704 = vsub.f32 1.0, %v1700
    %v1705 = vmul.f32 %v1704, %v1703
    %v1706 = vmul.f32 %v1700, %v1614
    %v1707 = vadd.f32 %v1705, %v1706
    %vm1708 = vcmp.gt.s32.totalorder %v707, 7
    %v1709 = vsel %vm1708, 1, 0
    %1710 = vset.pattern.permute.xlu0 0
    %1711 = vperm.xlu0 %1710, %v1709
    %v1712 = vpop.permute.xlu0 %1711
    %vm1713 = vcmp.eq.s32.totalorder %v1712, 1
    %v1714 = vsel %vm1713, %v1707, %v1614
    %v1715 = vpack.c.bf16 %v1714, %v1714
    %v1716 = vld [vmem:[%s11] sm:$0xff]
    %v1717 = vld [vmem:[%s11 + $0x8] sm:$0xff]
    %v1718 = vld [vmem:[%s11 + $0x10] sm:$0xff]
    %v1719 = vld [vmem:[%s11 + $0x18] sm:$0xff]
    %v1720 = vld [vmem:[%s11 + $0x20] sm:$0xff]
    %v1721 = vld [vmem:[%s11 + $0x28] sm:$0xff]
    %v1722 = vld [vmem:[%s11 + $0x30] sm:$0xff]
    %v1723 = vld [vmem:[%s11 + $0x38] sm:$0xff]
    %v1724 = vld [vmem:[%s11 + $0x40] sm:$0xff]
    %v1725 = vld [vmem:[%s11 + $0x48] sm:$0xff]
    %v1726 = vld [vmem:[%s11 + $0x50] sm:$0xff]
    %v1727 = vld [vmem:[%s11 + $0x58] sm:$0xff]
    %v1728 = vld [vmem:[%s11 + $0x60] sm:$0xff]
    %v1729 = vld [vmem:[%s11 + $0x68] sm:$0xff]
    %v1730 = vld [vmem:[%s11 + $0x70] sm:$0xff]
    %v1731 = vld [vmem:[%s11 + $0x78] sm:$0xff]
    %v1732 = vld [vmem:[%s12] sm:$0x3]
    %v1734 = vperm.slane %v1732, 0
    %v1735 = vperm.slane %v1732, 1
    %v1754 = vunpack.c.l.b16 %v1716
    %v1755 = vunpack.c.h.b16 %v1716
    %v1756 = vunpack.c.l.b16 %v1717
    %v1757 = vunpack.c.h.b16 %v1717
    %v1758 = vunpack.c.l.b16 %v1718
    %v1759 = vunpack.c.h.b16 %v1718
    %v1760 = vunpack.c.l.b16 %v1719
    %v1761 = vunpack.c.h.b16 %v1719
    %v1762 = vunpack.c.l.b16 %v1720
    %v1763 = vunpack.c.h.b16 %v1720
    %v1764 = vunpack.c.l.b16 %v1721
    %v1765 = vunpack.c.h.b16 %v1721
    %v1766 = vunpack.c.l.b16 %v1722
    %v1767 = vunpack.c.h.b16 %v1722
    %v1768 = vunpack.c.l.b16 %v1723
    %v1769 = vunpack.c.h.b16 %v1723
    %v1770 = vunpack.c.l.b16 %v1724
    %v1771 = vunpack.c.h.b16 %v1724
    %v1772 = vunpack.c.l.b16 %v1725
    %v1773 = vunpack.c.h.b16 %v1725
    %v1774 = vunpack.c.l.b16 %v1726
    %v1775 = vunpack.c.h.b16 %v1726
    %v1776 = vunpack.c.l.b16 %v1727
    %v1777 = vunpack.c.h.b16 %v1727
    %v1778 = vunpack.c.l.b16 %v1728
    %v1779 = vunpack.c.h.b16 %v1728
    %v1780 = vunpack.c.l.b16 %v1729
    %v1781 = vunpack.c.h.b16 %v1729
    %v1782 = vunpack.c.l.b16 %v1730
    %v1783 = vunpack.c.h.b16 %v1730
    %v1784 = vunpack.c.l.b16 %v1731
    %v1785 = vunpack.c.h.b16 %v1731
    %v1786 = vpack.c.b16 %v1756, %v1754
    %v1787 = vpack.c.b16 %v1757, %v1755
    %v1788 = vpack.c.b16 %v1760, %v1758
    %v1789 = vpack.c.b16 %v1761, %v1759
    %v1790 = vpack.c.b16 %v1764, %v1762
    %v1791 = vpack.c.b16 %v1765, %v1763
    %v1792 = vpack.c.b16 %v1768, %v1766
    %v1793 = vpack.c.b16 %v1769, %v1767
    %v1794 = vpack.c.b16 %v1772, %v1770
    %v1795 = vpack.c.b16 %v1773, %v1771
    %v1796 = vpack.c.b16 %v1776, %v1774
    %v1797 = vpack.c.b16 %v1777, %v1775
    %v1798 = vpack.c.b16 %v1780, %v1778
    %v1799 = vpack.c.b16 %v1781, %v1779
    %v1800 = vpack.c.b16 %v1784, %v1782
    %v1801 = vpack.c.b16 %v1785, %v1783
    %1818 = vmatpush.bf16.msra.mxu0 %v1800
    %1819 = vmatpush.bf16.msra.mxu0 %v1798
    %1820 = vmatpush.bf16.msra.mxu0 %v1796
    %1821 = vmatpush.bf16.msra.mxu0 %v1794
    %1822 = vmatpush.bf16.msra.mxu0 %v1792
    %1823 = vmatpush.bf16.msra.mxu0 %v1790
    %1824 = vmatpush.bf16.msra.mxu0 %v1788
    %1825 = vmatpush.bf16.msra.mxu0 %v1786
    %1826 = vmatmul.bf16.gmra.mxu0 %v1715
    %v1827 = vpop.f32.mrf.mxu0
    %v1828 = vadd.f32 %v1734, %v1827
    %v1829 = vpop.f32.mrf.mxu0
    %1830 = vdwg.mxu0
    %1831 = vmatpush.bf16.msra.mxu0 %v1801
    %1832 = vmatpush.bf16.msra.mxu0 %v1799
    %1833 = vmatpush.bf16.msra.mxu0 %v1797
    %1834 = vmatpush.bf16.msra.mxu0 %v1795
    %1835 = vmatpush.bf16.msra.mxu0 %v1793
    %1836 = vmatpush.bf16.msra.mxu0 %v1791
    %1837 = vmatpush.bf16.msra.mxu0 %v1789
    %1838 = vmatpush.bf16.msra.mxu0 %v1787
    %1839 = vmatmul.bf16.gmra.mxu0 %v1715
    %v1840 = vpop.f32.mrf.mxu0
    %v1841 = vadd.f32 %v1735, %v1840
    %v1842 = vpop.f32.mrf.mxu0
    %1843 = vdwg.mxu0
    %v1844 = vmul.f32 %v1841, 0.5
    %v1845 = vmul.f32 %v1844, 1.442695
    %v1846 = vpow.pop %v1845
    %v1847 = vld [vmem:[%s13] sm:$0xff]
    %v1848 = vmul.f32 %v1846, %v1847
    %v1849 = vadd.f32 %v1828, %v1848
    %1850 = vst [vmem:[#allocation5] sm:$0xff] %v1849
    %v1851 = vld [vmem:[%s14] sm:$0xff]
    %v1852 = vld [vmem:[%s15] sm:$0xff]
    %v1853 = vsub.f32 0.0, %v1852
    %v1854 = vmul.f32 %v1853, 1.442695
    %v1855 = vpow.pop %v1854
    %v1857 = vrot.slane %v1849, 1
    %v1858 = vrot.slane %v1849, 2
    %v1859 = vrot.slane %v1849, 3
    %v1860 = vrot.slane %v1849, 4
    %v1861 = vrot.slane %v1849, 5
    %v1862 = vrot.slane %v1849, 6
    %v1863 = vrot.slane %v1849, 7
    %v1864 = vperm.slane %v1849, 0
    %v1865 = vperm.slane %v1857, 0
    %v1866 = vperm.slane %v1858, 0
    %v1867 = vperm.slane %v1859, 0
    %v1868 = vperm.slane %v1860, 0
    %v1869 = vperm.slane %v1861, 0
    %v1870 = vperm.slane %v1862, 0
    %v1871 = vperm.slane %v1863, 0
    %v1880 = vsub.f32 %v1864, %v1851
    %v1881 = vsub.f32 %v1865, %v1851
    %v1882 = vsub.f32 %v1866, %v1851
    %v1883 = vsub.f32 %v1867, %v1851
    %v1884 = vsub.f32 %v1868, %v1851
    %v1885 = vsub.f32 %v1869, %v1851
    %v1886 = vsub.f32 %v1870, %v1851
    %v1887 = vsub.f32 %v1871, %v1851
    %v1888 = vmul.f32 %v1880, %v1880
    %v1889 = vmul.f32 %v1881, %v1881
    %v1890 = vmul.f32 %v1882, %v1882
    %v1891 = vmul.f32 %v1883, %v1883
    %v1892 = vmul.f32 %v1884, %v1884
    %v1893 = vmul.f32 %v1885, %v1885
    %v1894 = vmul.f32 %v1886, %v1886
    %v1895 = vmul.f32 %v1887, %v1887
    %v1896 = vmul.f32 %v1888, %v1855
    %v1897 = vmul.f32 %v1889, %v1855
    %v1898 = vmul.f32 %v1890, %v1855
    %v1899 = vmul.f32 %v1891, %v1855
    %v1900 = vmul.f32 %v1892, %v1855
    %v1901 = vmul.f32 %v1893, %v1855
    %v1902 = vmul.f32 %v1894, %v1855
    %v1903 = vmul.f32 %v1895, %v1855
    %1904 = vadd.xlane.f32.xlu0 %v1896
    %v1905 = vpop.xlane.xlu0 %1904
    %1906 = vadd.xlane.f32.xlu0 %v1897
    %v1907 = vpop.xlane.xlu0 %1906
    %1908 = vadd.xlane.f32.xlu0 %v1898
    %v1909 = vpop.xlane.xlu0 %1908
    %1910 = vadd.xlane.f32.xlu0 %v1899
    %v1911 = vpop.xlane.xlu0 %1910
    %1912 = vadd.xlane.f32.xlu0 %v1900
    %v1913 = vpop.xlane.xlu0 %1912
    %1914 = vadd.xlane.f32.xlu0 %v1901
    %v1915 = vpop.xlane.xlu0 %1914
    %1916 = vadd.xlane.f32.xlu0 %v1902
    %v1917 = vpop.xlane.xlu0 %1916
    %1918 = vadd.xlane.f32.xlu0 %v1903
    %v1919 = vpop.xlane.xlu0 %1918
    %v1920 = vsub.f32 0.0, %v1905
    %v1921 = vsub.f32 0.0, %v1907
    %v1922 = vsub.f32 0.0, %v1909
    %v1923 = vsub.f32 0.0, %v1911
    %v1924 = vsub.f32 0.0, %v1913
    %v1925 = vsub.f32 0.0, %v1915
    %v1926 = vsub.f32 0.0, %v1917
    %v1927 = vsub.f32 0.0, %v1919
    %v1936 = vlaneseq
    %v1937 = vand.u32 %v1936, 127
    %v1938 = vperm.slane %v1920, %v1937
    %v1939 = vperm.slane %v1921, %v1937
    %v1940 = vperm.slane %v1922, %v1937
    %v1941 = vperm.slane %v1923, %v1937
    %v1942 = vperm.slane %v1924, %v1937
    %v1943 = vperm.slane %v1925, %v1937
    %v1944 = vperm.slane %v1926, %v1937
    %v1945 = vperm.slane %v1927, %v1937
    %vm1946 = vcmask 1041409
    %v1947 = vsel %vm1946, %v1939, %v1938
    %vm1948 = vcmask 1042434
    %v1949 = vsel %vm1948, %v1940, %v1947
    %vm1950 = vcmask 1043459
    %v1951 = vsel %vm1950, %v1941, %v1949
    %vm1952 = vcmask 1044484
    %v1953 = vsel %vm1952, %v1942, %v1951
    %vm1954 = vcmask 1045509
    %v1955 = vsel %vm1954, %v1943, %v1953
    %vm1956 = vcmask 1046534
    %v1957 = vsel %vm1956, %v1944, %v1955
    %vm1958 = vcmask 1047559
    %v1959 = vsel %vm1958, %v1945, %v1957
    %vm1961 = vcmask 64512
    %v1962 = vsel %vm1961, %v1959, -inf
    %1963 = vmax.xlane.f32.xlu0 %v1962
    %v1964 = vpop.xlane.xlu0 %1963
    %v1966 = vperm.slane %v1964, 0
    %v1967 = vperm.slane %v1964, 1
    %v1968 = vperm.slane %v1964, 2
    %v1969 = vperm.slane %v1964, 3
    %v1970 = vperm.slane %v1964, 4
    %v1971 = vperm.slane %v1964, 5
    %v1972 = vperm.slane %v1964, 6
    %v1973 = vperm.slane %v1964, 7
    %v1982 = vsub.f32 %v1920, %v1966
    %v1983 = vsub.f32 %v1921, %v1967
    %v1984 = vsub.f32 %v1922, %v1968
    %v1985 = vsub.f32 %v1923, %v1969
    %v1986 = vsub.f32 %v1924, %v1970
    %v1987 = vsub.f32 %v1925, %v1971
    %v1988 = vsub.f32 %v1926, %v1972
    %v1989 = vsub.f32 %v1927, %v1973
    %v1990 = vmul.f32 %v1982, 1.442695
    %v1991 = vpow.pop %v1990
    %v1992 = vmul.f32 %v1983, 1.442695
    %v1993 = vpow.pop %v1992
    %v1994 = vmul.f32 %v1984, 1.442695
    %v1995 = vpow.pop %v1994
    %v1996 = vmul.f32 %v1985, 1.442695
    %v1997 = vpow.pop %v1996
    %v1998 = vmul.f32 %v1986, 1.442695
    %v1999 = vpow.pop %v1998
    %v2000 = vmul.f32 %v1987, 1.442695
    %v2001 = vpow.pop %v2000
    %v2002 = vmul.f32 %v1988, 1.442695
    %v2003 = vpow.pop %v2002
    %v2004 = vmul.f32 %v1989, 1.442695
    %v2005 = vpow.pop %v2004
    %2014 = vset.pattern.permute.xlu0 0
    %2015 = vperm.xlu0 %2014, %v1991
    %v2016 = vpop.permute.xlu0 %2015
    %2017 = vset.pattern.permute.xlu0 0
    %2018 = vperm.xlu0 %2017, %v1993
    %v2019 = vpop.permute.xlu0 %2018
    %2020 = vset.pattern.permute.xlu0 0
    %2021 = vperm.xlu0 %2020, %v1995
    %v2022 = vpop.permute.xlu0 %2021
    %2023 = vset.pattern.permute.xlu0 0
    %2024 = vperm.xlu0 %2023, %v1997
    %v2025 = vpop.permute.xlu0 %2024
    %2026 = vset.pattern.permute.xlu0 0
    %2027 = vperm.xlu0 %2026, %v1999
    %v2028 = vpop.permute.xlu0 %2027
    %2029 = vset.pattern.permute.xlu0 0
    %2030 = vperm.xlu0 %2029, %v2001
    %v2031 = vpop.permute.xlu0 %2030
    %2032 = vset.pattern.permute.xlu0 0
    %2033 = vperm.xlu0 %2032, %v2003
    %v2034 = vpop.permute.xlu0 %2033
    %2035 = vset.pattern.permute.xlu0 0
    %2036 = vperm.xlu0 %2035, %v2005
    %v2037 = vpop.permute.xlu0 %2036
    %v2038 = vperm.slane %v2016, %v1937
    %v2039 = vperm.slane %v2019, %v1937
    %v2040 = vperm.slane %v2022, %v1937
    %v2041 = vperm.slane %v2025, %v1937
    %v2042 = vperm.slane %v2028, %v1937
    %v2043 = vperm.slane %v2031, %v1937
    %v2044 = vperm.slane %v2034, %v1937
    %v2045 = vperm.slane %v2037, %v1937
    %v2046 = vsel %vm1946, %v2039, %v2038
    %v2047 = vsel %vm1948, %v2040, %v2046
    %v2048 = vsel %vm1950, %v2041, %v2047
    %v2049 = vsel %vm1952, %v2042, %v2048
    %v2050 = vsel %vm1954, %v2043, %v2049
    %v2051 = vsel %vm1956, %v2044, %v2050
    %v2052 = vsel %vm1958, %v2045, %v2051
    %v2054 = vsel %vm1961, %v2052, 0.0
    %2055 = vadd.xlane.f32.xlu0 %v2054
    %v2056 = vpop.xlane.xlu0 %2055
    %v2058 = vperm.slane %v2056, 0
    %v2059 = vperm.slane %v2056, 1
    %v2060 = vperm.slane %v2056, 2
    %v2061 = vperm.slane %v2056, 3
    %v2062 = vperm.slane %v2056, 4
    %v2063 = vperm.slane %v2056, 5
    %v2064 = vperm.slane %v2056, 6
    %v2065 = vperm.slane %v2056, 7
    %v2074 = vrcp.pop %v2058
    %v2075 = vmul.f32 %v2058, %v2074
    %v2076 = vsub.f32 1.0, %v2075
    %v2077 = vmul.f32 %v2074, %v2076
    %v2078 = vadd.f32 %v2074, %v2077
    %vm2079 = vweird.f32 %v2058
    %vm2080 = vweird.f32 %v2074
    %vm2081 = vmor %vm2079, %vm2080
    %v2082 = vsel %vm2081, %v2074, %v2078
    %v2083 = vand.u32 2147483647, %v2058
    %vm2084 = vcmp.eq.f32.partialorder %v2083, 8.507059e+37
    %v2085 = vand.u32 %v2058, 2147483648
    %v2086 = vor.u32 1.1754944e-38, %v2085
    %v2087 = vsel %vm2084, %v2086, %v2082
    %v2088 = vmul.f32 %v1991, %v2087
    %v2089 = vrcp.pop %v2059
    %v2090 = vmul.f32 %v2059, %v2089
    %v2091 = vsub.f32 1.0, %v2090
    %v2092 = vmul.f32 %v2089, %v2091
    %v2093 = vadd.f32 %v2089, %v2092
    %vm2094 = vweird.f32 %v2059
    %vm2095 = vweird.f32 %v2089
    %vm2096 = vmor %vm2094, %vm2095
    %v2097 = vsel %vm2096, %v2089, %v2093
    %v2098 = vand.u32 2147483647, %v2059
    %vm2099 = vcmp.eq.f32.partialorder %v2098, 8.507059e+37
    %v2100 = vand.u32 %v2059, 2147483648
    %v2101 = vor.u32 1.1754944e-38, %v2100
    %v2102 = vsel %vm2099, %v2101, %v2097
    %v2103 = vmul.f32 %v1993, %v2102
    %v2104 = vrcp.pop %v2060
    %v2105 = vmul.f32 %v2060, %v2104
    %v2106 = vsub.f32 1.0, %v2105
    %v2107 = vmul.f32 %v2104, %v2106
    %v2108 = vadd.f32 %v2104, %v2107
    %vm2109 = vweird.f32 %v2060
    %vm2110 = vweird.f32 %v2104
    %vm2111 = vmor %vm2109, %vm2110
    %v2112 = vsel %vm2111, %v2104, %v2108
    %v2113 = vand.u32 2147483647, %v2060
    %vm2114 = vcmp.eq.f32.partialorder %v2113, 8.507059e+37
    %v2115 = vand.u32 %v2060, 2147483648
    %v2116 = vor.u32 1.1754944e-38, %v2115
    %v2117 = vsel %vm2114, %v2116, %v2112
    %v2118 = vmul.f32 %v1995, %v2117
    %v2119 = vrcp.pop %v2061
    %v2120 = vmul.f32 %v2061, %v2119
    %v2121 = vsub.f32 1.0, %v2120
    %v2122 = vmul.f32 %v2119, %v2121
    %v2123 = vadd.f32 %v2119, %v2122
    %vm2124 = vweird.f32 %v2061
    %vm2125 = vweird.f32 %v2119
    %vm2126 = vmor %vm2124, %vm2125
    %v2127 = vsel %vm2126, %v2119, %v2123
    %v2128 = vand.u32 2147483647, %v2061
    %vm2129 = vcmp.eq.f32.partialorder %v2128, 8.507059e+37
    %v2130 = vand.u32 %v2061, 2147483648
    %v2131 = vor.u32 1.1754944e-38, %v2130
    %v2132 = vsel %vm2129, %v2131, %v2127
    %v2133 = vmul.f32 %v1997, %v2132
    %v2134 = vrcp.pop %v2062
    %v2135 = vmul.f32 %v2062, %v2134
    %v2136 = vsub.f32 1.0, %v2135
    %v2137 = vmul.f32 %v2134, %v2136
    %v2138 = vadd.f32 %v2134, %v2137
    %vm2139 = vweird.f32 %v2062
    %vm2140 = vweird.f32 %v2134
    %vm2141 = vmor %vm2139, %vm2140
    %v2142 = vsel %vm2141, %v2134, %v2138
    %v2143 = vand.u32 2147483647, %v2062
    %vm2144 = vcmp.eq.f32.partialorder %v2143, 8.507059e+37
    %v2145 = vand.u32 %v2062, 2147483648
    %v2146 = vor.u32 1.1754944e-38, %v2145
    %v2147 = vsel %vm2144, %v2146, %v2142
    %v2148 = vmul.f32 %v1999, %v2147
    %v2149 = vrcp.pop %v2063
    %v2150 = vmul.f32 %v2063, %v2149
    %v2151 = vsub.f32 1.0, %v2150
    %v2152 = vmul.f32 %v2149, %v2151
    %v2153 = vadd.f32 %v2149, %v2152
    %vm2154 = vweird.f32 %v2063
    %vm2155 = vweird.f32 %v2149
    %vm2156 = vmor %vm2154, %vm2155
    %v2157 = vsel %vm2156, %v2149, %v2153
    %v2158 = vand.u32 2147483647, %v2063
    %vm2159 = vcmp.eq.f32.partialorder %v2158, 8.507059e+37
    %v2160 = vand.u32 %v2063, 2147483648
    %v2161 = vor.u32 1.1754944e-38, %v2160
    %v2162 = vsel %vm2159, %v2161, %v2157
    %v2163 = vmul.f32 %v2001, %v2162
    %v2164 = vrcp.pop %v2064
    %v2165 = vmul.f32 %v2064, %v2164
    %v2166 = vsub.f32 1.0, %v2165
    %v2167 = vmul.f32 %v2164, %v2166
    %v2168 = vadd.f32 %v2164, %v2167
    %vm2169 = vweird.f32 %v2064
    %vm2170 = vweird.f32 %v2164
    %vm2171 = vmor %vm2169, %vm2170
    %v2172 = vsel %vm2171, %v2164, %v2168
    %v2173 = vand.u32 2147483647, %v2064
    %vm2174 = vcmp.eq.f32.partialorder %v2173, 8.507059e+37
    %v2175 = vand.u32 %v2064, 2147483648
    %v2176 = vor.u32 1.1754944e-38, %v2175
    %v2177 = vsel %vm2174, %v2176, %v2172
    %v2178 = vmul.f32 %v2003, %v2177
    %v2179 = vrcp.pop %v2065
    %v2180 = vmul.f32 %v2065, %v2179
    %v2181 = vsub.f32 1.0, %v2180
    %v2182 = vmul.f32 %v2179, %v2181
    %v2183 = vadd.f32 %v2179, %v2182
    %vm2184 = vweird.f32 %v2065
    %vm2185 = vweird.f32 %v2179
    %vm2186 = vmor %vm2184, %vm2185
    %v2187 = vsel %vm2186, %v2179, %v2183
    %v2188 = vand.u32 2147483647, %v2065
    %vm2189 = vcmp.eq.f32.partialorder %v2188, 8.507059e+37
    %v2190 = vand.u32 %v2065, 2147483648
    %v2191 = vor.u32 1.1754944e-38, %v2190
    %v2192 = vsel %vm2189, %v2191, %v2187
    %v2193 = vmul.f32 %v2005, %v2192
    %v2194 = vadd.f32 %v2088, 1e-10
    %v2195 = vadd.f32 %v2103, 1e-10
    %v2196 = vadd.f32 %v2118, 1e-10
    %v2197 = vadd.f32 %v2133, 1e-10
    %v2198 = vadd.f32 %v2148, 1e-10
    %v2199 = vadd.f32 %v2163, 1e-10
    %v2200 = vadd.f32 %v2178, 1e-10
    %v2201 = vadd.f32 %v2193, 1e-10
    %v2202 = vmul.f32 %v1841, 1.442695
    %v2203 = vpow.pop %v2202
    %v2205 = vrot.slane %v2203, 1
    %v2206 = vrot.slane %v2203, 2
    %v2207 = vrot.slane %v2203, 3
    %v2208 = vrot.slane %v2203, 4
    %v2209 = vrot.slane %v2203, 5
    %v2210 = vrot.slane %v2203, 6
    %v2211 = vrot.slane %v2203, 7
    %v2212 = vperm.slane %v2203, 0
    %v2213 = vperm.slane %v2205, 0
    %v2214 = vperm.slane %v2206, 0
    %v2215 = vperm.slane %v2207, 0
    %v2216 = vperm.slane %v2208, 0
    %v2217 = vperm.slane %v2209, 0
    %v2218 = vperm.slane %v2210, 0
    %v2219 = vperm.slane %v2211, 0
    %v2228 = vmul.f32 %v2212, %v1855
    %v2229 = vmul.f32 %v2213, %v1855
    %v2230 = vmul.f32 %v2214, %v1855
    %v2231 = vmul.f32 %v2215, %v1855
    %v2232 = vmul.f32 %v2216, %v1855
    %v2233 = vmul.f32 %v2217, %v1855
    %v2234 = vmul.f32 %v2218, %v1855
    %v2235 = vmul.f32 %v2219, %v1855
    %v2236 = vadd.f32 %v1852, %v2228
    %v2237 = vadd.f32 %v1852, %v2229
    %v2238 = vadd.f32 %v1852, %v2230
    %v2239 = vadd.f32 %v1852, %v2231
    %v2240 = vadd.f32 %v1852, %v2232
    %v2241 = vadd.f32 %v1852, %v2233
    %v2242 = vadd.f32 %v1852, %v2234
    %v2243 = vadd.f32 %v1852, %v2235
    %v2245 = vrot.slane %v1828, 1
    %v2246 = vrot.slane %v1828, 2
    %v2247 = vrot.slane %v1828, 3
    %v2248 = vrot.slane %v1828, 4
    %v2249 = vrot.slane %v1828, 5
    %v2250 = vrot.slane %v1828, 6
    %v2251 = vrot.slane %v1828, 7
    %v2252 = vperm.slane %v1828, 0
    %v2253 = vperm.slane %v2245, 0
    %v2254 = vperm.slane %v2246, 0
    %v2255 = vperm.slane %v2247, 0
    %v2256 = vperm.slane %v2248, 0
    %v2257 = vperm.slane %v2249, 0
    %v2258 = vperm.slane %v2250, 0
    %v2259 = vperm.slane %v2251, 0
    %v2268 = vsub.f32 %v2252, %v1851
    %v2269 = vsub.f32 %v2253, %v1851
    %v2270 = vsub.f32 %v2254, %v1851
    %v2271 = vsub.f32 %v2255, %v1851
    %v2272 = vsub.f32 %v2256, %v1851
    %v2273 = vsub.f32 %v2257, %v1851
    %v2274 = vsub.f32 %v2258, %v1851
    %v2275 = vsub.f32 %v2259, %v1851
    %v2276 = vmul.f32 %v2268, %v2268
    %v2277 = vmul.f32 %v2269, %v2269
    %v2278 = vmul.f32 %v2270, %v2270
    %v2279 = vmul.f32 %v2271, %v2271
    %v2280 = vmul.f32 %v2272, %v2272
    %v2281 = vmul.f32 %v2273, %v2273
    %v2282 = vmul.f32 %v2274, %v2274
    %v2283 = vmul.f32 %v2275, %v2275
    %v2284 = vmul.f32 %v2276, %v1855
    %v2285 = vmul.f32 %v2277, %v1855
    %v2286 = vmul.f32 %v2278, %v1855
    %v2287 = vmul.f32 %v2279, %v1855
    %v2288 = vmul.f32 %v2280, %v1855
    %v2289 = vmul.f32 %v2281, %v1855
    %v2290 = vmul.f32 %v2282, %v1855
    %v2291 = vmul.f32 %v2283, %v1855
    %v2292 = vadd.f32 %v2236, %v2284
    %v2293 = vadd.f32 %v2237, %v2285
    %v2294 = vadd.f32 %v2238, %v2286
    %v2295 = vadd.f32 %v2239, %v2287
    %v2296 = vadd.f32 %v2240, %v2288
    %v2297 = vadd.f32 %v2241, %v2289
    %v2298 = vadd.f32 %v2242, %v2290
    %v2299 = vadd.f32 %v2243, %v2291
    %2300 = vadd.xlane.f32.xlu0 %v2292
    %v2301 = vpop.xlane.xlu0 %2300
    %2302 = vadd.xlane.f32.xlu0 %v2293
    %v2303 = vpop.xlane.xlu0 %2302
    %2304 = vadd.xlane.f32.xlu0 %v2294
    %v2305 = vpop.xlane.xlu0 %2304
    %2306 = vadd.xlane.f32.xlu0 %v2295
    %v2307 = vpop.xlane.xlu0 %2306
    %2308 = vadd.xlane.f32.xlu0 %v2296
    %v2309 = vpop.xlane.xlu0 %2308
    %2310 = vadd.xlane.f32.xlu0 %v2297
    %v2311 = vpop.xlane.xlu0 %2310
    %2312 = vadd.xlane.f32.xlu0 %v2298
    %v2313 = vpop.xlane.xlu0 %2312
    %2314 = vadd.xlane.f32.xlu0 %v2299
    %v2315 = vpop.xlane.xlu0 %2314
    %v2316 = vrcp.pop 128.0
    %v2317 = vmul.f32 128.0, %v2316
    %v2318 = vsub.f32 1.0, %v2317
    %v2319 = vmul.f32 %v2316, %v2318
    %v2320 = vadd.f32 %v2316, %v2319
    %vm2321 = vweird.f32 %v2316
    %v2322 = vsel %vm2321, %v2316, %v2320
    %v2323 = vmul.f32 %v2301, %v2322
    %v2324 = vmul.f32 %v2303, %v2322
    %v2325 = vmul.f32 %v2305, %v2322
    %v2326 = vmul.f32 %v2307, %v2322
    %v2327 = vmul.f32 %v2309, %v2322
    %v2328 = vmul.f32 %v2311, %v2322
    %v2329 = vmul.f32 %v2313, %v2322
    %v2330 = vmul.f32 %v2315, %v2322
    %v2331 = vmul.f32 %v2194, %v2323
    %v2332 = vmul.f32 %v2195, %v2324
    %v2333 = vmul.f32 %v2196, %v2325
    %v2334 = vmul.f32 %v2197, %v2326
    %v2335 = vmul.f32 %v2198, %v2327
    %v2336 = vmul.f32 %v2199, %v2328
    %v2337 = vmul.f32 %v2200, %v2329
    %v2338 = vmul.f32 %v2201, %v2330
    %2347 = vset.pattern.permute.xlu0 0
    %2348 = vperm.xlu0 %2347, %v2331
    %v2349 = vpop.permute.xlu0 %2348
    %2350 = vset.pattern.permute.xlu0 0
    %2351 = vperm.xlu0 %2350, %v2332
    %v2352 = vpop.permute.xlu0 %2351
    %2353 = vset.pattern.permute.xlu0 0
    %2354 = vperm.xlu0 %2353, %v2333
    %v2355 = vpop.permute.xlu0 %2354
    %2356 = vset.pattern.permute.xlu0 0
    %2357 = vperm.xlu0 %2356, %v2334
    %v2358 = vpop.permute.xlu0 %2357
    %2359 = vset.pattern.permute.xlu0 0
    %2360 = vperm.xlu0 %2359, %v2335
    %v2361 = vpop.permute.xlu0 %2360
    %2362 = vset.pattern.permute.xlu0 0
    %2363 = vperm.xlu0 %2362, %v2336
    %v2364 = vpop.permute.xlu0 %2363
    %2365 = vset.pattern.permute.xlu0 0
    %2366 = vperm.xlu0 %2365, %v2337
    %v2367 = vpop.permute.xlu0 %2366
    %2368 = vset.pattern.permute.xlu0 0
    %2369 = vperm.xlu0 %2368, %v2338
    %v2370 = vpop.permute.xlu0 %2369
    %v2371 = vperm.slane %v2349, %v1937
    %v2372 = vperm.slane %v2352, %v1937
    %v2373 = vperm.slane %v2355, %v1937
    %v2374 = vperm.slane %v2358, %v1937
    %v2375 = vperm.slane %v2361, %v1937
    %v2376 = vperm.slane %v2364, %v1937
    %v2377 = vperm.slane %v2367, %v1937
    %v2378 = vperm.slane %v2370, %v1937
    %v2379 = vsel %vm1946, %v2372, %v2371
    %v2380 = vsel %vm1948, %v2373, %v2379
    %v2381 = vsel %vm1950, %v2374, %v2380
    %v2382 = vsel %vm1952, %v2375, %v2381
    %v2383 = vsel %vm1954, %v2376, %v2382
    %v2384 = vsel %vm1956, %v2377, %v2383
    %v2385 = vsel %vm1958, %v2378, %v2384
    %v2387 = vsel %vm1961, %v2385, 0.0
    %2388 = vadd.xlane.f32.xlu0 %v2387
    %v2389 = vpop.xlane.xlu0 %2388
    %v2390 = vmul.f32 %v2389, 0.5
    %v2391 = vadd.f32 %v1841, 1.0
    %2392 = vadd.xlane.f32.xlu0 %v2391
    %v2393 = vpop.xlane.xlu0 %2392
    %v2394 = vmul.f32 %v2393, %v2322
    %v2395 = vmul.f32 %v2394, 0.5
    %v2396 = vsub.f32 %v2390, %v2395
    %2405 = vset.pattern.permute.xlu0 0
    %2406 = vperm.xlu0 %2405, %v2194
    %v2407 = vpop.permute.xlu0 %2406
    %2408 = vset.pattern.permute.xlu0 0
    %2409 = vperm.xlu0 %2408, %v2195
    %v2410 = vpop.permute.xlu0 %2409
    %2411 = vset.pattern.permute.xlu0 0
    %2412 = vperm.xlu0 %2411, %v2196
    %v2413 = vpop.permute.xlu0 %2412
    %2414 = vset.pattern.permute.xlu0 0
    %2415 = vperm.xlu0 %2414, %v2197
    %v2416 = vpop.permute.xlu0 %2415
    %2417 = vset.pattern.permute.xlu0 0
    %2418 = vperm.xlu0 %2417, %v2198
    %v2419 = vpop.permute.xlu0 %2418
    %2420 = vset.pattern.permute.xlu0 0
    %2421 = vperm.xlu0 %2420, %v2199
    %v2422 = vpop.permute.xlu0 %2421
    %2423 = vset.pattern.permute.xlu0 0
    %2424 = vperm.xlu0 %2423, %v2200
    %v2425 = vpop.permute.xlu0 %2424
    %2426 = vset.pattern.permute.xlu0 0
    %2427 = vperm.xlu0 %2426, %v2201
    %v2428 = vpop.permute.xlu0 %2427
    %v2429 = vperm.slane %v2407, %v1937
    %v2430 = vperm.slane %v2410, %v1937
    %v2431 = vperm.slane %v2413, %v1937
    %v2432 = vperm.slane %v2416, %v1937
    %v2433 = vperm.slane %v2419, %v1937
    %v2434 = vperm.slane %v2422, %v1937
    %v2435 = vperm.slane %v2425, %v1937
    %v2436 = vperm.slane %v2428, %v1937
    %v2437 = vsel %vm1946, %v2430, %v2429
    %v2438 = vsel %vm1948, %v2431, %v2437
    %v2439 = vsel %vm1950, %v2432, %v2438
    %v2440 = vsel %vm1952, %v2433, %v2439
    %v2441 = vsel %vm1954, %v2434, %v2440
    %v2442 = vsel %vm1956, %v2435, %v2441
    %v2443 = vsel %vm1958, %v2436, %v2442
    %v2445 = vsel %vm1961, %v2443, %v2396
    %vm2446 = vcmask 72704
    %v2447 = vsel %vm2446, %v2445, 0.0
    %2448 = vst [vmem:[%s19] sm:$0xff] %v2447
    %v2449 = vpack.c.bf16 %v1849, %v1849
    %v2482 = vunpack.c.l.b16 %v740
    %v2483 = vunpack.c.h.b16 %v740
    %v2484 = vunpack.c.l.b16 %v741
    %v2485 = vunpack.c.l.b16 %v742
    %v2486 = vunpack.c.h.b16 %v742
    %v2487 = vunpack.c.l.b16 %v743
    %v2488 = vunpack.c.l.b16 %v744
    %v2489 = vunpack.c.h.b16 %v744
    %v2490 = vunpack.c.l.b16 %v745
    %v2491 = vunpack.c.l.b16 %v746
    %v2492 = vunpack.c.h.b16 %v746
    %v2493 = vunpack.c.l.b16 %v747
    %v2494 = vunpack.c.l.b16 %v748
    %v2495 = vunpack.c.h.b16 %v748
    %v2496 = vunpack.c.l.b16 %v749
    %v2497 = vunpack.c.l.b16 %v750
    %v2498 = vunpack.c.h.b16 %v750
    %v2499 = vunpack.c.l.b16 %v751
    %v2500 = vunpack.c.l.b16 %v752
    %v2501 = vunpack.c.h.b16 %v752
    %v2502 = vunpack.c.l.b16 %v753
    %v2503 = vunpack.c.l.b16 %v754
    %v2504 = vunpack.c.h.b16 %v754
    %v2505 = vunpack.c.l.b16 %v755
    %v2506 = vunpack.c.l.b16 %v756
    %v2507 = vunpack.c.h.b16 %v756
    %v2508 = vunpack.c.l.b16 %v757
    %v2509 = vunpack.c.l.b16 %v758
    %v2510 = vunpack.c.h.b16 %v758
    %v2511 = vunpack.c.l.b16 %v759
    %v2512 = vunpack.c.l.b16 %v760
    %v2513 = vunpack.c.h.b16 %v760
    %v2514 = vunpack.c.l.b16 %v761
    %v2515 = vunpack.c.l.b16 %v762
    %v2516 = vunpack.c.h.b16 %v762
    %v2517 = vunpack.c.l.b16 %v763
    %v2518 = vunpack.c.l.b16 %v764
    %v2519 = vunpack.c.h.b16 %v764
    %v2520 = vunpack.c.l.b16 %v765
    %v2521 = vunpack.c.l.b16 %v766
    %v2522 = vunpack.c.h.b16 %v766
    %v2523 = vunpack.c.l.b16 %v767
    %v2524 = vunpack.c.l.b16 %v768
    %v2525 = vunpack.c.h.b16 %v768
    %v2526 = vunpack.c.l.b16 %v769
    %v2527 = vunpack.c.l.b16 %v770
    %v2528 = vunpack.c.h.b16 %v770
    %v2529 = vunpack.c.l.b16 %v771
    %v2530 = vpack.c.b16 %v2485, %v2482
    %v2531 = vpack.c.b16 %v2486, %v2483
    %v2532 = vpack.c.b16 %v2487, %v2484
    %v2533 = vpack.c.b16 %v2491, %v2488
    %v2534 = vpack.c.b16 %v2492, %v2489
    %v2535 = vpack.c.b16 %v2493, %v2490
    %v2536 = vpack.c.b16 %v2497, %v2494
    %v2537 = vpack.c.b16 %v2498, %v2495
    %v2538 = vpack.c.b16 %v2499, %v2496
    %v2539 = vpack.c.b16 %v2503, %v2500
    %v2540 = vpack.c.b16 %v2504, %v2501
    %v2541 = vpack.c.b16 %v2505, %v2502
    %v2542 = vpack.c.b16 %v2509, %v2506
    %v2543 = vpack.c.b16 %v2510, %v2507
    %v2544 = vpack.c.b16 %v2511, %v2508
    %v2545 = vpack.c.b16 %v2515, %v2512
    %v2546 = vpack.c.b16 %v2516, %v2513
    %v2547 = vpack.c.b16 %v2517, %v2514
    %v2548 = vpack.c.b16 %v2521, %v2518
    %v2549 = vpack.c.b16 %v2522, %v2519
    %v2550 = vpack.c.b16 %v2523, %v2520
    %v2551 = vpack.c.b16 %v2527, %v2524
    %v2552 = vpack.c.b16 %v2528, %v2525
    %v2553 = vpack.c.b16 %v2529, %v2526
    %2578 = vmatpush.bf16.msra.mxu0 %v2551
    %2579 = vmatpush.bf16.msra.mxu0 %v2548
    %2580 = vmatpush.bf16.msra.mxu0 %v2545
    %2581 = vmatpush.bf16.msra.mxu0 %v2542
    %2582 = vmatpush.bf16.msra.mxu0 %v2539
    %2583 = vmatpush.bf16.msra.mxu0 %v2536
    %2584 = vmatpush.bf16.msra.mxu0 %v2533
    %2585 = vmatpush.bf16.msra.mxu0 %v2530
    %2586 = vmatmul.bf16.gmra.mxu0 %v2449
    %v2587 = vpop.f32.mrf.mxu0
    %v2588 = vadd.f32 %v782, %v2587
    %v2589 = vpop.f32.mrf.mxu0
    %2590 = vdwg.mxu0
    %2591 = vmatpush.bf16.msra.mxu0 %v2552
    %2592 = vmatpush.bf16.msra.mxu0 %v2549
    %2593 = vmatpush.bf16.msra.mxu0 %v2546
    %2594 = vmatpush.bf16.msra.mxu0 %v2543
    %2595 = vmatpush.bf16.msra.mxu0 %v2540
    %2596 = vmatpush.bf16.msra.mxu0 %v2537
    %2597 = vmatpush.bf16.msra.mxu0 %v2534
    %2598 = vmatpush.bf16.msra.mxu0 %v2531
    %2599 = vmatmul.bf16.gmra.mxu0 %v2449
    %v2600 = vpop.f32.mrf.mxu0
    %v2601 = vadd.f32 %v783, %v2600
    %v2602 = vpop.f32.mrf.mxu0
    %2603 = vdwg.mxu0
    %2604 = vmatpush.bf16.msra.mxu0 %v2553
    %2605 = vmatpush.bf16.msra.mxu0 %v2550
    %2606 = vmatpush.bf16.msra.mxu0 %v2547
    %2607 = vmatpush.bf16.msra.mxu0 %v2544
    %2608 = vmatpush.bf16.msra.mxu0 %v2541
    %2609 = vmatpush.bf16.msra.mxu0 %v2538
    %2610 = vmatpush.bf16.msra.mxu0 %v2535
    %2611 = vmatpush.bf16.msra.mxu0 %v2532
    %2612 = vmatmul.bf16.gmra.mxu0 %v2449
    %v2613 = vpop.f32.mrf.mxu0
    %v2614 = vadd.f32 %v784, %v2613
    %v2615 = vpop.f32.mrf.mxu0
    %2616 = vdwg.mxu0
    %s2617 = smul.addr %s955, 8
    %s2618 = scalar_lea.vmem [#allocation3], %s2617
    %v2619 = vld [vmem:[%s2618] sm:$0xff]
    %v2620 = vld [vmem:[%s2618 + $0x8] sm:$0xff]
    %v2621 = vld [vmem:[%s2618 + $0x10] sm:$0xff]
    %v2622 = vadd.f32 %v2619, %v2588
    %v2623 = vxor.u32 %v2622, 2147483648
    %v2624 = vmul.f32 %v2623, 1.442695
    %v2625 = vpow.pop %v2624
    %v2626 = vadd.f32 %v2625, 1.0
    %v2627 = vrcp.pop %v2626
    %v2628 = vmul.f32 %v2626, %v2627
    %v2629 = vsub.f32 1.0, %v2628
    %v2630 = vmul.f32 %v2627, %v2629
    %v2631 = vadd.f32 %v2627, %v2630
    %vm2632 = vweird.f32 %v2626
    %vm2633 = vweird.f32 %v2627
    %vm2634 = vmor %vm2632, %vm2633
    %v2635 = vsel %vm2634, %v2627, %v2631
    %v2636 = vand.u32 2147483647, %v2626
    %vm2637 = vcmp.eq.f32.partialorder %v2636, 8.507059e+37
    %v2638 = vand.u32 %v2626, 2147483648
    %v2639 = vor.u32 1.1754944e-38, %v2638
    %v2640 = vsel %vm2637, %v2639, %v2635
    %v2641 = vmul.f32 1.0, %v2640
    %v2642 = vadd.f32 %v2620, %v2601
    %v2643 = vxor.u32 %v2642, 2147483648
    %v2644 = vmul.f32 %v2643, 1.442695
    %v2645 = vpow.pop %v2644
    %v2646 = vadd.f32 %v2645, 1.0
    %v2647 = vrcp.pop %v2646
    %v2648 = vmul.f32 %v2646, %v2647
    %v2649 = vsub.f32 1.0, %v2648
    %v2650 = vmul.f32 %v2647, %v2649
    %v2651 = vadd.f32 %v2647, %v2650
    %vm2652 = vweird.f32 %v2646
    %vm2653 = vweird.f32 %v2647
    %vm2654 = vmor %vm2652, %vm2653
    %v2655 = vsel %vm2654, %v2647, %v2651
    %v2656 = vand.u32 2147483647, %v2646
    %vm2657 = vcmp.eq.f32.partialorder %v2656, 8.507059e+37
    %v2658 = vand.u32 %v2646, 2147483648
    %v2659 = vor.u32 1.1754944e-38, %v2658
    %v2660 = vsel %vm2657, %v2659, %v2655
    %v2661 = vmul.f32 1.0, %v2660
    %v2662 = vmul.f32 %v2641, %v2614
    %v2663 = vadd.f32 %v2621, %v2662
    %v2664 = vtanh.pop %v2663
    %v2665 = vsub.f32 1.0, %v2661
    %v2666 = vmul.f32 %v2665, %v2664
    %v2667 = vmul.f32 %v2661, %v1849
    %v2668 = vadd.f32 %v2666, %v2667
    %vm2669 = vcmp.ge.s32.totalorder %v707, 0
    %v2670 = vsel %vm2669, 1, 0
    %2671 = vset.pattern.permute.xlu0 0
    %2672 = vperm.xlu0 %2671, %v2670
    %v2673 = vpop.permute.xlu0 %2672
    %vm2674 = vcmp.eq.s32.totalorder %v2673, 1
    %v2675 = vsel %vm2674, %v2668, 0.0
    %2676 = vst [vmem:[#allocation4] sm:$0xff] %v2675
    %v2677 = vsel %vm2674, %v2668, %v1849
    %v2678 = vpack.c.bf16 %v2677, %v2677
    %2679 = vmatpush.bf16.msra.mxu0 %v2551
    %2680 = vmatpush.bf16.msra.mxu0 %v2548
    %2681 = vmatpush.bf16.msra.mxu0 %v2545
    %2682 = vmatpush.bf16.msra.mxu0 %v2542
    %2683 = vmatpush.bf16.msra.mxu0 %v2539
    %2684 = vmatpush.bf16.msra.mxu0 %v2536
    %2685 = vmatpush.bf16.msra.mxu0 %v2533
    %2686 = vmatpush.bf16.msra.mxu0 %v2530
    %2687 = vmatmul.bf16.gmra.mxu0 %v2678
    %v2688 = vpop.f32.mrf.mxu0
    %v2689 = vadd.f32 %v782, %v2688
    %v2690 = vpop.f32.mrf.mxu0
    %2691 = vdwg.mxu0
    %2692 = vmatpush.bf16.msra.mxu0 %v2552
    %2693 = vmatpush.bf16.msra.mxu0 %v2549
    %2694 = vmatpush.bf16.msra.mxu0 %v2546
    %2695 = vmatpush.bf16.msra.mxu0 %v2543
    %2696 = vmatpush.bf16.msra.mxu0 %v2540
    %2697 = vmatpush.bf16.msra.mxu0 %v2537
    %2698 = vmatpush.bf16.msra.mxu0 %v2534
    %2699 = vmatpush.bf16.msra.mxu0 %v2531
    %2700 = vmatmul.bf16.gmra.mxu0 %v2678
    %v2701 = vpop.f32.mrf.mxu0
    %v2702 = vadd.f32 %v783, %v2701
    %v2703 = vpop.f32.mrf.mxu0
    %2704 = vdwg.mxu0
    %2705 = vmatpush.bf16.msra.mxu0 %v2553
    %2706 = vmatpush.bf16.msra.mxu0 %v2550
    %2707 = vmatpush.bf16.msra.mxu0 %v2547
    %2708 = vmatpush.bf16.msra.mxu0 %v2544
    %2709 = vmatpush.bf16.msra.mxu0 %v2541
    %2710 = vmatpush.bf16.msra.mxu0 %v2538
    %2711 = vmatpush.bf16.msra.mxu0 %v2535
    %2712 = vmatpush.bf16.msra.mxu0 %v2532
    %2713 = vmatmul.bf16.gmra.mxu0 %v2678
    %v2714 = vpop.f32.mrf.mxu0
    %v2715 = vadd.f32 %v784, %v2714
    %v2716 = vpop.f32.mrf.mxu0
    %2717 = vdwg.mxu0
    %s2718 = smul.addr %s1055, 8
    %s2719 = scalar_lea.vmem [#allocation3], %s2718
    %v2720 = vld [vmem:[%s2719] sm:$0xff]
    %v2721 = vld [vmem:[%s2719 + $0x8] sm:$0xff]
    %v2722 = vld [vmem:[%s2719 + $0x10] sm:$0xff]
    %v2723 = vadd.f32 %v2720, %v2689
    %v2724 = vxor.u32 %v2723, 2147483648
    %v2725 = vmul.f32 %v2724, 1.442695
    %v2726 = vpow.pop %v2725
    %v2727 = vadd.f32 %v2726, 1.0
    %v2728 = vrcp.pop %v2727
    %v2729 = vmul.f32 %v2727, %v2728
    %v2730 = vsub.f32 1.0, %v2729
    %v2731 = vmul.f32 %v2728, %v2730
    %v2732 = vadd.f32 %v2728, %v2731
    %vm2733 = vweird.f32 %v2727
    %vm2734 = vweird.f32 %v2728
    %vm2735 = vmor %vm2733, %vm2734
    %v2736 = vsel %vm2735, %v2728, %v2732
    %v2737 = vand.u32 2147483647, %v2727
    %vm2738 = vcmp.eq.f32.partialorder %v2737, 8.507059e+37
    %v2739 = vand.u32 %v2727, 2147483648
    %v2740 = vor.u32 1.1754944e-38, %v2739
    %v2741 = vsel %vm2738, %v2740, %v2736
    %v2742 = vmul.f32 1.0, %v2741
    %v2743 = vadd.f32 %v2721, %v2702
    %v2744 = vxor.u32 %v2743, 2147483648
    %v2745 = vmul.f32 %v2744, 1.442695
    %v2746 = vpow.pop %v2745
    %v2747 = vadd.f32 %v2746, 1.0
    %v2748 = vrcp.pop %v2747
    %v2749 = vmul.f32 %v2747, %v2748
    %v2750 = vsub.f32 1.0, %v2749
    %v2751 = vmul.f32 %v2748, %v2750
    %v2752 = vadd.f32 %v2748, %v2751
    %vm2753 = vweird.f32 %v2747
    %vm2754 = vweird.f32 %v2748
    %vm2755 = vmor %vm2753, %vm2754
    %v2756 = vsel %vm2755, %v2748, %v2752
    %v2757 = vand.u32 2147483647, %v2747
    %vm2758 = vcmp.eq.f32.partialorder %v2757, 8.507059e+37
    %v2759 = vand.u32 %v2747, 2147483648
    %v2760 = vor.u32 1.1754944e-38, %v2759
    %v2761 = vsel %vm2758, %v2760, %v2756
    %v2762 = vmul.f32 1.0, %v2761
    %v2763 = vmul.f32 %v2742, %v2715
    %v2764 = vadd.f32 %v2722, %v2763
    %v2765 = vtanh.pop %v2764
    %v2766 = vsub.f32 1.0, %v2762
    %v2767 = vmul.f32 %v2766, %v2765
    %v2768 = vmul.f32 %v2762, %v2677
    %v2769 = vadd.f32 %v2767, %v2768
    %vm2770 = vcmp.ge.s32.totalorder %v707, 1
    %v2771 = vsel %vm2770, 1, 0
    %2772 = vset.pattern.permute.xlu0 0
    %2773 = vperm.xlu0 %2772, %v2771
    %v2774 = vpop.permute.xlu0 %2773
    %vm2775 = vcmp.eq.s32.totalorder %v2774, 1
    %v2776 = vsel %vm2775, %v2769, 0.0
    %s2777 = scalar_lea.vmem [#allocation4], 8
    %2778 = vst [vmem:[%s2777] sm:$0xff] %v2776
    %v2779 = vsel %vm2775, %v2769, %v2677
    %v2780 = vpack.c.bf16 %v2779, %v2779
    %2781 = vmatpush.bf16.msra.mxu0 %v2551
    %2782 = vmatpush.bf16.msra.mxu0 %v2548
    %2783 = vmatpush.bf16.msra.mxu0 %v2545
    %2784 = vmatpush.bf16.msra.mxu0 %v2542
    %2785 = vmatpush.bf16.msra.mxu0 %v2539
    %2786 = vmatpush.bf16.msra.mxu0 %v2536
    %2787 = vmatpush.bf16.msra.mxu0 %v2533
    %2788 = vmatpush.bf16.msra.mxu0 %v2530
    %2789 = vmatmul.bf16.gmra.mxu0 %v2780
    %v2790 = vpop.f32.mrf.mxu0
    %v2791 = vadd.f32 %v782, %v2790
    %v2792 = vpop.f32.mrf.mxu0
    %2793 = vdwg.mxu0
    %2794 = vmatpush.bf16.msra.mxu0 %v2552
    %2795 = vmatpush.bf16.msra.mxu0 %v2549
    %2796 = vmatpush.bf16.msra.mxu0 %v2546
    %2797 = vmatpush.bf16.msra.mxu0 %v2543
    %2798 = vmatpush.bf16.msra.mxu0 %v2540
    %2799 = vmatpush.bf16.msra.mxu0 %v2537
    %2800 = vmatpush.bf16.msra.mxu0 %v2534
    %2801 = vmatpush.bf16.msra.mxu0 %v2531
    %2802 = vmatmul.bf16.gmra.mxu0 %v2780
    %v2803 = vpop.f32.mrf.mxu0
    %v2804 = vadd.f32 %v783, %v2803
    %v2805 = vpop.f32.mrf.mxu0
    %2806 = vdwg.mxu0
    %2807 = vmatpush.bf16.msra.mxu0 %v2553
    %2808 = vmatpush.bf16.msra.mxu0 %v2550
    %2809 = vmatpush.bf16.msra.mxu0 %v2547
    %2810 = vmatpush.bf16.msra.mxu0 %v2544
    %2811 = vmatpush.bf16.msra.mxu0 %v2541
    %2812 = vmatpush.bf16.msra.mxu0 %v2538
    %2813 = vmatpush.bf16.msra.mxu0 %v2535
    %2814 = vmatpush.bf16.msra.mxu0 %v2532
    %2815 = vmatmul.bf16.gmra.mxu0 %v2780
    %v2816 = vpop.f32.mrf.mxu0
    %v2817 = vadd.f32 %v784, %v2816
    %v2818 = vpop.f32.mrf.mxu0
    %2819 = vdwg.mxu0
    %s2820 = smul.addr %s1155, 8
    %s2821 = scalar_lea.vmem [#allocation3], %s2820
    %v2822 = vld [vmem:[%s2821] sm:$0xff]
    %v2823 = vld [vmem:[%s2821 + $0x8] sm:$0xff]
    %v2824 = vld [vmem:[%s2821 + $0x10] sm:$0xff]
    %v2825 = vadd.f32 %v2822, %v2791
    %v2826 = vxor.u32 %v2825, 2147483648
    %v2827 = vmul.f32 %v2826, 1.442695
    %v2828 = vpow.pop %v2827
    %v2829 = vadd.f32 %v2828, 1.0
    %v2830 = vrcp.pop %v2829
    %v2831 = vmul.f32 %v2829, %v2830
    %v2832 = vsub.f32 1.0, %v2831
    %v2833 = vmul.f32 %v2830, %v2832
    %v2834 = vadd.f32 %v2830, %v2833
    %vm2835 = vweird.f32 %v2829
    %vm2836 = vweird.f32 %v2830
    %vm2837 = vmor %vm2835, %vm2836
    %v2838 = vsel %vm2837, %v2830, %v2834
    %v2839 = vand.u32 2147483647, %v2829
    %vm2840 = vcmp.eq.f32.partialorder %v2839, 8.507059e+37
    %v2841 = vand.u32 %v2829, 2147483648
    %v2842 = vor.u32 1.1754944e-38, %v2841
    %v2843 = vsel %vm2840, %v2842, %v2838
    %v2844 = vmul.f32 1.0, %v2843
    %v2845 = vadd.f32 %v2823, %v2804
    %v2846 = vxor.u32 %v2845, 2147483648
    %v2847 = vmul.f32 %v2846, 1.442695
    %v2848 = vpow.pop %v2847
    %v2849 = vadd.f32 %v2848, 1.0
    %v2850 = vrcp.pop %v2849
    %v2851 = vmul.f32 %v2849, %v2850
    %v2852 = vsub.f32 1.0, %v2851
    %v2853 = vmul.f32 %v2850, %v2852
    %v2854 = vadd.f32 %v2850, %v2853
    %vm2855 = vweird.f32 %v2849
    %vm2856 = vweird.f32 %v2850
    %vm2857 = vmor %vm2855, %vm2856
    %v2858 = vsel %vm2857, %v2850, %v2854
    %v2859 = vand.u32 2147483647, %v2849
    %vm2860 = vcmp.eq.f32.partialorder %v2859, 8.507059e+37
    %v2861 = vand.u32 %v2849, 2147483648
    %v2862 = vor.u32 1.1754944e-38, %v2861
    %v2863 = vsel %vm2860, %v2862, %v2858
    %v2864 = vmul.f32 1.0, %v2863
    %v2865 = vmul.f32 %v2844, %v2817
    %v2866 = vadd.f32 %v2824, %v2865
    %v2867 = vtanh.pop %v2866
    %v2868 = vsub.f32 1.0, %v2864
    %v2869 = vmul.f32 %v2868, %v2867
    %v2870 = vmul.f32 %v2864, %v2779
    %v2871 = vadd.f32 %v2869, %v2870
    %vm2872 = vcmp.ge.s32.totalorder %v707, 2
    %v2873 = vsel %vm2872, 1, 0
    %2874 = vset.pattern.permute.xlu0 0
    %2875 = vperm.xlu0 %2874, %v2873
    %v2876 = vpop.permute.xlu0 %2875
    %vm2877 = vcmp.eq.s32.totalorder %v2876, 1
    %v2878 = vsel %vm2877, %v2871, 0.0
    %s2879 = scalar_lea.vmem [#allocation4], 16
    %2880 = vst [vmem:[%s2879] sm:$0xff] %v2878
    %v2881 = vsel %vm2877, %v2871, %v2779
    %v2882 = vpack.c.bf16 %v2881, %v2881
    %2883 = vmatpush.bf16.msra.mxu0 %v2551
    %2884 = vmatpush.bf16.msra.mxu0 %v2548
    %2885 = vmatpush.bf16.msra.mxu0 %v2545
    %2886 = vmatpush.bf16.msra.mxu0 %v2542
    %2887 = vmatpush.bf16.msra.mxu0 %v2539
    %2888 = vmatpush.bf16.msra.mxu0 %v2536
    %2889 = vmatpush.bf16.msra.mxu0 %v2533
    %2890 = vmatpush.bf16.msra.mxu0 %v2530
    %2891 = vmatmul.bf16.gmra.mxu0 %v2882
    %v2892 = vpop.f32.mrf.mxu0
    %v2893 = vadd.f32 %v782, %v2892
    %v2894 = vpop.f32.mrf.mxu0
    %2895 = vdwg.mxu0
    %2896 = vmatpush.bf16.msra.mxu0 %v2552
    %2897 = vmatpush.bf16.msra.mxu0 %v2549
    %2898 = vmatpush.bf16.msra.mxu0 %v2546
    %2899 = vmatpush.bf16.msra.mxu0 %v2543
    %2900 = vmatpush.bf16.msra.mxu0 %v2540
    %2901 = vmatpush.bf16.msra.mxu0 %v2537
    %2902 = vmatpush.bf16.msra.mxu0 %v2534
    %2903 = vmatpush.bf16.msra.mxu0 %v2531
    %2904 = vmatmul.bf16.gmra.mxu0 %v2882
    %v2905 = vpop.f32.mrf.mxu0
    %v2906 = vadd.f32 %v783, %v2905
    %v2907 = vpop.f32.mrf.mxu0
    %2908 = vdwg.mxu0
    %2909 = vmatpush.bf16.msra.mxu0 %v2553
    %2910 = vmatpush.bf16.msra.mxu0 %v2550
    %2911 = vmatpush.bf16.msra.mxu0 %v2547
    %2912 = vmatpush.bf16.msra.mxu0 %v2544
    %2913 = vmatpush.bf16.msra.mxu0 %v2541
    %2914 = vmatpush.bf16.msra.mxu0 %v2538
    %2915 = vmatpush.bf16.msra.mxu0 %v2535
    %2916 = vmatpush.bf16.msra.mxu0 %v2532
    %2917 = vmatmul.bf16.gmra.mxu0 %v2882
    %v2918 = vpop.f32.mrf.mxu0
    %v2919 = vadd.f32 %v784, %v2918
    %v2920 = vpop.f32.mrf.mxu0
    %2921 = vdwg.mxu0
    %s2922 = smul.addr %s1255, 8
    %s2923 = scalar_lea.vmem [#allocation3], %s2922
    %v2924 = vld [vmem:[%s2923] sm:$0xff]
    %v2925 = vld [vmem:[%s2923 + $0x8] sm:$0xff]
    %v2926 = vld [vmem:[%s2923 + $0x10] sm:$0xff]
    %v2927 = vadd.f32 %v2924, %v2893
    %v2928 = vxor.u32 %v2927, 2147483648
    %v2929 = vmul.f32 %v2928, 1.442695
    %v2930 = vpow.pop %v2929
    %v2931 = vadd.f32 %v2930, 1.0
    %v2932 = vrcp.pop %v2931
    %v2933 = vmul.f32 %v2931, %v2932
    %v2934 = vsub.f32 1.0, %v2933
    %v2935 = vmul.f32 %v2932, %v2934
    %v2936 = vadd.f32 %v2932, %v2935
    %vm2937 = vweird.f32 %v2931
    %vm2938 = vweird.f32 %v2932
    %vm2939 = vmor %vm2937, %vm2938
    %v2940 = vsel %vm2939, %v2932, %v2936
    %v2941 = vand.u32 2147483647, %v2931
    %vm2942 = vcmp.eq.f32.partialorder %v2941, 8.507059e+37
    %v2943 = vand.u32 %v2931, 2147483648
    %v2944 = vor.u32 1.1754944e-38, %v2943
    %v2945 = vsel %vm2942, %v2944, %v2940
    %v2946 = vmul.f32 1.0, %v2945
    %v2947 = vadd.f32 %v2925, %v2906
    %v2948 = vxor.u32 %v2947, 2147483648
    %v2949 = vmul.f32 %v2948, 1.442695
    %v2950 = vpow.pop %v2949
    %v2951 = vadd.f32 %v2950, 1.0
    %v2952 = vrcp.pop %v2951
    %v2953 = vmul.f32 %v2951, %v2952
    %v2954 = vsub.f32 1.0, %v2953
    %v2955 = vmul.f32 %v2952, %v2954
    %v2956 = vadd.f32 %v2952, %v2955
    %vm2957 = vweird.f32 %v2951
    %vm2958 = vweird.f32 %v2952
    %vm2959 = vmor %vm2957, %vm2958
    %v2960 = vsel %vm2959, %v2952, %v2956
    %v2961 = vand.u32 2147483647, %v2951
    %vm2962 = vcmp.eq.f32.partialorder %v2961, 8.507059e+37
    %v2963 = vand.u32 %v2951, 2147483648
    %v2964 = vor.u32 1.1754944e-38, %v2963
    %v2965 = vsel %vm2962, %v2964, %v2960
    %v2966 = vmul.f32 1.0, %v2965
    %v2967 = vmul.f32 %v2946, %v2919
    %v2968 = vadd.f32 %v2926, %v2967
    %v2969 = vtanh.pop %v2968
    %v2970 = vsub.f32 1.0, %v2966
    %v2971 = vmul.f32 %v2970, %v2969
    %v2972 = vmul.f32 %v2966, %v2881
    %v2973 = vadd.f32 %v2971, %v2972
    %vm2974 = vcmp.ge.s32.totalorder %v707, 3
    %v2975 = vsel %vm2974, 1, 0
    %2976 = vset.pattern.permute.xlu0 0
    %2977 = vperm.xlu0 %2976, %v2975
    %v2978 = vpop.permute.xlu0 %2977
    %vm2979 = vcmp.eq.s32.totalorder %v2978, 1
    %v2980 = vsel %vm2979, %v2973, 0.0
    %s2981 = scalar_lea.vmem [#allocation4], 24
    %2982 = vst [vmem:[%s2981] sm:$0xff] %v2980
    %v2983 = vsel %vm2979, %v2973, %v2881
    %v2984 = vpack.c.bf16 %v2983, %v2983
    %2985 = vmatpush.bf16.msra.mxu0 %v2551
    %2986 = vmatpush.bf16.msra.mxu0 %v2548
    %2987 = vmatpush.bf16.msra.mxu0 %v2545
    %2988 = vmatpush.bf16.msra.mxu0 %v2542
    %2989 = vmatpush.bf16.msra.mxu0 %v2539
    %2990 = vmatpush.bf16.msra.mxu0 %v2536
    %2991 = vmatpush.bf16.msra.mxu0 %v2533
    %2992 = vmatpush.bf16.msra.mxu0 %v2530
    %2993 = vmatmul.bf16.gmra.mxu0 %v2984
    %v2994 = vpop.f32.mrf.mxu0
    %v2995 = vadd.f32 %v782, %v2994
    %v2996 = vpop.f32.mrf.mxu0
    %2997 = vdwg.mxu0
    %2998 = vmatpush.bf16.msra.mxu0 %v2552
    %2999 = vmatpush.bf16.msra.mxu0 %v2549
    %3000 = vmatpush.bf16.msra.mxu0 %v2546
    %3001 = vmatpush.bf16.msra.mxu0 %v2543
    %3002 = vmatpush.bf16.msra.mxu0 %v2540
    %3003 = vmatpush.bf16.msra.mxu0 %v2537
    %3004 = vmatpush.bf16.msra.mxu0 %v2534
    %3005 = vmatpush.bf16.msra.mxu0 %v2531
    %3006 = vmatmul.bf16.gmra.mxu0 %v2984
    %v3007 = vpop.f32.mrf.mxu0
    %v3008 = vadd.f32 %v783, %v3007
    %v3009 = vpop.f32.mrf.mxu0
    %3010 = vdwg.mxu0
    %3011 = vmatpush.bf16.msra.mxu0 %v2553
    %3012 = vmatpush.bf16.msra.mxu0 %v2550
    %3013 = vmatpush.bf16.msra.mxu0 %v2547
    %3014 = vmatpush.bf16.msra.mxu0 %v2544
    %3015 = vmatpush.bf16.msra.mxu0 %v2541
    %3016 = vmatpush.bf16.msra.mxu0 %v2538
    %3017 = vmatpush.bf16.msra.mxu0 %v2535
    %3018 = vmatpush.bf16.msra.mxu0 %v2532
    %3019 = vmatmul.bf16.gmra.mxu0 %v2984
    %v3020 = vpop.f32.mrf.mxu0
    %v3021 = vadd.f32 %v784, %v3020
    %v3022 = vpop.f32.mrf.mxu0
    %3023 = vdwg.mxu0
    %s3024 = smul.addr %s1355, 8
    %s3025 = scalar_lea.vmem [#allocation3], %s3024
    %v3026 = vld [vmem:[%s3025] sm:$0xff]
    %v3027 = vld [vmem:[%s3025 + $0x8] sm:$0xff]
    %v3028 = vld [vmem:[%s3025 + $0x10] sm:$0xff]
    %v3029 = vadd.f32 %v3026, %v2995
    %v3030 = vxor.u32 %v3029, 2147483648
    %v3031 = vmul.f32 %v3030, 1.442695
    %v3032 = vpow.pop %v3031
    %v3033 = vadd.f32 %v3032, 1.0
    %v3034 = vrcp.pop %v3033
    %v3035 = vmul.f32 %v3033, %v3034
    %v3036 = vsub.f32 1.0, %v3035
    %v3037 = vmul.f32 %v3034, %v3036
    %v3038 = vadd.f32 %v3034, %v3037
    %vm3039 = vweird.f32 %v3033
    %vm3040 = vweird.f32 %v3034
    %vm3041 = vmor %vm3039, %vm3040
    %v3042 = vsel %vm3041, %v3034, %v3038
    %v3043 = vand.u32 2147483647, %v3033
    %vm3044 = vcmp.eq.f32.partialorder %v3043, 8.507059e+37
    %v3045 = vand.u32 %v3033, 2147483648
    %v3046 = vor.u32 1.1754944e-38, %v3045
    %v3047 = vsel %vm3044, %v3046, %v3042
    %v3048 = vmul.f32 1.0, %v3047
    %v3049 = vadd.f32 %v3027, %v3008
    %v3050 = vxor.u32 %v3049, 2147483648
    %v3051 = vmul.f32 %v3050, 1.442695
    %v3052 = vpow.pop %v3051
    %v3053 = vadd.f32 %v3052, 1.0
    %v3054 = vrcp.pop %v3053
    %v3055 = vmul.f32 %v3053, %v3054
    %v3056 = vsub.f32 1.0, %v3055
    %v3057 = vmul.f32 %v3054, %v3056
    %v3058 = vadd.f32 %v3054, %v3057
    %vm3059 = vweird.f32 %v3053
    %vm3060 = vweird.f32 %v3054
    %vm3061 = vmor %vm3059, %vm3060
    %v3062 = vsel %vm3061, %v3054, %v3058
    %v3063 = vand.u32 2147483647, %v3053
    %vm3064 = vcmp.eq.f32.partialorder %v3063, 8.507059e+37
    %v3065 = vand.u32 %v3053, 2147483648
    %v3066 = vor.u32 1.1754944e-38, %v3065
    %v3067 = vsel %vm3064, %v3066, %v3062
    %v3068 = vmul.f32 1.0, %v3067
    %v3069 = vmul.f32 %v3048, %v3021
    %v3070 = vadd.f32 %v3028, %v3069
    %v3071 = vtanh.pop %v3070
    %v3072 = vsub.f32 1.0, %v3068
    %v3073 = vmul.f32 %v3072, %v3071
    %v3074 = vmul.f32 %v3068, %v2983
    %v3075 = vadd.f32 %v3073, %v3074
    %vm3076 = vcmp.ge.s32.totalorder %v707, 4
    %v3077 = vsel %vm3076, 1, 0
    %3078 = vset.pattern.permute.xlu0 0
    %3079 = vperm.xlu0 %3078, %v3077
    %v3080 = vpop.permute.xlu0 %3079
    %vm3081 = vcmp.eq.s32.totalorder %v3080, 1
    %v3082 = vsel %vm3081, %v3075, 0.0
    %s3083 = scalar_lea.vmem [#allocation4], 32
    %3084 = vst [vmem:[%s3083] sm:$0xff] %v3082
    %v3085 = vsel %vm3081, %v3075, %v2983
    %v3086 = vpack.c.bf16 %v3085, %v3085
    %3087 = vmatpush.bf16.msra.mxu0 %v2551
    %3088 = vmatpush.bf16.msra.mxu0 %v2548
    %3089 = vmatpush.bf16.msra.mxu0 %v2545
    %3090 = vmatpush.bf16.msra.mxu0 %v2542
    %3091 = vmatpush.bf16.msra.mxu0 %v2539
    %3092 = vmatpush.bf16.msra.mxu0 %v2536
    %3093 = vmatpush.bf16.msra.mxu0 %v2533
    %3094 = vmatpush.bf16.msra.mxu0 %v2530
    %3095 = vmatmul.bf16.gmra.mxu0 %v3086
    %v3096 = vpop.f32.mrf.mxu0
    %v3097 = vadd.f32 %v782, %v3096
    %v3098 = vpop.f32.mrf.mxu0
    %3099 = vdwg.mxu0
    %3100 = vmatpush.bf16.msra.mxu0 %v2552
    %3101 = vmatpush.bf16.msra.mxu0 %v2549
    %3102 = vmatpush.bf16.msra.mxu0 %v2546
    %3103 = vmatpush.bf16.msra.mxu0 %v2543
    %3104 = vmatpush.bf16.msra.mxu0 %v2540
    %3105 = vmatpush.bf16.msra.mxu0 %v2537
    %3106 = vmatpush.bf16.msra.mxu0 %v2534
    %3107 = vmatpush.bf16.msra.mxu0 %v2531
    %3108 = vmatmul.bf16.gmra.mxu0 %v3086
    %v3109 = vpop.f32.mrf.mxu0
    %v3110 = vadd.f32 %v783, %v3109
    %v3111 = vpop.f32.mrf.mxu0
    %3112 = vdwg.mxu0
    %3113 = vmatpush.bf16.msra.mxu0 %v2553
    %3114 = vmatpush.bf16.msra.mxu0 %v2550
    %3115 = vmatpush.bf16.msra.mxu0 %v2547
    %3116 = vmatpush.bf16.msra.mxu0 %v2544
    %3117 = vmatpush.bf16.msra.mxu0 %v2541
    %3118 = vmatpush.bf16.msra.mxu0 %v2538
    %3119 = vmatpush.bf16.msra.mxu0 %v2535
    %3120 = vmatpush.bf16.msra.mxu0 %v2532
    %3121 = vmatmul.bf16.gmra.mxu0 %v3086
    %v3122 = vpop.f32.mrf.mxu0
    %v3123 = vadd.f32 %v784, %v3122
    %v3124 = vpop.f32.mrf.mxu0
    %3125 = vdwg.mxu0
    %s3126 = smul.addr %s1455, 8
    %s3127 = scalar_lea.vmem [#allocation3], %s3126
    %v3128 = vld [vmem:[%s3127] sm:$0xff]
    %v3129 = vld [vmem:[%s3127 + $0x8] sm:$0xff]
    %v3130 = vld [vmem:[%s3127 + $0x10] sm:$0xff]
    %v3131 = vadd.f32 %v3128, %v3097
    %v3132 = vxor.u32 %v3131, 2147483648
    %v3133 = vmul.f32 %v3132, 1.442695
    %v3134 = vpow.pop %v3133
    %v3135 = vadd.f32 %v3134, 1.0
    %v3136 = vrcp.pop %v3135
    %v3137 = vmul.f32 %v3135, %v3136
    %v3138 = vsub.f32 1.0, %v3137
    %v3139 = vmul.f32 %v3136, %v3138
    %v3140 = vadd.f32 %v3136, %v3139
    %vm3141 = vweird.f32 %v3135
    %vm3142 = vweird.f32 %v3136
    %vm3143 = vmor %vm3141, %vm3142
    %v3144 = vsel %vm3143, %v3136, %v3140
    %v3145 = vand.u32 2147483647, %v3135
    %vm3146 = vcmp.eq.f32.partialorder %v3145, 8.507059e+37
    %v3147 = vand.u32 %v3135, 2147483648
    %v3148 = vor.u32 1.1754944e-38, %v3147
    %v3149 = vsel %vm3146, %v3148, %v3144
    %v3150 = vmul.f32 1.0, %v3149
    %v3151 = vadd.f32 %v3129, %v3110
    %v3152 = vxor.u32 %v3151, 2147483648
    %v3153 = vmul.f32 %v3152, 1.442695
    %v3154 = vpow.pop %v3153
    %v3155 = vadd.f32 %v3154, 1.0
    %v3156 = vrcp.pop %v3155
    %v3157 = vmul.f32 %v3155, %v3156
    %v3158 = vsub.f32 1.0, %v3157
    %v3159 = vmul.f32 %v3156, %v3158
    %v3160 = vadd.f32 %v3156, %v3159
    %vm3161 = vweird.f32 %v3155
    %vm3162 = vweird.f32 %v3156
    %vm3163 = vmor %vm3161, %vm3162
    %v3164 = vsel %vm3163, %v3156, %v3160
    %v3165 = vand.u32 2147483647, %v3155
    %vm3166 = vcmp.eq.f32.partialorder %v3165, 8.507059e+37
    %v3167 = vand.u32 %v3155, 2147483648
    %v3168 = vor.u32 1.1754944e-38, %v3167
    %v3169 = vsel %vm3166, %v3168, %v3164
    %v3170 = vmul.f32 1.0, %v3169
    %v3171 = vmul.f32 %v3150, %v3123
    %v3172 = vadd.f32 %v3130, %v3171
    %v3173 = vtanh.pop %v3172
    %v3174 = vsub.f32 1.0, %v3170
    %v3175 = vmul.f32 %v3174, %v3173
    %v3176 = vmul.f32 %v3170, %v3085
    %v3177 = vadd.f32 %v3175, %v3176
    %vm3178 = vcmp.ge.s32.totalorder %v707, 5
    %v3179 = vsel %vm3178, 1, 0
    %3180 = vset.pattern.permute.xlu0 0
    %3181 = vperm.xlu0 %3180, %v3179
    %v3182 = vpop.permute.xlu0 %3181
    %vm3183 = vcmp.eq.s32.totalorder %v3182, 1
    %v3184 = vsel %vm3183, %v3177, 0.0
    %s3185 = scalar_lea.vmem [#allocation4], 40
    %3186 = vst [vmem:[%s3185] sm:$0xff] %v3184
    %v3187 = vsel %vm3183, %v3177, %v3085
    %v3188 = vpack.c.bf16 %v3187, %v3187
    %3189 = vmatpush.bf16.msra.mxu0 %v2551
    %3190 = vmatpush.bf16.msra.mxu0 %v2548
    %3191 = vmatpush.bf16.msra.mxu0 %v2545
    %3192 = vmatpush.bf16.msra.mxu0 %v2542
    %3193 = vmatpush.bf16.msra.mxu0 %v2539
    %3194 = vmatpush.bf16.msra.mxu0 %v2536
    %3195 = vmatpush.bf16.msra.mxu0 %v2533
    %3196 = vmatpush.bf16.msra.mxu0 %v2530
    %3197 = vmatmul.bf16.gmra.mxu0 %v3188
    %v3198 = vpop.f32.mrf.mxu0
    %v3199 = vadd.f32 %v782, %v3198
    %v3200 = vpop.f32.mrf.mxu0
    %3201 = vdwg.mxu0
    %3202 = vmatpush.bf16.msra.mxu0 %v2552
    %3203 = vmatpush.bf16.msra.mxu0 %v2549
    %3204 = vmatpush.bf16.msra.mxu0 %v2546
    %3205 = vmatpush.bf16.msra.mxu0 %v2543
    %3206 = vmatpush.bf16.msra.mxu0 %v2540
    %3207 = vmatpush.bf16.msra.mxu0 %v2537
    %3208 = vmatpush.bf16.msra.mxu0 %v2534
    %3209 = vmatpush.bf16.msra.mxu0 %v2531
    %3210 = vmatmul.bf16.gmra.mxu0 %v3188
    %v3211 = vpop.f32.mrf.mxu0
    %v3212 = vadd.f32 %v783, %v3211
    %v3213 = vpop.f32.mrf.mxu0
    %3214 = vdwg.mxu0
    %3215 = vmatpush.bf16.msra.mxu0 %v2553
    %3216 = vmatpush.bf16.msra.mxu0 %v2550
    %3217 = vmatpush.bf16.msra.mxu0 %v2547
    %3218 = vmatpush.bf16.msra.mxu0 %v2544
    %3219 = vmatpush.bf16.msra.mxu0 %v2541
    %3220 = vmatpush.bf16.msra.mxu0 %v2538
    %3221 = vmatpush.bf16.msra.mxu0 %v2535
    %3222 = vmatpush.bf16.msra.mxu0 %v2532
    %3223 = vmatmul.bf16.gmra.mxu0 %v3188
    %v3224 = vpop.f32.mrf.mxu0
    %v3225 = vadd.f32 %v784, %v3224
    %v3226 = vpop.f32.mrf.mxu0
    %3227 = vdwg.mxu0
    %s3228 = smul.addr %s1555, 8
    %s3229 = scalar_lea.vmem [#allocation3], %s3228
    %v3230 = vld [vmem:[%s3229] sm:$0xff]
    %v3231 = vld [vmem:[%s3229 + $0x8] sm:$0xff]
    %v3232 = vld [vmem:[%s3229 + $0x10] sm:$0xff]
    %v3233 = vadd.f32 %v3230, %v3199
    %v3234 = vxor.u32 %v3233, 2147483648
    %v3235 = vmul.f32 %v3234, 1.442695
    %v3236 = vpow.pop %v3235
    %v3237 = vadd.f32 %v3236, 1.0
    %v3238 = vrcp.pop %v3237
    %v3239 = vmul.f32 %v3237, %v3238
    %v3240 = vsub.f32 1.0, %v3239
    %v3241 = vmul.f32 %v3238, %v3240
    %v3242 = vadd.f32 %v3238, %v3241
    %vm3243 = vweird.f32 %v3237
    %vm3244 = vweird.f32 %v3238
    %vm3245 = vmor %vm3243, %vm3244
    %v3246 = vsel %vm3245, %v3238, %v3242
    %v3247 = vand.u32 2147483647, %v3237
    %vm3248 = vcmp.eq.f32.partialorder %v3247, 8.507059e+37
    %v3249 = vand.u32 %v3237, 2147483648
    %v3250 = vor.u32 1.1754944e-38, %v3249
    %v3251 = vsel %vm3248, %v3250, %v3246
    %v3252 = vmul.f32 1.0, %v3251
    %v3253 = vadd.f32 %v3231, %v3212
    %v3254 = vxor.u32 %v3253, 2147483648
    %v3255 = vmul.f32 %v3254, 1.442695
    %v3256 = vpow.pop %v3255
    %v3257 = vadd.f32 %v3256, 1.0
    %v3258 = vrcp.pop %v3257
    %v3259 = vmul.f32 %v3257, %v3258
    %v3260 = vsub.f32 1.0, %v3259
    %v3261 = vmul.f32 %v3258, %v3260
    %v3262 = vadd.f32 %v3258, %v3261
    %vm3263 = vweird.f32 %v3257
    %vm3264 = vweird.f32 %v3258
    %vm3265 = vmor %vm3263, %vm3264
    %v3266 = vsel %vm3265, %v3258, %v3262
    %v3267 = vand.u32 2147483647, %v3257
    %vm3268 = vcmp.eq.f32.partialorder %v3267, 8.507059e+37
    %v3269 = vand.u32 %v3257, 2147483648
    %v3270 = vor.u32 1.1754944e-38, %v3269
    %v3271 = vsel %vm3268, %v3270, %v3266
    %v3272 = vmul.f32 1.0, %v3271
    %v3273 = vmul.f32 %v3252, %v3225
    %v3274 = vadd.f32 %v3232, %v3273
    %v3275 = vtanh.pop %v3274
    %v3276 = vsub.f32 1.0, %v3272
    %v3277 = vmul.f32 %v3276, %v3275
    %v3278 = vmul.f32 %v3272, %v3187
    %v3279 = vadd.f32 %v3277, %v3278
    %vm3280 = vcmp.ge.s32.totalorder %v707, 6
    %v3281 = vsel %vm3280, 1, 0
    %3282 = vset.pattern.permute.xlu0 0
    %3283 = vperm.xlu0 %3282, %v3281
    %v3284 = vpop.permute.xlu0 %3283
    %vm3285 = vcmp.eq.s32.totalorder %v3284, 1
    %v3286 = vsel %vm3285, %v3279, 0.0
    %s3287 = scalar_lea.vmem [#allocation4], 48
    %3288 = vst [vmem:[%s3287] sm:$0xff] %v3286
    %v3289 = vsel %vm3285, %v3279, %v3187
    %v3290 = vpack.c.bf16 %v3289, %v3289
    %3291 = vmatpush.bf16.msra.mxu0 %v2551
    %3292 = vmatpush.bf16.msra.mxu0 %v2548
    %3293 = vmatpush.bf16.msra.mxu0 %v2545
    %3294 = vmatpush.bf16.msra.mxu0 %v2542
    %3295 = vmatpush.bf16.msra.mxu0 %v2539
    %3296 = vmatpush.bf16.msra.mxu0 %v2536
    %3297 = vmatpush.bf16.msra.mxu0 %v2533
    %3298 = vmatpush.bf16.msra.mxu0 %v2530
    %3299 = vmatmul.bf16.gmra.mxu0 %v3290
    %v3300 = vpop.f32.mrf.mxu0
    %v3301 = vadd.f32 %v782, %v3300
    %v3302 = vpop.f32.mrf.mxu0
    %3303 = vdwg.mxu0
    %3304 = vmatpush.bf16.msra.mxu0 %v2552
    %3305 = vmatpush.bf16.msra.mxu0 %v2549
    %3306 = vmatpush.bf16.msra.mxu0 %v2546
    %3307 = vmatpush.bf16.msra.mxu0 %v2543
    %3308 = vmatpush.bf16.msra.mxu0 %v2540
    %3309 = vmatpush.bf16.msra.mxu0 %v2537
    %3310 = vmatpush.bf16.msra.mxu0 %v2534
    %3311 = vmatpush.bf16.msra.mxu0 %v2531
    %3312 = vmatmul.bf16.gmra.mxu0 %v3290
    %v3313 = vpop.f32.mrf.mxu0
    %v3314 = vadd.f32 %v783, %v3313
    %v3315 = vpop.f32.mrf.mxu0
    %3316 = vdwg.mxu0
    %3317 = vmatpush.bf16.msra.mxu0 %v2553
    %3318 = vmatpush.bf16.msra.mxu0 %v2550
    %3319 = vmatpush.bf16.msra.mxu0 %v2547
    %3320 = vmatpush.bf16.msra.mxu0 %v2544
    %3321 = vmatpush.bf16.msra.mxu0 %v2541
    %3322 = vmatpush.bf16.msra.mxu0 %v2538
    %3323 = vmatpush.bf16.msra.mxu0 %v2535
    %3324 = vmatpush.bf16.msra.mxu0 %v2532
    %3325 = vmatmul.bf16.gmra.mxu0 %v3290
    %v3326 = vpop.f32.mrf.mxu0
    %v3327 = vadd.f32 %v784, %v3326
    %v3328 = vpop.f32.mrf.mxu0
    %3329 = vdwg.mxu0
    %s3330 = smul.addr %s1655, 8
    %s3331 = scalar_lea.vmem [#allocation3], %s3330
    %v3332 = vld [vmem:[%s3331] sm:$0xff]
    %v3333 = vld [vmem:[%s3331 + $0x8] sm:$0xff]
    %v3334 = vld [vmem:[%s3331 + $0x10] sm:$0xff]
    %v3335 = vadd.f32 %v3332, %v3301
    %v3336 = vxor.u32 %v3335, 2147483648
    %v3337 = vmul.f32 %v3336, 1.442695
    %v3338 = vpow.pop %v3337
    %v3339 = vadd.f32 %v3338, 1.0
    %v3340 = vrcp.pop %v3339
    %v3341 = vmul.f32 %v3339, %v3340
    %v3342 = vsub.f32 1.0, %v3341
    %v3343 = vmul.f32 %v3340, %v3342
    %v3344 = vadd.f32 %v3340, %v3343
    %vm3345 = vweird.f32 %v3339
    %vm3346 = vweird.f32 %v3340
    %vm3347 = vmor %vm3345, %vm3346
    %v3348 = vsel %vm3347, %v3340, %v3344
    %v3349 = vand.u32 2147483647, %v3339
    %vm3350 = vcmp.eq.f32.partialorder %v3349, 8.507059e+37
    %v3351 = vand.u32 %v3339, 2147483648
    %v3352 = vor.u32 1.1754944e-38, %v3351
    %v3353 = vsel %vm3350, %v3352, %v3348
    %v3354 = vmul.f32 1.0, %v3353
    %v3355 = vadd.f32 %v3333, %v3314
    %v3356 = vxor.u32 %v3355, 2147483648
    %v3357 = vmul.f32 %v3356, 1.442695
    %v3358 = vpow.pop %v3357
    %v3359 = vadd.f32 %v3358, 1.0
    %v3360 = vrcp.pop %v3359
    %v3361 = vmul.f32 %v3359, %v3360
    %v3362 = vsub.f32 1.0, %v3361
    %v3363 = vmul.f32 %v3360, %v3362
    %v3364 = vadd.f32 %v3360, %v3363
    %vm3365 = vweird.f32 %v3359
    %vm3366 = vweird.f32 %v3360
    %vm3367 = vmor %vm3365, %vm3366
    %v3368 = vsel %vm3367, %v3360, %v3364
    %v3369 = vand.u32 2147483647, %v3359
    %vm3370 = vcmp.eq.f32.partialorder %v3369, 8.507059e+37
    %v3371 = vand.u32 %v3359, 2147483648
    %v3372 = vor.u32 1.1754944e-38, %v3371
    %v3373 = vsel %vm3370, %v3372, %v3368
    %v3374 = vmul.f32 1.0, %v3373
    %v3375 = vmul.f32 %v3354, %v3327
    %v3376 = vadd.f32 %v3334, %v3375
    %v3377 = vtanh.pop %v3376
    %v3378 = vsub.f32 1.0, %v3374
    %v3379 = vmul.f32 %v3378, %v3377
    %v3380 = vmul.f32 %v3374, %v3289
    %v3381 = vadd.f32 %v3379, %v3380
    %vm3382 = vcmp.ge.s32.totalorder %v707, 7
    %v3383 = vsel %vm3382, 1, 0
    %3384 = vset.pattern.permute.xlu0 0
    %3385 = vperm.xlu0 %3384, %v3383
    %v3386 = vpop.permute.xlu0 %3385
    %vm3387 = vcmp.eq.s32.totalorder %v3386, 1
    %v3388 = vsel %vm3387, %v3381, 0.0
    %s3389 = scalar_lea.vmem [#allocation4], 56
    %3390 = vst [vmem:[%s3389] sm:$0xff] %v3388
    %v3391 = vsel %vm3387, %v3381, %v3289
    %v3392 = vpack.c.bf16 %v3391, %v3391
    %3393 = vmatpush.bf16.msra.mxu0 %v2551
    %3394 = vmatpush.bf16.msra.mxu0 %v2548
    %3395 = vmatpush.bf16.msra.mxu0 %v2545
    %3396 = vmatpush.bf16.msra.mxu0 %v2542
    %3397 = vmatpush.bf16.msra.mxu0 %v2539
    %3398 = vmatpush.bf16.msra.mxu0 %v2536
    %3399 = vmatpush.bf16.msra.mxu0 %v2533
    %3400 = vmatpush.bf16.msra.mxu0 %v2530
    %3401 = vmatmul.bf16.gmra.mxu0 %v3392
    %v3402 = vpop.f32.mrf.mxu0
    %v3403 = vadd.f32 %v782, %v3402
    %v3404 = vpop.f32.mrf.mxu0
    %3405 = vdwg.mxu0
    %3406 = vmatpush.bf16.msra.mxu0 %v2552
    %3407 = vmatpush.bf16.msra.mxu0 %v2549
    %3408 = vmatpush.bf16.msra.mxu0 %v2546
    %3409 = vmatpush.bf16.msra.mxu0 %v2543
    %3410 = vmatpush.bf16.msra.mxu0 %v2540
    %3411 = vmatpush.bf16.msra.mxu0 %v2537
    %3412 = vmatpush.bf16.msra.mxu0 %v2534
    %3413 = vmatpush.bf16.msra.mxu0 %v2531
    %3414 = vmatmul.bf16.gmra.mxu0 %v3392
    %v3415 = vpop.f32.mrf.mxu0
    %v3416 = vadd.f32 %v783, %v3415
    %v3417 = vpop.f32.mrf.mxu0
    %3418 = vdwg.mxu0
    %3419 = vmatpush.bf16.msra.mxu0 %v2553
    %3420 = vmatpush.bf16.msra.mxu0 %v2550
    %3421 = vmatpush.bf16.msra.mxu0 %v2547
    %3422 = vmatpush.bf16.msra.mxu0 %v2544
    %3423 = vmatpush.bf16.msra.mxu0 %v2541
    %3424 = vmatpush.bf16.msra.mxu0 %v2538
    %3425 = vmatpush.bf16.msra.mxu0 %v2535
    %3426 = vmatpush.bf16.msra.mxu0 %v2532
    %3427 = vmatmul.bf16.gmra.mxu0 %v3392
    %v3428 = vpop.f32.mrf.mxu0
    %v3429 = vadd.f32 %v784, %v3428
    %v3430 = vpop.f32.mrf.mxu0
    %3431 = vdwg.mxu0
    %s3432 = smul.u32 8, 3
    %s3433 = smul.addr %s3432, 8
    %s3434 = scalar_lea.vmem [#allocation3], %s3433
    %v3435 = vld [vmem:[%s3434] sm:$0xff]
    %v3436 = vld [vmem:[%s3434 + $0x8] sm:$0xff]
    %v3437 = vld [vmem:[%s3434 + $0x10] sm:$0xff]
    %v3438 = vadd.f32 %v3435, %v3403
    %v3439 = vxor.u32 %v3438, 2147483648
    %v3440 = vmul.f32 %v3439, 1.442695
    %v3441 = vpow.pop %v3440
    %v3442 = vadd.f32 %v3441, 1.0
    %v3443 = vrcp.pop %v3442
    %v3444 = vmul.f32 %v3442, %v3443
    %v3445 = vsub.f32 1.0, %v3444
    %v3446 = vmul.f32 %v3443, %v3445
    %v3447 = vadd.f32 %v3443, %v3446
    %vm3448 = vweird.f32 %v3442
    %vm3449 = vweird.f32 %v3443
    %vm3450 = vmor %vm3448, %vm3449
    %v3451 = vsel %vm3450, %v3443, %v3447
    %v3452 = vand.u32 2147483647, %v3442
    %vm3453 = vcmp.eq.f32.partialorder %v3452, 8.507059e+37
    %v3454 = vand.u32 %v3442, 2147483648
    %v3455 = vor.u32 1.1754944e-38, %v3454
    %v3456 = vsel %vm3453, %v3455, %v3451
    %v3457 = vmul.f32 1.0, %v3456
    %v3458 = vadd.f32 %v3436, %v3416
    %v3459 = vxor.u32 %v3458, 2147483648
    %v3460 = vmul.f32 %v3459, 1.442695
    %v3461 = vpow.pop %v3460
    %v3462 = vadd.f32 %v3461, 1.0
    %v3463 = vrcp.pop %v3462
    %v3464 = vmul.f32 %v3462, %v3463
    %v3465 = vsub.f32 1.0, %v3464
    %v3466 = vmul.f32 %v3463, %v3465
    %v3467 = vadd.f32 %v3463, %v3466
    %vm3468 = vweird.f32 %v3462
    %vm3469 = vweird.f32 %v3463
    %vm3470 = vmor %vm3468, %vm3469
    %v3471 = vsel %vm3470, %v3463, %v3467
    %v3472 = vand.u32 2147483647, %v3462
    %vm3473 = vcmp.eq.f32.partialorder %v3472, 8.507059e+37
    %v3474 = vand.u32 %v3462, 2147483648
    %v3475 = vor.u32 1.1754944e-38, %v3474
    %v3476 = vsel %vm3473, %v3475, %v3471
    %v3477 = vmul.f32 1.0, %v3476
    %v3478 = vmul.f32 %v3457, %v3429
    %v3479 = vadd.f32 %v3437, %v3478
    %v3480 = vtanh.pop %v3479
    %v3481 = vsub.f32 1.0, %v3477
    %v3482 = vmul.f32 %v3481, %v3480
    %v3483 = vmul.f32 %v3477, %v3391
    %v3484 = vadd.f32 %v3482, %v3483
    %vm3485 = vcmp.ge.s32.totalorder %v707, 8
    %v3486 = vsel %vm3485, 1, 0
    %3487 = vset.pattern.permute.xlu0 0
    %3488 = vperm.xlu0 %3487, %v3486
    %v3489 = vpop.permute.xlu0 %3488
    %vm3490 = vcmp.eq.s32.totalorder %v3489, 1
    %v3491 = vsel %vm3490, %v3484, 0.0
    %s3492 = scalar_lea.vmem [#allocation4], 64
    %3493 = vst [vmem:[%s3492] sm:$0xff] %v3491
    %v3494 = vld [vmem:[#allocation4] sm:$0xff]
    %v3495 = vld [vmem:[#allocation4 + $0x8] sm:$0xff]
    %v3496 = vld [vmem:[#allocation4 + $0x10] sm:$0xff]
    %v3497 = vld [vmem:[#allocation4 + $0x18] sm:$0xff]
    %v3498 = vld [vmem:[#allocation4 + $0x20] sm:$0xff]
    %v3499 = vld [vmem:[#allocation4 + $0x28] sm:$0xff]
    %v3500 = vld [vmem:[#allocation4 + $0x30] sm:$0xff]
    %v3501 = vld [vmem:[#allocation4 + $0x38] sm:$0xff]
    %v3502 = vld [vmem:[#allocation4 + $0x40] sm:$0xff]
    %v3503 = vpack.c.bf16 %v3495, %v3494
    %v3504 = vpack.c.bf16 %v3497, %v3496
    %v3505 = vpack.c.bf16 %v3499, %v3498
    %v3506 = vpack.c.bf16 %v3501, %v3500
    %v3507 = vpack.c.bf16 %v3502, %v3502
    %v3508 = vld [vmem:[%s16] sm:$0xff]
    %v3509 = vld [vmem:[%s16 + $0x8] sm:$0xff]
    %v3510 = vld [vmem:[%s16 + $0x10] sm:$0xff]
    %v3511 = vld [vmem:[%s16 + $0x18] sm:$0xff]
    %v3512 = vld [vmem:[%s16 + $0x20] sm:$0xff]
    %v3513 = vld [vmem:[%s16 + $0x28] sm:$0xff]
    %v3514 = vld [vmem:[%s16 + $0x30] sm:$0xff]
    %v3515 = vld [vmem:[%s16 + $0x38] sm:$0xff]
    %v3516 = vld [vmem:[%s16 + $0x40] sm:$0xff]
    %v3517 = vld [vmem:[%s16 + $0x48] sm:$0xff]
    %v3518 = vld [vmem:[%s16 + $0x50] sm:$0xff]
    %v3519 = vld [vmem:[%s16 + $0x58] sm:$0xff]
    %v3520 = vld [vmem:[%s16 + $0x60] sm:$0xff]
    %v3521 = vld [vmem:[%s16 + $0x68] sm:$0xff]
    %v3522 = vld [vmem:[%s16 + $0x70] sm:$0xff]
    %v3523 = vld [vmem:[%s16 + $0x78] sm:$0xff]
    %v3524 = vld [vmem:[%s17] sm:$0x3]
    %v3526 = vperm.slane %v3524, 0
    %v3527 = vperm.slane %v3524, 1
    %v3546 = vunpack.c.l.b16 %v3508
    %v3547 = vunpack.c.h.b16 %v3508
    %v3548 = vunpack.c.l.b16 %v3509
    %v3549 = vunpack.c.h.b16 %v3509
    %v3550 = vunpack.c.l.b16 %v3510
    %v3551 = vunpack.c.h.b16 %v3510
    %v3552 = vunpack.c.l.b16 %v3511
    %v3553 = vunpack.c.h.b16 %v3511
    %v3554 = vunpack.c.l.b16 %v3512
    %v3555 = vunpack.c.h.b16 %v3512
    %v3556 = vunpack.c.l.b16 %v3513
    %v3557 = vunpack.c.h.b16 %v3513
    %v3558 = vunpack.c.l.b16 %v3514
    %v3559 = vunpack.c.h.b16 %v3514
    %v3560 = vunpack.c.l.b16 %v3515
    %v3561 = vunpack.c.h.b16 %v3515
    %v3562 = vunpack.c.l.b16 %v3516
    %v3563 = vunpack.c.h.b16 %v3516
    %v3564 = vunpack.c.l.b16 %v3517
    %v3565 = vunpack.c.h.b16 %v3517
    %v3566 = vunpack.c.l.b16 %v3518
    %v3567 = vunpack.c.h.b16 %v3518
    %v3568 = vunpack.c.l.b16 %v3519
    %v3569 = vunpack.c.h.b16 %v3519
    %v3570 = vunpack.c.l.b16 %v3520
    %v3571 = vunpack.c.h.b16 %v3520
    %v3572 = vunpack.c.l.b16 %v3521
    %v3573 = vunpack.c.h.b16 %v3521
    %v3574 = vunpack.c.l.b16 %v3522
    %v3575 = vunpack.c.h.b16 %v3522
    %v3576 = vunpack.c.l.b16 %v3523
    %v3577 = vunpack.c.h.b16 %v3523
    %v3578 = vpack.c.b16 %v3548, %v3546
    %v3579 = vpack.c.b16 %v3549, %v3547
    %v3580 = vpack.c.b16 %v3552, %v3550
    %v3581 = vpack.c.b16 %v3553, %v3551
    %v3582 = vpack.c.b16 %v3556, %v3554
    %v3583 = vpack.c.b16 %v3557, %v3555
    %v3584 = vpack.c.b16 %v3560, %v3558
    %v3585 = vpack.c.b16 %v3561, %v3559
    %v3586 = vpack.c.b16 %v3564, %v3562
    %v3587 = vpack.c.b16 %v3565, %v3563
    %v3588 = vpack.c.b16 %v3568, %v3566
    %v3589 = vpack.c.b16 %v3569, %v3567
    %v3590 = vpack.c.b16 %v3572, %v3570
    %v3591 = vpack.c.b16 %v3573, %v3571
    %v3592 = vpack.c.b16 %v3576, %v3574
    %v3593 = vpack.c.b16 %v3577, %v3575
    %3610 = vmatpush.bf16.msra.mxu0 %v3592
    %3611 = vmatpush.bf16.msra.mxu0 %v3590
    %3612 = vmatpush.bf16.msra.mxu0 %v3588
    %3613 = vmatpush.bf16.msra.mxu0 %v3586
    %3614 = vmatpush.bf16.msra.mxu0 %v3584
    %3615 = vmatpush.bf16.msra.mxu0 %v3582
    %3616 = vmatpush.bf16.msra.mxu0 %v3580
    %3617 = vmatpush.bf16.msra.mxu0 %v3578
    %3618 = vmatmul.bf16.gmra.mxu0 %v3503
    %v3619 = vpop.f32.mrf.mxu0
    %v3620 = vadd.f32 %v3526, %v3619
    %v3621 = vpop.f32.mrf.mxu0
    %v3622 = vadd.f32 %v3526, %v3621
    %3623 = vmatmul.bf16.gmra.mxu0 %v3504
    %v3624 = vpop.f32.mrf.mxu0
    %v3625 = vadd.f32 %v3526, %v3624
    %v3626 = vpop.f32.mrf.mxu0
    %v3627 = vadd.f32 %v3526, %v3626
    %3628 = vmatmul.bf16.gmra.mxu0 %v3505
    %v3629 = vpop.f32.mrf.mxu0
    %v3630 = vadd.f32 %v3526, %v3629
    %v3631 = vpop.f32.mrf.mxu0
    %v3632 = vadd.f32 %v3526, %v3631
    %3633 = vmatmul.bf16.gmra.mxu0 %v3506
    %v3634 = vpop.f32.mrf.mxu0
    %v3635 = vadd.f32 %v3526, %v3634
    %v3636 = vpop.f32.mrf.mxu0
    %v3637 = vadd.f32 %v3526, %v3636
    %3638 = vmatmul.bf16.gmra.mxu0 %v3507
    %v3639 = vpop.f32.mrf.mxu0
    %v3640 = vadd.f32 %v3526, %v3639
    %v3641 = vpop.f32.mrf.mxu0
    %3642 = vdwg.mxu0
    %3643 = vmatpush.bf16.msra.mxu0 %v3593
    %3644 = vmatpush.bf16.msra.mxu0 %v3591
    %3645 = vmatpush.bf16.msra.mxu0 %v3589
    %3646 = vmatpush.bf16.msra.mxu0 %v3587
    %3647 = vmatpush.bf16.msra.mxu0 %v3585
    %3648 = vmatpush.bf16.msra.mxu0 %v3583
    %3649 = vmatpush.bf16.msra.mxu0 %v3581
    %3650 = vmatpush.bf16.msra.mxu0 %v3579
    %3651 = vmatmul.bf16.gmra.mxu0 %v3503
    %v3652 = vpop.f32.mrf.mxu0
    %v3653 = vadd.f32 %v3527, %v3652
    %v3654 = vpop.f32.mrf.mxu0
    %v3655 = vadd.f32 %v3527, %v3654
    %3656 = vmatmul.bf16.gmra.mxu0 %v3504
    %v3657 = vpop.f32.mrf.mxu0
    %v3658 = vadd.f32 %v3527, %v3657
    %v3659 = vpop.f32.mrf.mxu0
    %v3660 = vadd.f32 %v3527, %v3659
    %3661 = vmatmul.bf16.gmra.mxu0 %v3505
    %v3662 = vpop.f32.mrf.mxu0
    %v3663 = vadd.f32 %v3527, %v3662
    %v3664 = vpop.f32.mrf.mxu0
    %v3665 = vadd.f32 %v3527, %v3664
    %3666 = vmatmul.bf16.gmra.mxu0 %v3506
    %v3667 = vpop.f32.mrf.mxu0
    %v3668 = vadd.f32 %v3527, %v3667
    %v3669 = vpop.f32.mrf.mxu0
    %v3670 = vadd.f32 %v3527, %v3669
    %3671 = vmatmul.bf16.gmra.mxu0 %v3507
    %v3672 = vpop.f32.mrf.mxu0
    %v3673 = vadd.f32 %v3527, %v3672
    %v3674 = vpop.f32.mrf.mxu0
    %3675 = vdwg.mxu0
    %3676 = vst [vmem:[#allocation7] sm:$0xff] %v3620
    %3677 = vst [vmem:[#allocation7 + $0x8] sm:$0xff] %v3653
    %3678 = vst [vmem:[#allocation7 + $0x10] sm:$0xff] %v3622
    %3679 = vst [vmem:[#allocation7 + $0x18] sm:$0xff] %v3655
    %3680 = vst [vmem:[#allocation7 + $0x20] sm:$0xff] %v3625
    %3681 = vst [vmem:[#allocation7 + $0x28] sm:$0xff] %v3658
    %3682 = vst [vmem:[#allocation7 + $0x30] sm:$0xff] %v3627
    %3683 = vst [vmem:[#allocation7 + $0x38] sm:$0xff] %v3660
    %3684 = vst [vmem:[#allocation7 + $0x40] sm:$0xff] %v3630
    %3685 = vst [vmem:[#allocation7 + $0x48] sm:$0xff] %v3663
    %3686 = vst [vmem:[#allocation7 + $0x50] sm:$0xff] %v3632
    %3687 = vst [vmem:[#allocation7 + $0x58] sm:$0xff] %v3665
    %3688 = vst [vmem:[#allocation7 + $0x60] sm:$0xff] %v3635
    %3689 = vst [vmem:[#allocation7 + $0x68] sm:$0xff] %v3668
    %3690 = vst [vmem:[#allocation7 + $0x70] sm:$0xff] %v3637
    %3691 = vst [vmem:[#allocation7 + $0x78] sm:$0xff] %v3670
    %3692 = vst [vmem:[#allocation7 + $0x80] sm:$0xff] %v3640
    %3693 = vst [vmem:[#allocation7 + $0x88] sm:$0xff] %v3673
    // Predicated region
    $region74: #{gmsvae_forward.1} parent=1 // pred_check
      _
    $region75: #{gmsvae_forward.1} parent=1 // pred_check_branch
      %3695 = sbr.rel (0) target = $region77
    $region76: #{gmsvae_forward.1} parent=1 // pred_region
      %3697 = vsyncadd [#allocation6], 0
      %s3699 = sshll.u32 [#allocation5], 4
      %s3700 = int_to_ptr.vmem [resolvable:$true] %s3699
      %s3701 = sshll.u32 %s18, 4
      %s3702 = int_to_ptr.hbm [resolvable:$true] %s3701
      %3704 = dma.vmem_to_hbm [thread:$0]  %s3700, 128, %s3702, [#allocation6]
    $region77: #{gmsvae_forward.1} parent=1 // pred_fallthru
      _
    // Predicated region
    $region78: #{gmsvae_forward.1} parent=1 // pred_check
      _
    $region79: #{gmsvae_forward.1} parent=1 // pred_check_branch
      %3706 = sbr.rel (0) target = $region81
    $region80: #{gmsvae_forward.1} parent=1 // pred_region
      _
    $region81: #{gmsvae_forward.1} parent=1 // pred_fallthru
      _
    // Predicated region
    $region82: #{gmsvae_forward.1} parent=1 // pred_check
      _
    $region83: #{gmsvae_forward.1} parent=1 // pred_check_branch
      %3708 = sbr.rel (0) target = $region85
    $region84: #{gmsvae_forward.1} parent=1 // pred_region
      %3710 = vsyncadd [#allocation8], 0
      %s3711 = sshll.u32 [#allocation7], 4
      %s3712 = int_to_ptr.vmem [resolvable:$true] %s3711
      %s3713 = sshll.u32 %s20, 4
      %s3714 = int_to_ptr.hbm [resolvable:$true] %s3713
      %3719 = dma.vmem_to_hbm [thread:$0]  %s3712, 2304, %s3714, [#allocation8], 256, 256, 16
    $region85: #{gmsvae_forward.1} parent=1 // pred_fallthru
      _
    // Predicated region
    $region86: #{gmsvae_forward.1} parent=1 // pred_check
      _
    $region87: #{gmsvae_forward.1} parent=1 // pred_check_branch
      %3721 = sbr.rel (0) target = $region89
    $region88: #{gmsvae_forward.1} parent=1 // pred_region
      %3723 = dma.done [#allocation6], 128
    $region89: #{gmsvae_forward.1} parent=1 // pred_fallthru
      _
    // Predicated region
    $region90: #{gmsvae_forward.1} parent=1 // pred_check
      _
    $region91: #{gmsvae_forward.1} parent=1 // pred_check_branch
      %3725 = sbr.rel (0) target = $region93
    $region92: #{gmsvae_forward.1} parent=1 // pred_region
      _
    $region93: #{gmsvae_forward.1} parent=1 // pred_fallthru
      _
    // Predicated region
    $region94: #{gmsvae_forward.1} parent=1 // pred_check
      _
    $region95: #{gmsvae_forward.1} parent=1 // pred_check_branch
      %3727 = sbr.rel (0) target = $region97
    $region96: #{gmsvae_forward.1} parent=1 // pred_region
      %3729 = dma.done [#allocation8], 2304
    $region97: #{gmsvae_forward.1} parent=1 // pred_fallthru
      _
    %3730 = vsyncpa [#allocation6], 1
    %3731 = vsyncpa [#allocation8], 1

</llo_original>
